<compile_context>
chip_gen: v6e
topology: v6e:2x2x1
jax: 0.10.0
libtpu: 0.0.40
codegen_flags: <defaults>
</compile_context>

<pallas_src>
import functools
import math

import numpy as np
import jax
import jax.numpy as jnp
from jax.experimental import pallas as pl
from jax.experimental.pallas import tpu as pltpu


_WINDOW_SIZE = 11
_PAD = _WINDOW_SIZE // 2
_SIGMA = 1.5
_C1 = 0.01 ** 2
_C2 = 0.03 ** 2


def _gaussian_weights(window_size=_WINDOW_SIZE, sigma=_SIGMA):
    g = [math.exp(-((x - window_size // 2) ** 2) / (2.0 * sigma ** 2))
         for x in range(window_size)]
    s = sum(g)
    return tuple(v / s for v in g)


def _band_matrix(size, weights):
    """Edge-clipped banded conv matrix: M[c, j] = w[PAD + c - j] for |c-j|<=PAD.
    Right-multiplying (rows, size) @ M applies the 11-tap conv with zero
    padding along the last axis."""
    m = np.zeros((size, size), np.float32)
    for j in range(size):
        lo = max(0, j - _PAD)
        hi = min(size, j + _PAD + 1)
        for c in range(lo, hi):
            m[c, j] = weights[_PAD + c - j]
    return jnp.asarray(m)


def _round_up(x, m):
    return (x + m - 1) // m * m


def _ssim_kernel(x1_ref, x2_ref, aw_ref, ah_ref, osum_ref, *, tb, h, w):
    """One grid step: TB images of img1/img2 -> partial sum of the SSIM map."""
    x1 = x1_ref[...].astype(jnp.float32)          # (tb*h, w)
    x2 = x2_ref[...].astype(jnp.float32)
    aw = aw_ref[...]                              # (w, w) banded Gaussian, f32
    ah = ah_ref[...]                              # (h, h) banded Gaussian, f32

    # Stack the five quantities along rows: one large lane-dense MXU operand.
    x5 = jnp.concatenate([x1, x2, x1 * x1, x2 * x2, x1 * x2], axis=0)  # (5*tb*h, w)

    # Separable Gaussian blur as two banded matmuls on the MXU
    # (band clipping in aw/ah == F.conv2d zero padding of 5).
    prec = jax.lax.Precision.HIGHEST
    # W-pass: contract the lane dim against the (w, w) band matrix.
    y = jnp.dot(x5, aw, preferred_element_type=jnp.float32,
                precision=prec)                                        # (5*tb*h, w)
    # H-pass: batched minor-dim transpose (XLU), then one big 2D matmul.
    yt = jnp.swapaxes(y.reshape(5 * tb, h, w), 1, 2)                   # (5*tb, w, h)
    blur = jnp.dot(yt.reshape(5 * tb * w, h), ah,
                   preferred_element_type=jnp.float32,
                   precision=prec)                                     # (5*tb*w, h)
    blur = blur.reshape(5 * tb, w, h)   # layout (img, W, H); downstream is purely
                                        # elementwise + full reduction, so the
                                        # swapped layout is irrelevant.

    mu1 = blur[0 * tb:1 * tb]
    mu2 = blur[1 * tb:2 * tb]
    e11 = blur[2 * tb:3 * tb]
    e22 = blur[3 * tb:4 * tb]
    e12 = blur[4 * tb:5 * tb]

    mu1_sq = mu1 * mu1
    mu2_sq = mu2 * mu2
    mu1_mu2 = mu1 * mu2
    sigma1_sq = e11 - mu1_sq
    sigma2_sq = e22 - mu2_sq
    sigma12 = e12 - mu1_mu2

    num = (2.0 * mu1_mu2 + _C1) * (2.0 * sigma12 + _C2)
    den = (mu1_sq + mu2_sq + _C1) * (sigma1_sq + sigma2_sq + _C2)
    ssim_map = num / den                                               # (tb, w, h)

    # Per-block partial sum; final mean happens in the wrapper.
    osum_ref[...] = jnp.sum(ssim_map, axis=(0, 1, 2), keepdims=True)   # (1,1,1)


def _vmem_budget_bytes():
    """(usable working-set budget, vmem_limit_bytes) per TPU generation."""
    cap = None
    try:
        info = pltpu.get_tpu_info()
        cap = getattr(info, "vmem_capacity_bytes", None)
    except Exception:
        cap = None
    if not cap:
        cap = 64 * 1024 * 1024            # v7x-safe fallback
    budget = min(int(cap * 0.55), 72 * 1024 * 1024)
    limit = min(int(cap * 0.85), 100 * 1024 * 1024)
    return budget, limit


def _pick_tb(n, h, w, budget_bytes):
    """Largest per-step image count whose (8,128)-tile-rounded working set fits
    the VMEM budget, capped so the grid has >= 2 steps (v7x megacore)."""
    w128 = _round_up(w, 128)
    h128 = _round_up(h, 128)
    h8 = _round_up(h, 8)
    w8 = _round_up(w, 8)
    per_img = 4 * (
        2 * 2 * h8 * w128        # double-buffered x1/x2 input blocks
        + 5 * h8 * w128          # stacked quantities x5
        + 5 * h8 * w128          # W-pass result y
        + 5 * w8 * h128          # transposed y
        + 5 * w8 * h128          # H-pass result (blur)
        + 8 * w8 * h128          # elementwise SSIM temporaries
    )
    per_img = int(per_img * 1.5)                  # safety factor
    tb = max(1, budget_bytes // max(per_img, 1))
    if n > 1:
        tb = min(tb, pl.cdiv(n, 2))               # >= 2 grid steps
    tb = min(tb, max(1, n))
    # Keep the input block's second-minor dim (tb*h) a multiple of 8.
    m = 8 // math.gcd(h, 8)
    tb = max(m, (tb // m) * m)
    return tb


def ssim_loss(img1, img2):
    """Pallas-TPU forward of SSIM_loss(window_size=11, size_average=True)."""
    assert img1.shape == img2.shape
    b, c, h, w = img1.shape
    n = b * c

    budget, vmem_limit = _vmem_budget_bytes()
    tb = _pick_tb(n, h, w, budget)
    n_pad = _round_up(n, tb)
    grid = n_pad // tb

    x1 = img1.reshape(n, h, w)
    x2 = img2.reshape(n, h, w)
    if n_pad != n:
        pad = ((0, n_pad - n), (0, 0), (0, 0))
        x1 = jnp.pad(x1, pad)                     # all-zero padded images
        x2 = jnp.pad(x2, pad)
    x1 = x1.reshape(n_pad * h, w)                 # lane-dense 2D view, free reshape
    x2 = x2.reshape(n_pad * h, w)

    weights = _gaussian_weights()
    aw = _band_matrix(w, weights)                 # (w, w) f32
    ah = _band_matrix(h, weights)                 # (h, h) f32

    kernel = functools.partial(_ssim_kernel, tb=tb, h=h, w=w)

    partial_sums = pl.pallas_call(
        kernel,
        out_shape=jax.ShapeDtypeStruct((grid, 1, 1), jnp.float32),
        grid_spec=pltpu.PrefetchScalarGridSpec(
            num_scalar_prefetch=0,
            grid=(grid,),
            in_specs=[
                pl.BlockSpec((tb * h, w), lambda i: (i, 0)),
                pl.BlockSpec((tb * h, w), lambda i: (i, 0)),
                pl.BlockSpec((w, w), lambda i: (0, 0)),
                pl.BlockSpec((h, h), lambda i: (0, 0)),
            ],
            out_specs=pl.BlockSpec((1, 1, 1), lambda i: (i, 0, 0)),
        ),
        compiler_params=pltpu.CompilerParams(
            dimension_semantics=("parallel",),
            vmem_limit_bytes=vmem_limit,
        ),
    )(x1, x2, aw, ah)

    total = jnp.sum(partial_sums)
    # Each all-zero padded image yields an SSIM map of exactly 1.0 everywhere
    # (num == den == C1*C2): remove its known contribution.
    total = total - (n_pad - n) * float(h * w)
    # size_average=True: mean over the full (B, C, H, W) SSIM map.
    return total / float(n * h * w)


def _ssim_reference(img1, img2):
    """Pure-JAX reference (depthwise lax.conv with the 11x11 window)."""
    _, c, _, _ = img1.shape
    g = jnp.asarray(_gaussian_weights(), jnp.float32)
    w2d = jnp.outer(g, g)
    kern = jnp.tile(w2d[None, None], (c, 1, 1, 1))

    def conv(x):
        return jax.lax.conv_general_dilated(
            x, kern, window_strides=(1, 1),
            padding=((_PAD, _PAD), (_PAD, _PAD)),
            dimension_numbers=("NCHW", "OIHW", "NCHW"),
            feature_group_count=c,
            precision=jax.lax.Precision.HIGHEST)

    x1 = img1.astype(jnp.float32)
    x2 = img2.astype(jnp.float32)
    mu1, mu2 = conv(x1), conv(x2)
    mu1_sq, mu2_sq, mu1_mu2 = mu1 * mu1, mu2 * mu2, mu1 * mu2
    sigma1_sq = conv(x1 * x1) - mu1_sq
    sigma2_sq = conv(x2 * x2) - mu2_sq
    sigma12 = conv(x1 * x2) - mu1_mu2
    ssim_map = ((2.0 * mu1_mu2 + _C1) * (2.0 * sigma12 + _C2)
                / ((mu1_sq + mu2_sq + _C1) * (sigma1_sq + sigma2_sq + _C2)))
    return ssim_map.mean()


if __name__ == "__main__":
    key = jax.random.PRNGKey(0)
    k1, k2 = jax.random.split(key)
    B, C, H, W = 2, 4, 16, 16
    img1 = jax.random.uniform(k1, (B, C, H, W), dtype=jnp.float32)
    img2 = jax.random.uniform(k2, (B, C, H, W), dtype=jnp.float32)

    out = jax.block_until_ready(ssim_loss(img1, img2))
    ref = _ssim_reference(img1, img2)

    assert out.shape == ()
    assert jnp.allclose(out, ref, atol=2e-4, rtol=2e-4), (out, ref)

    print("KERNEL_OK")
</pallas_src>

<mosaic_0001>
module attributes {stable_mosaic.version = 11 : i64} {
  func.func @_ssim_kernel(%arg0: i32, %arg1: memref<64x16xf32, #tpu.memory_space<vmem>>, %arg2: memref<64x16xf32, #tpu.memory_space<vmem>>, %arg3: memref<16x16xf32, #tpu.memory_space<vmem>>, %arg4: memref<16x16xf32, #tpu.memory_space<vmem>>, %arg5: memref<1x1x1xf32, #tpu.memory_space<vmem>>) attributes {dimension_semantics = [#tpu.dimension_semantics<parallel>], iteration_bounds = array<i64: 2>, scalar_prefetch = 0 : i64, scratch_operands = 0 : i64, tpu.core_type = #tpu.core_type<tc>, window_params = [{transform_indices = @transform_0, window_bounds = array<i64: 64, 16>}, {transform_indices = @transform_1, window_bounds = array<i64: 64, 16>}, {pipeline_mode = #tpu.pipeline_mode<synchronous>, transform_indices = @transform_2, window_bounds = array<i64: 16, 16>}, {pipeline_mode = #tpu.pipeline_mode<synchronous>, transform_indices = @transform_3, window_bounds = array<i64: 16, 16>}, {transform_indices = @transform_4, window_bounds = array<i64: 1, 1, 1>}]} {
    %c0 = arith.constant 0 : index
    %c0_0 = arith.constant 0 : index
    %0 = vector.load %arg1[%c0, %c0_0] : memref<64x16xf32, #tpu.memory_space<vmem>>, vector<64x16xf32>
    %c0_1 = arith.constant 0 : index
    %c0_2 = arith.constant 0 : index
    %1 = vector.load %arg2[%c0_1, %c0_2] : memref<64x16xf32, #tpu.memory_space<vmem>>, vector<64x16xf32>
    %c0_3 = arith.constant 0 : index
    %c0_4 = arith.constant 0 : index
    %2 = vector.load %arg3[%c0_3, %c0_4] : memref<16x16xf32, #tpu.memory_space<vmem>>, vector<16x16xf32>
    %c0_5 = arith.constant 0 : index
    %c0_6 = arith.constant 0 : index
    %3 = vector.load %arg4[%c0_5, %c0_6] : memref<16x16xf32, #tpu.memory_space<vmem>>, vector<16x16xf32>
    %4 = arith.mulf %0, %0 : vector<64x16xf32>
    %5 = arith.mulf %1, %1 : vector<64x16xf32>
    %6 = arith.mulf %0, %1 : vector<64x16xf32>
    %7 = tpu.concatenate %0, %1, %4, %5, %6 in 0 : vector<64x16xf32>, vector<64x16xf32>, vector<64x16xf32>, vector<64x16xf32>, vector<64x16xf32> -> vector<320x16xf32>
    %cst = arith.constant dense<0.000000e+00> : vector<320x16xf32>
    %8 = tpu.matmul %7, %2, %cst {dimension_numbers = #tpu.dot_dimension_numbers<[1], [0], [0], [1], [0, 0, 1, 1], [], []>, precision = #tpu.contract_precision<fp32>} : vector<320x16xf32>, vector<16x16xf32>, vector<320x16xf32> -> vector<320x16xf32>
    %9 = vector.shape_cast %8 : vector<320x16xf32> to vector<20x16x16xf32>
    %10 = tpu.transpose %9, [0, 2, 1] : vector<20x16x16xf32> -> vector<20x16x16xf32>
    %11 = vector.shape_cast %10 : vector<20x16x16xf32> to vector<320x16xf32>
    %cst_7 = arith.constant dense<0.000000e+00> : vector<320x16xf32>
    %12 = tpu.matmul %11, %3, %cst_7 {dimension_numbers = #tpu.dot_dimension_numbers<[1], [0], [0], [1], [0, 0, 1, 1], [], []>, precision = #tpu.contract_precision<fp32>} : vector<320x16xf32>, vector<16x16xf32>, vector<320x16xf32> -> vector<320x16xf32>
    %13 = vector.shape_cast %12 : vector<320x16xf32> to vector<20x16x16xf32>
    %14 = vector.extract_strided_slice %13 {offsets = [0, 0, 0], sizes = [4, 16, 16], strides = [1, 1, 1]} : vector<20x16x16xf32> to vector<4x16x16xf32>
    %15 = vector.extract_strided_slice %13 {offsets = [4, 0, 0], sizes = [4, 16, 16], strides = [1, 1, 1]} : vector<20x16x16xf32> to vector<4x16x16xf32>
    %16 = vector.extract_strided_slice %13 {offsets = [8, 0, 0], sizes = [4, 16, 16], strides = [1, 1, 1]} : vector<20x16x16xf32> to vector<4x16x16xf32>
    %17 = vector.extract_strided_slice %13 {offsets = [12, 0, 0], sizes = [4, 16, 16], strides = [1, 1, 1]} : vector<20x16x16xf32> to vector<4x16x16xf32>
    %18 = vector.extract_strided_slice %13 {offsets = [16, 0, 0], sizes = [4, 16, 16], strides = [1, 1, 1]} : vector<20x16x16xf32> to vector<4x16x16xf32>
    %19 = arith.mulf %14, %14 : vector<4x16x16xf32>
    %20 = arith.mulf %15, %15 : vector<4x16x16xf32>
    %21 = arith.mulf %14, %15 : vector<4x16x16xf32>
    %22 = arith.subf %16, %19 : vector<4x16x16xf32>
    %23 = arith.subf %17, %20 : vector<4x16x16xf32>
    %24 = arith.subf %18, %21 : vector<4x16x16xf32>
    %cst_8 = arith.constant 2.000000e+00 : f32
    %25 = vector.broadcast %cst_8 : f32 to vector<4x16x16xf32>
    %26 = arith.mulf %25, %21 : vector<4x16x16xf32>
    %cst_9 = arith.constant 9.99999974E-5 : f32
    %27 = vector.broadcast %cst_9 : f32 to vector<4x16x16xf32>
    %28 = arith.addf %26, %27 : vector<4x16x16xf32>
    %cst_10 = arith.constant 2.000000e+00 : f32
    %29 = vector.broadcast %cst_10 : f32 to vector<4x16x16xf32>
    %30 = arith.mulf %29, %24 : vector<4x16x16xf32>
    %cst_11 = arith.constant 8.99999984E-4 : f32
    %31 = vector.broadcast %cst_11 : f32 to vector<4x16x16xf32>
    %32 = arith.addf %30, %31 : vector<4x16x16xf32>
    %33 = arith.mulf %28, %32 : vector<4x16x16xf32>
    %34 = arith.addf %19, %20 : vector<4x16x16xf32>
    %cst_12 = arith.constant 9.99999974E-5 : f32
    %35 = vector.broadcast %cst_12 : f32 to vector<4x16x16xf32>
    %36 = arith.addf %34, %35 : vector<4x16x16xf32>
    %37 = arith.addf %22, %23 : vector<4x16x16xf32>
    %cst_13 = arith.constant 8.99999984E-4 : f32
    %38 = vector.broadcast %cst_13 : f32 to vector<4x16x16xf32>
    %39 = arith.addf %37, %38 : vector<4x16x16xf32>
    %40 = arith.mulf %36, %39 : vector<4x16x16xf32>
    %41 = arith.divf %33, %40 : vector<4x16x16xf32>
    %42 = vector.shape_cast %41 : vector<4x16x16xf32> to vector<1x4x16x16xf32>
    %cst_14 = arith.constant dense<0.000000e+00> : vector<1xf32>
    %43 = vector.multi_reduction <add>, %42, %cst_14 [1, 2, 3] : vector<1x4x16x16xf32> to vector<1xf32>
    %44 = vector.shape_cast %43 : vector<1xf32> to vector<1x1x1x1xf32>
    %45 = vector.extract %44[0, 0, 0, 0] : f32 from vector<1x1x1x1xf32>
    %46 = vector.broadcast %45 : f32 to vector<1x1x1xf32>
    %c0_15 = arith.constant 0 : index
    %c0_16 = arith.constant 0 : index
    %c0_17 = arith.constant 0 : index
    %47 = vector.load %arg5[%c0_15, %c0_16, %c0_17] : memref<1x1x1xf32, #tpu.memory_space<vmem>>, vector<1x1x1xf32>
    tpu.vector_store %arg5[%c0_15, %c0_16, %c0_17], %46 {strides = array<i32>} : memref<1x1x1xf32, #tpu.memory_space<vmem>>, vector<1x1x1xf32>,
    return
  }
  func.func @transform_0(%arg0: i32) -> (i32, i32) {
    %c0_i32 = arith.constant 0 : i32
    %c0_i32_0 = arith.constant 0 : i32
    return %arg0, %c0_i32 : i32, i32
  }
  func.func @transform_1(%arg0: i32) -> (i32, i32) {
    %c0_i32 = arith.constant 0 : i32
    %c0_i32_0 = arith.constant 0 : i32
    return %arg0, %c0_i32 : i32, i32
  }
  func.func @transform_2(%arg0: i32) -> (i32, i32) {
    %c0_i32 = arith.constant 0 : i32
    %c0_i32_0 = arith.constant 0 : i32
    %c0_i32_1 = arith.constant 0 : i32
    return %c0_i32, %c0_i32_0 : i32, i32
  }
  func.func @transform_3(%arg0: i32) -> (i32, i32) {
    %c0_i32 = arith.constant 0 : i32
    %c0_i32_0 = arith.constant 0 : i32
    %c0_i32_1 = arith.constant 0 : i32
    return %c0_i32, %c0_i32_0 : i32, i32
  }
  func.func @transform_4(%arg0: i32) -> (i32, i32, i32) {
    %c0_i32 = arith.constant 0 : i32
    %c0_i32_0 = arith.constant 0 : i32
    %c0_i32_1 = arith.constant 0 : i32
    return %arg0, %c0_i32, %c0_i32_0 : i32, i32, i32
  }
}

</mosaic_0001>

<llo_original>
// kernel: tpu_custom_call.1
$region0: #{tpu_custom_call.1}
  #allocation0 [shape = 'u32[]', space=smem, size = 0x4, offset = 0x4, fixed_abs, tag = 'smem constant byte address 0x4 - core index']
  #allocation1 [shape = 'u32[144,128]{1,0:T(1,128)}', space=vmem, size = 0x12000, scoped, tag = 'internal scratch']
  %s0 = inlined_call_operand.vmem [shape: f32[128,16], index: 0, kind: input, shape index: {}]
  %s1 = inlined_call_operand.vmem [shape: f32[128,16], index: 1, kind: input, shape index: {}]
  %s2 = inlined_call_operand.vmem [shape: f32[16,16], index: 2, kind: input, shape index: {}]
  %s3 = inlined_call_operand.vmem [shape: f32[16,16], index: 3, kind: input, shape index: {}]
  %s4 = inlined_call_operand.vmem [shape: f32[2,1,1], index: 4, kind: output, shape index: {}]
  %s5 = sld [smem:[#allocation0]]
  $region49: #{tpu_custom_call.1} parent=0
    _
  %s7 = ssub.s32 1, %s5
  %s8 = scalar_select 0, %s7, %s5
  loop: start=0, step=1, limit=4
  $region2: #{tpu_custom_call.1} parent=0 // loop_pre_header
    _
  $region3: #{tpu_custom_call.1} parent=0 // loop_header
    %s10 = sphi 0, %s14
    %p11 = scmp.ge.s32.totalorder %s10, 4
    %s20 = sphi 0, %s22
    %s23 = sphi 0, %s20
    %s24 = sphi 0, %s23
    %s40 = sphi 0, %s24
    %s46 = sphi 0, %s48
    %s49 = sphi 0, %s46
    %s50 = sphi 0, %s49
    %s66 = sphi 0, %s50
    %s70 = sphi 0, %s70
    %s72 = sphi 0, %s70
    %s73 = sphi 0, %s72
    %s87 = sphi 0, %s73
    %s91 = sphi 0, %s91
    %s93 = sphi 0, %s91
    %s94 = sphi 0, %s93
    %s108 = sphi 0, %s94
    %s114 = sphi 0, %s116
    %s117 = sphi 0, %s114
    %s118 = sphi 0, %s117
    %s134 = sphi 0, %s118
  $region4: #{tpu_custom_call.1} parent=0 // loop_header_branch
    %13 = sbr.rel (%p11) target = $region8
  $region5: #{tpu_custom_call.1} parent=0 // loop_body
    %s15 = ssub.s32 %s10, 1
    %s16 = ssub.s32 %s10, 2
    %s17 = sadd.s32 %s10, 1
    %s18 = ssub.s32 %s10, %s17
    %p19 = scmp.eq.s32.totalorder %s18, 0
    %s21 = sadd.s32 %s20, 1
    %s22 = scalar_select %p19, %s20, %s21
    %p25 = pneg %p19
    %p26 = scmp.eq.s32.totalorder %s10, 1
    %p27 = por %p25, %p26
    %p28 = scmp.ne.s32.totalorder %s20, %s23
    %p29 = scmp.eq.s32.totalorder %s10, 0
    %p30 = por %p28, %p29
    %p31 = scmp.ne.s32.totalorder %s20, %s23
    %p32 = scmp.eq.s32.totalorder %s15, 1
    %p33 = por %p31, %p32
    %p34 = scmp.ne.s32.totalorder %s23, %s24
    %p35 = scmp.eq.s32.totalorder %s15, 0
    %p36 = por %p34, %p35
    %p37 = scmp.ne.s32.totalorder %s23, %s24
    %p38 = scmp.eq.s32.totalorder %s16, 1
    %p39 = por %p37, %p38
    %p41 = scmp.ne.s32.totalorder %s24, %s40
    %p42 = scmp.eq.s32.totalorder %s16, 0
    %p43 = por %p41, %p42
    %s44 = ssub.s32 %s10, %s17
    %p45 = scmp.eq.s32.totalorder %s44, 0
    %s47 = sadd.s32 %s46, 1
    %s48 = scalar_select %p45, %s46, %s47
    %p51 = pneg %p45
    %p52 = scmp.eq.s32.totalorder %s10, 1
    %p53 = por %p51, %p52
    %p54 = scmp.ne.s32.totalorder %s46, %s49
    %p55 = scmp.eq.s32.totalorder %s10, 0
    %p56 = por %p54, %p55
    %p57 = scmp.ne.s32.totalorder %s46, %s49
    %p58 = scmp.eq.s32.totalorder %s15, 1
    %p59 = por %p57, %p58
    %p60 = scmp.ne.s32.totalorder %s49, %s50
    %p61 = scmp.eq.s32.totalorder %s15, 0
    %p62 = por %p60, %p61
    %p63 = scmp.ne.s32.totalorder %s49, %s50
    %p64 = scmp.eq.s32.totalorder %s16, 1
    %p65 = por %p63, %p64
    %p67 = scmp.ne.s32.totalorder %s50, %s66
    %p68 = scmp.eq.s32.totalorder %s16, 0
    %p69 = por %p67, %p68
    %s71 = sadd.s32 %s70, 1
    %p74 = scmp.eq.s32.totalorder %s10, 1
    %p75 = scmp.ne.s32.totalorder %s70, %s72
    %p76 = scmp.eq.s32.totalorder %s10, 0
    %p77 = por %p75, %p76
    %p78 = scmp.ne.s32.totalorder %s70, %s72
    %p79 = scmp.eq.s32.totalorder %s15, 1
    %p80 = por %p78, %p79
    %p81 = scmp.ne.s32.totalorder %s72, %s73
    %p82 = scmp.eq.s32.totalorder %s15, 0
    %p83 = por %p81, %p82
    %p84 = scmp.ne.s32.totalorder %s72, %s73
    %p85 = scmp.eq.s32.totalorder %s16, 1
    %p86 = por %p84, %p85
    %p88 = scmp.ne.s32.totalorder %s73, %s87
    %p89 = scmp.eq.s32.totalorder %s16, 0
    %p90 = por %p88, %p89
    %s92 = sadd.s32 %s91, 1
    %p95 = scmp.eq.s32.totalorder %s10, 1
    %p96 = scmp.ne.s32.totalorder %s91, %s93
    %p97 = scmp.eq.s32.totalorder %s10, 0
    %p98 = por %p96, %p97
    %p99 = scmp.ne.s32.totalorder %s91, %s93
    %p100 = scmp.eq.s32.totalorder %s15, 1
    %p101 = por %p99, %p100
    %p102 = scmp.ne.s32.totalorder %s93, %s94
    %p103 = scmp.eq.s32.totalorder %s15, 0
    %p104 = por %p102, %p103
    %p105 = scmp.ne.s32.totalorder %s93, %s94
    %p106 = scmp.eq.s32.totalorder %s16, 1
    %p107 = por %p105, %p106
    %p109 = scmp.ne.s32.totalorder %s94, %s108
    %p110 = scmp.eq.s32.totalorder %s16, 0
    %p111 = por %p109, %p110
    %s112 = ssub.s32 %s10, %s17
    %p113 = scmp.eq.s32.totalorder %s112, 0
    %s115 = sadd.s32 %s114, 1
    %s116 = scalar_select %p113, %s114, %s115
    %p119 = pneg %p113
    %p120 = scmp.eq.s32.totalorder %s10, 1
    %p121 = por %p119, %p120
    %p122 = scmp.ne.s32.totalorder %s114, %s117
    %p123 = scmp.eq.s32.totalorder %s10, 0
    %p124 = por %p122, %p123
    %p125 = scmp.ne.s32.totalorder %s114, %s117
    %p126 = scmp.eq.s32.totalorder %s15, 1
    %p127 = por %p125, %p126
    %p128 = scmp.ne.s32.totalorder %s117, %s118
    %p129 = scmp.eq.s32.totalorder %s15, 0
    %p130 = por %p128, %p129
    %p131 = scmp.ne.s32.totalorder %s117, %s118
    %p132 = scmp.eq.s32.totalorder %s16, 1
    %p133 = por %p131, %p132
    %p135 = scmp.ne.s32.totalorder %s118, %s134
    %p136 = scmp.eq.s32.totalorder %s16, 0
    %p137 = por %p135, %p136
    %p138 = scmp.le.s32.totalorder 1, %s10
    %p139 = scmp.lt.s32.totalorder %s10, 3
    %p140 = pnand %p138, %p139
    %p141 = pneg %p140
    // Predicated region
    $region9: #{tpu_custom_call.1} parent=5 // pred_check
      _
    $region10: #{tpu_custom_call.1} parent=5 // pred_check_branch
      %143 = sbr.rel (%p140) target = $region12
    $region11: #{tpu_custom_call.1} parent=5 // pred_region
      %s144 = ssub.s32 %s10, 1
      // Predicated region
      $region13: #{tpu_custom_call.1} parent=11 // pred_check
        %p145 = pneg %p83
      $region14: #{tpu_custom_call.1} parent=11 // pred_check_branch
        %147 = sbr.rel (%p145) target = $region16
      $region15: #{tpu_custom_call.1} parent=11 // pred_region
        _
      $region16: #{tpu_custom_call.1} parent=11 // pred_fallthru
        _
      // Predicated region
      $region17: #{tpu_custom_call.1} parent=11 // pred_check
        %p148 = pneg %p104
      $region18: #{tpu_custom_call.1} parent=11 // pred_check_branch
        %150 = sbr.rel (%p148) target = $region20
      $region19: #{tpu_custom_call.1} parent=11 // pred_region
        _
      $region20: #{tpu_custom_call.1} parent=11 // pred_fallthru
        _
    $region12: #{tpu_custom_call.1} parent=5 // pred_fallthru
      _
    %p151 = scmp.lt.s32.totalorder %s10, 2
    // Predicated region
    $region21: #{tpu_custom_call.1} parent=5 // pred_check
      %p152 = pneg %p151
    $region22: #{tpu_custom_call.1} parent=5 // pred_check_branch
      %154 = sbr.rel (%p152) target = $region24
    $region23: #{tpu_custom_call.1} parent=5 // pred_region
      // Predicated region
      $region25: #{tpu_custom_call.1} parent=23 // pred_check
        %p155 = pneg %p30
      $region26: #{tpu_custom_call.1} parent=23 // pred_check_branch
        %157 = sbr.rel (%p155) target = $region28
      $region27: #{tpu_custom_call.1} parent=23 // pred_region
        %s158 = smul.u32 8, %s10
        %p159 = scmp.lt.s32.totalorder %s158, 15
        %s160 = scalar_select %p159, %s158, 15
        %s161 = smul.addr %s160, 8
        %s162 = scalar_lea.vmem %s0, %s161
        %s163 = smul.u32 8, %s10
      $region28: #{tpu_custom_call.1} parent=23 // pred_fallthru
        _
      // Predicated region
      $region29: #{tpu_custom_call.1} parent=23 // pred_check
        %p164 = pneg %p56
      $region30: #{tpu_custom_call.1} parent=23 // pred_check_branch
        %166 = sbr.rel (%p164) target = $region32
      $region31: #{tpu_custom_call.1} parent=23 // pred_region
        %s167 = smul.u32 8, %s10
        %p168 = scmp.lt.s32.totalorder %s167, 15
        %s169 = scalar_select %p168, %s167, 15
        %s170 = smul.addr %s169, 8
        %s171 = scalar_lea.vmem %s1, %s170
        %s172 = smul.u32 8, %s10
      $region32: #{tpu_custom_call.1} parent=23 // pred_fallthru
        _
    $region24: #{tpu_custom_call.1} parent=5 // pred_fallthru
      _
    %p173 = scmp.le.s32.totalorder 1, %s10
    %p174 = scmp.lt.s32.totalorder %s10, 3
    %p175 = pnand %p173, %p174
    %p176 = pneg %p175
    // Predicated region
    $region33: #{tpu_custom_call.1} parent=5 // pred_check
      _
    $region34: #{tpu_custom_call.1} parent=5 // pred_check_branch
      %178 = sbr.rel (%p175) target = $region36
    $region35: #{tpu_custom_call.1} parent=5 // pred_region
      %s179 = ssub.s32 %s10, 1
      %s180 = smul.u32 8, %s15
      %p181 = scmp.lt.s32.totalorder %s180, 15
      %s182 = scalar_select %p181, %s180, 15
      %s183 = smul.addr %s182, 8
      %s184 = scalar_lea.vmem %s0, %s183
      %p185 = pneg %p36
      %p186 = pneg %p33
      %s187 = smul.u32 8, %s15
      %p188 = scmp.lt.s32.totalorder %s187, 15
      %s189 = scalar_select %p188, %s187, 15
      %s190 = smul.addr %s189, 8
      %s191 = scalar_lea.vmem %s1, %s190
      %p192 = pneg %p62
      %p193 = pneg %p59
      %p194 = pneg %p83
      %p195 = pneg %p80
      %p196 = pneg %p104
      %p197 = pneg %p101
      %p198 = pneg %p130
      %p199 = pneg %p127
      %p200 = scmp.lt.s32.totalorder %s15, 1
      %s201 = scalar_select %p200, %s15, 1
      %s202 = scalar_lea.vmem %s4, %s201
      %s203 = smul.u32 8, %s15
      %p204 = scmp.lt.s32.totalorder %s203, 15
      %s205 = scalar_select %p204, %s203, 15
      %s206 = smul.addr %s205, 8
      %s207 = scalar_lea.vmem %s0, %s206
      %s208 = smul.u32 8, %s15
      %s209 = smul.u32 8, %s15
      %p210 = scmp.lt.s32.totalorder %s209, 15
      %s211 = scalar_select %p210, %s209, 15
      %s212 = smul.addr %s211, 8
      %s213 = scalar_lea.vmem %s1, %s212
      %s214 = smul.u32 8, %s15
      %p215 = scmp.lt.s32.totalorder %s15, 1
      %s216 = scalar_select %p215, %s15, 1
      %s217 = scalar_lea.vmem %s4, %s216
      %v218 = vld [vmem:[%s207] sm:$0xff]
      %v219 = vld [vmem:[%s207 + $0x8] sm:$0xff]
      %v220 = vld [vmem:[%s207 + $0x10] sm:$0xff]
      %v221 = vld [vmem:[%s207 + $0x18] sm:$0xff]
      %v222 = vld [vmem:[%s207 + $0x20] sm:$0xff]
      %v223 = vld [vmem:[%s207 + $0x28] sm:$0xff]
      %v224 = vld [vmem:[%s207 + $0x30] sm:$0xff]
      %v225 = vld [vmem:[%s207 + $0x38] sm:$0xff]
      %v226 = vld [vmem:[%s213] sm:$0xff]
      %v227 = vld [vmem:[%s213 + $0x8] sm:$0xff]
      %v228 = vld [vmem:[%s213 + $0x10] sm:$0xff]
      %v229 = vld [vmem:[%s213 + $0x18] sm:$0xff]
      %v230 = vld [vmem:[%s213 + $0x20] sm:$0xff]
      %v231 = vld [vmem:[%s213 + $0x28] sm:$0xff]
      %v232 = vld [vmem:[%s213 + $0x30] sm:$0xff]
      %v233 = vld [vmem:[%s213 + $0x38] sm:$0xff]
      %v234 = vld [vmem:[%s2] sm:$0xff]
      %v235 = vld [vmem:[%s2 + $0x8] sm:$0xff]
      %v236 = vld [vmem:[%s3] sm:$0xff]
      %v237 = vld [vmem:[%s3 + $0x8] sm:$0xff]
      %v238 = vmul.f32 %v218, %v218
      %v239 = vmul.f32 %v219, %v219
      %v240 = vmul.f32 %v220, %v220
      %v241 = vmul.f32 %v221, %v221
      %v242 = vmul.f32 %v222, %v222
      %v243 = vmul.f32 %v223, %v223
      %v244 = vmul.f32 %v224, %v224
      %v245 = vmul.f32 %v225, %v225
      %v246 = vmul.f32 %v226, %v226
      %v247 = vmul.f32 %v227, %v227
      %v248 = vmul.f32 %v228, %v228
      %v249 = vmul.f32 %v229, %v229
      %v250 = vmul.f32 %v230, %v230
      %v251 = vmul.f32 %v231, %v231
      %v252 = vmul.f32 %v232, %v232
      %v253 = vmul.f32 %v233, %v233
      %v254 = vmul.f32 %v218, %v226
      %v255 = vmul.f32 %v219, %v227
      %v256 = vmul.f32 %v220, %v228
      %v257 = vmul.f32 %v221, %v229
      %v258 = vmul.f32 %v222, %v230
      %v259 = vmul.f32 %v223, %v231
      %v260 = vmul.f32 %v224, %v232
      %v261 = vmul.f32 %v225, %v233
      %vm262 = vcmask 130048
      %v264 = vsel %vm262, %v218, 0
      %v267 = vsel %vm262, %v219, 0
      %v270 = vsel %vm262, %v220, 0
      %v273 = vsel %vm262, %v221, 0
      %v276 = vsel %vm262, %v222, 0
      %v279 = vsel %vm262, %v223, 0
      %v282 = vsel %vm262, %v224, 0
      %v285 = vsel %vm262, %v225, 0
      %v288 = vsel %vm262, %v226, 0
      %v291 = vsel %vm262, %v227, 0
      %v294 = vsel %vm262, %v228, 0
      %v297 = vsel %vm262, %v229, 0
      %v300 = vsel %vm262, %v230, 0
      %v303 = vsel %vm262, %v231, 0
      %v306 = vsel %vm262, %v232, 0
      %v309 = vsel %vm262, %v233, 0
      %v312 = vsel %vm262, %v238, 0
      %v315 = vsel %vm262, %v239, 0
      %v318 = vsel %vm262, %v240, 0
      %v321 = vsel %vm262, %v241, 0
      %v324 = vsel %vm262, %v242, 0
      %v327 = vsel %vm262, %v243, 0
      %v330 = vsel %vm262, %v244, 0
      %v333 = vsel %vm262, %v245, 0
      %v336 = vsel %vm262, %v246, 0
      %v339 = vsel %vm262, %v247, 0
      %v342 = vsel %vm262, %v248, 0
      %v345 = vsel %vm262, %v249, 0
      %v348 = vsel %vm262, %v250, 0
      %v351 = vsel %vm262, %v251, 0
      %v354 = vsel %vm262, %v252, 0
      %v357 = vsel %vm262, %v253, 0
      %v360 = vsel %vm262, %v254, 0
      %v363 = vsel %vm262, %v255, 0
      %v366 = vsel %vm262, %v256, 0
      %v369 = vsel %vm262, %v257, 0
      %v372 = vsel %vm262, %v258, 0
      %v375 = vsel %vm262, %v259, 0
      %v378 = vsel %vm262, %v260, 0
      %v381 = vsel %vm262, %v261, 0
      %383 = vmatprep.subr.mxu0 0.0
      %384 = vmatpush1.msra.mxu0 0.0
      %385 = vmatprep.subr.mxu0 0.0
      %386 = vmatpush1.msra.mxu0 0.0
      %387 = vmatprep.subr.mxu0 0.0
      %388 = vmatpush1.msra.mxu0 0.0
      %389 = vmatprep.subr.mxu0 0.0
      %390 = vmatpush1.msra.mxu0 0.0
      %391 = vmatprep.subr.mxu0 0.0
      %392 = vmatpush1.msra.mxu0 0.0
      %393 = vmatprep.subr.mxu0 0.0
      %394 = vmatpush1.msra.mxu0 0.0
      %395 = vmatprep.subr.mxu0 0.0
      %396 = vmatpush1.msra.mxu0 0.0
      %397 = vmatprep.subr.mxu0 0.0
      %398 = vmatpush1.msra.mxu0 0.0
      %399 = vmatprep.subr.mxu0 0.0
      %400 = vmatpush1.msra.mxu0 0.0
      %401 = vmatprep.subr.mxu0 0.0
      %402 = vmatpush1.msra.mxu0 0.0
      %403 = vmatprep.subr.mxu0 0.0
      %404 = vmatpush1.msra.mxu0 0.0
      %405 = vmatprep.subr.mxu0 0.0
      %406 = vmatpush1.msra.mxu0 0.0
      %407 = vmatprep.subr.mxu0 0.0
      %408 = vmatpush1.msra.mxu0 0.0
      %409 = vmatprep.subr.mxu0 0.0
      %410 = vmatpush1.msra.mxu0 0.0
      %411 = vmatprep.subr.mxu0 0.0
      %v412 = vand.u32 %v235, 4294901760
      %413 = vmatpush1.msra.mxu0 %v412
      %414 = vmatprep.subr.mxu0 0.0
      %v415 = vand.u32 %v234, 4294901760
      %416 = vmatpush1.msra.mxu0 %v415
      %417 = vmatprep.subr.mxu0 0.0
      %418 = vmatpush2.msra.mxu0 0.0
      %419 = vmatprep.subr.mxu0 0.0
      %420 = vmatpush2.msra.mxu0 0.0
      %421 = vmatprep.subr.mxu0 0.0
      %422 = vmatpush2.msra.mxu0 0.0
      %423 = vmatprep.subr.mxu0 0.0
      %424 = vmatpush2.msra.mxu0 0.0
      %425 = vmatprep.subr.mxu0 0.0
      %426 = vmatpush2.msra.mxu0 0.0
      %427 = vmatprep.subr.mxu0 0.0
      %428 = vmatpush2.msra.mxu0 0.0
      %429 = vmatprep.subr.mxu0 0.0
      %430 = vmatpush2.msra.mxu0 0.0
      %431 = vmatprep.subr.mxu0 0.0
      %432 = vmatpush2.msra.mxu0 0.0
      %433 = vmatprep.subr.mxu0 0.0
      %434 = vmatpush2.msra.mxu0 0.0
      %435 = vmatprep.subr.mxu0 0.0
      %436 = vmatpush2.msra.mxu0 0.0
      %437 = vmatprep.subr.mxu0 0.0
      %438 = vmatpush2.msra.mxu0 0.0
      %439 = vmatprep.subr.mxu0 0.0
      %440 = vmatpush2.msra.mxu0 0.0
      %441 = vmatprep.subr.mxu0 0.0
      %442 = vmatpush2.msra.mxu0 0.0
      %443 = vmatprep.subr.mxu0 0.0
      %444 = vmatpush2.msra.mxu0 0.0
      %445 = vmatprep.subr.mxu0 0.0
      %446 = vmatpush2.msra.mxu0 0.0
      %447 = vmatprep.subr.mxu0 0.0
      %448 = vmatpush2.msra.mxu0 0.0
      %449 = vmatprep.mubr.f32.mxu0 0.0
      %v450 = vand.u32 %v264, 4294901760
      %v451 = vsub.f32 %v264, %v450
      %v452 = vand.u32 %v451, 4294901760
      %v453 = vsub.f32 %v451, %v452
      %v454 = vand.u32 %v453, 4294901760
      %455 = vmatmul.mubr.f32.gmra.mxu0 %v454
      %v456 = vpop.f32.mrf.mxu0
      %v457 = vadd.f32 0.0, %v456
      %v458 = vpop.f32.mrf.mxu0
      %459 = vmatprep.mubr.f32.mxu0 0.0
      %v460 = vand.u32 %v267, 4294901760
      %v461 = vsub.f32 %v267, %v460
      %v462 = vand.u32 %v461, 4294901760
      %v463 = vsub.f32 %v461, %v462
      %v464 = vand.u32 %v463, 4294901760
      %465 = vmatmul.mubr.f32.gmra.mxu0 %v464
      %v466 = vpop.f32.mrf.mxu0
      %v467 = vadd.f32 0.0, %v466
      %v468 = vpop.f32.mrf.mxu0
      %469 = vmatprep.mubr.f32.mxu0 0.0
      %v470 = vand.u32 %v270, 4294901760
      %v471 = vsub.f32 %v270, %v470
      %v472 = vand.u32 %v471, 4294901760
      %v473 = vsub.f32 %v471, %v472
      %v474 = vand.u32 %v473, 4294901760
      %475 = vmatmul.mubr.f32.gmra.mxu0 %v474
      %v476 = vpop.f32.mrf.mxu0
      %v477 = vadd.f32 0.0, %v476
      %v478 = vpop.f32.mrf.mxu0
      %479 = vmatprep.mubr.f32.mxu0 0.0
      %v480 = vand.u32 %v273, 4294901760
      %v481 = vsub.f32 %v273, %v480
      %v482 = vand.u32 %v481, 4294901760
      %v483 = vsub.f32 %v481, %v482
      %v484 = vand.u32 %v483, 4294901760
      %485 = vmatmul.mubr.f32.gmra.mxu0 %v484
      %v486 = vpop.f32.mrf.mxu0
      %v487 = vadd.f32 0.0, %v486
      %v488 = vpop.f32.mrf.mxu0
      %489 = vmatprep.mubr.f32.mxu0 0.0
      %v490 = vand.u32 %v276, 4294901760
      %v491 = vsub.f32 %v276, %v490
      %v492 = vand.u32 %v491, 4294901760
      %v493 = vsub.f32 %v491, %v492
      %v494 = vand.u32 %v493, 4294901760
      %495 = vmatmul.mubr.f32.gmra.mxu0 %v494
      %v496 = vpop.f32.mrf.mxu0
      %v497 = vadd.f32 0.0, %v496
      %v498 = vpop.f32.mrf.mxu0
      %499 = vmatprep.mubr.f32.mxu0 0.0
      %v500 = vand.u32 %v279, 4294901760
      %v501 = vsub.f32 %v279, %v500
      %v502 = vand.u32 %v501, 4294901760
      %v503 = vsub.f32 %v501, %v502
      %v504 = vand.u32 %v503, 4294901760
      %505 = vmatmul.mubr.f32.gmra.mxu0 %v504
      %v506 = vpop.f32.mrf.mxu0
      %v507 = vadd.f32 0.0, %v506
      %v508 = vpop.f32.mrf.mxu0
      %509 = vmatprep.mubr.f32.mxu0 0.0
      %v510 = vand.u32 %v282, 4294901760
      %v511 = vsub.f32 %v282, %v510
      %v512 = vand.u32 %v511, 4294901760
      %v513 = vsub.f32 %v511, %v512
      %v514 = vand.u32 %v513, 4294901760
      %515 = vmatmul.mubr.f32.gmra.mxu0 %v514
      %v516 = vpop.f32.mrf.mxu0
      %v517 = vadd.f32 0.0, %v516
      %v518 = vpop.f32.mrf.mxu0
      %519 = vmatprep.mubr.f32.mxu0 0.0
      %v520 = vand.u32 %v285, 4294901760
      %v521 = vsub.f32 %v285, %v520
      %v522 = vand.u32 %v521, 4294901760
      %v523 = vsub.f32 %v521, %v522
      %v524 = vand.u32 %v523, 4294901760
      %525 = vmatmul.mubr.f32.gmra.mxu0 %v524
      %v526 = vpop.f32.mrf.mxu0
      %v527 = vadd.f32 0.0, %v526
      %v528 = vpop.f32.mrf.mxu0
      %529 = vmatprep.mubr.f32.mxu0 0.0
      %v530 = vand.u32 %v288, 4294901760
      %v531 = vsub.f32 %v288, %v530
      %v532 = vand.u32 %v531, 4294901760
      %v533 = vsub.f32 %v531, %v532
      %v534 = vand.u32 %v533, 4294901760
      %535 = vmatmul.mubr.f32.gmra.mxu0 %v534
      %v536 = vpop.f32.mrf.mxu0
      %v537 = vadd.f32 0.0, %v536
      %v538 = vpop.f32.mrf.mxu0
      %539 = vmatprep.mubr.f32.mxu0 0.0
      %v540 = vand.u32 %v291, 4294901760
      %v541 = vsub.f32 %v291, %v540
      %v542 = vand.u32 %v541, 4294901760
      %v543 = vsub.f32 %v541, %v542
      %v544 = vand.u32 %v543, 4294901760
      %545 = vmatmul.mubr.f32.gmra.mxu0 %v544
      %v546 = vpop.f32.mrf.mxu0
      %v547 = vadd.f32 0.0, %v546
      %v548 = vpop.f32.mrf.mxu0
      %549 = vmatprep.mubr.f32.mxu0 0.0
      %v550 = vand.u32 %v294, 4294901760
      %v551 = vsub.f32 %v294, %v550
      %v552 = vand.u32 %v551, 4294901760
      %v553 = vsub.f32 %v551, %v552
      %v554 = vand.u32 %v553, 4294901760
      %555 = vmatmul.mubr.f32.gmra.mxu0 %v554
      %v556 = vpop.f32.mrf.mxu0
      %v557 = vadd.f32 0.0, %v556
      %v558 = vpop.f32.mrf.mxu0
      %559 = vmatprep.mubr.f32.mxu0 0.0
      %v560 = vand.u32 %v297, 4294901760
      %v561 = vsub.f32 %v297, %v560
      %v562 = vand.u32 %v561, 4294901760
      %v563 = vsub.f32 %v561, %v562
      %v564 = vand.u32 %v563, 4294901760
      %565 = vmatmul.mubr.f32.gmra.mxu0 %v564
      %v566 = vpop.f32.mrf.mxu0
      %v567 = vadd.f32 0.0, %v566
      %v568 = vpop.f32.mrf.mxu0
      %569 = vmatprep.mubr.f32.mxu0 0.0
      %v570 = vand.u32 %v300, 4294901760
      %v571 = vsub.f32 %v300, %v570
      %v572 = vand.u32 %v571, 4294901760
      %v573 = vsub.f32 %v571, %v572
      %v574 = vand.u32 %v573, 4294901760
      %575 = vmatmul.mubr.f32.gmra.mxu0 %v574
      %v576 = vpop.f32.mrf.mxu0
      %v577 = vadd.f32 0.0, %v576
      %v578 = vpop.f32.mrf.mxu0
      %579 = vmatprep.mubr.f32.mxu0 0.0
      %v580 = vand.u32 %v303, 4294901760
      %v581 = vsub.f32 %v303, %v580
      %v582 = vand.u32 %v581, 4294901760
      %v583 = vsub.f32 %v581, %v582
      %v584 = vand.u32 %v583, 4294901760
      %585 = vmatmul.mubr.f32.gmra.mxu0 %v584
      %v586 = vpop.f32.mrf.mxu0
      %v587 = vadd.f32 0.0, %v586
      %v588 = vpop.f32.mrf.mxu0
      %589 = vmatprep.mubr.f32.mxu0 0.0
      %v590 = vand.u32 %v306, 4294901760
      %v591 = vsub.f32 %v306, %v590
      %v592 = vand.u32 %v591, 4294901760
      %v593 = vsub.f32 %v591, %v592
      %v594 = vand.u32 %v593, 4294901760
      %595 = vmatmul.mubr.f32.gmra.mxu0 %v594
      %v596 = vpop.f32.mrf.mxu0
      %v597 = vadd.f32 0.0, %v596
      %v598 = vpop.f32.mrf.mxu0
      %599 = vmatprep.mubr.f32.mxu0 0.0
      %v600 = vand.u32 %v309, 4294901760
      %v601 = vsub.f32 %v309, %v600
      %v602 = vand.u32 %v601, 4294901760
      %v603 = vsub.f32 %v601, %v602
      %v604 = vand.u32 %v603, 4294901760
      %605 = vmatmul.mubr.f32.gmra.mxu0 %v604
      %v606 = vpop.f32.mrf.mxu0
      %v607 = vadd.f32 0.0, %v606
      %v608 = vpop.f32.mrf.mxu0
      %609 = vmatprep.mubr.f32.mxu0 0.0
      %v610 = vand.u32 %v312, 4294901760
      %v611 = vsub.f32 %v312, %v610
      %v612 = vand.u32 %v611, 4294901760
      %v613 = vsub.f32 %v611, %v612
      %v614 = vand.u32 %v613, 4294901760
      %615 = vmatmul.mubr.f32.gmra.mxu0 %v614
      %v616 = vpop.f32.mrf.mxu0
      %v617 = vadd.f32 0.0, %v616
      %v618 = vpop.f32.mrf.mxu0
      %619 = vmatprep.mubr.f32.mxu0 0.0
      %v620 = vand.u32 %v315, 4294901760
      %v621 = vsub.f32 %v315, %v620
      %v622 = vand.u32 %v621, 4294901760
      %v623 = vsub.f32 %v621, %v622
      %v624 = vand.u32 %v623, 4294901760
      %625 = vmatmul.mubr.f32.gmra.mxu0 %v624
      %v626 = vpop.f32.mrf.mxu0
      %v627 = vadd.f32 0.0, %v626
      %v628 = vpop.f32.mrf.mxu0
      %629 = vmatprep.mubr.f32.mxu0 0.0
      %v630 = vand.u32 %v318, 4294901760
      %v631 = vsub.f32 %v318, %v630
      %v632 = vand.u32 %v631, 4294901760
      %v633 = vsub.f32 %v631, %v632
      %v634 = vand.u32 %v633, 4294901760
      %635 = vmatmul.mubr.f32.gmra.mxu0 %v634
      %v636 = vpop.f32.mrf.mxu0
      %v637 = vadd.f32 0.0, %v636
      %v638 = vpop.f32.mrf.mxu0
      %639 = vmatprep.mubr.f32.mxu0 0.0
      %v640 = vand.u32 %v321, 4294901760
      %v641 = vsub.f32 %v321, %v640
      %v642 = vand.u32 %v641, 4294901760
      %v643 = vsub.f32 %v641, %v642
      %v644 = vand.u32 %v643, 4294901760
      %645 = vmatmul.mubr.f32.gmra.mxu0 %v644
      %v646 = vpop.f32.mrf.mxu0
      %v647 = vadd.f32 0.0, %v646
      %v648 = vpop.f32.mrf.mxu0
      %649 = vmatprep.mubr.f32.mxu0 0.0
      %v650 = vand.u32 %v324, 4294901760
      %v651 = vsub.f32 %v324, %v650
      %v652 = vand.u32 %v651, 4294901760
      %v653 = vsub.f32 %v651, %v652
      %v654 = vand.u32 %v653, 4294901760
      %655 = vmatmul.mubr.f32.gmra.mxu0 %v654
      %v656 = vpop.f32.mrf.mxu0
      %v657 = vadd.f32 0.0, %v656
      %v658 = vpop.f32.mrf.mxu0
      %659 = vmatprep.mubr.f32.mxu0 0.0
      %v660 = vand.u32 %v327, 4294901760
      %v661 = vsub.f32 %v327, %v660
      %v662 = vand.u32 %v661, 4294901760
      %v663 = vsub.f32 %v661, %v662
      %v664 = vand.u32 %v663, 4294901760
      %665 = vmatmul.mubr.f32.gmra.mxu0 %v664
      %v666 = vpop.f32.mrf.mxu0
      %v667 = vadd.f32 0.0, %v666
      %v668 = vpop.f32.mrf.mxu0
      %669 = vmatprep.mubr.f32.mxu0 0.0
      %v670 = vand.u32 %v330, 4294901760
      %v671 = vsub.f32 %v330, %v670
      %v672 = vand.u32 %v671, 4294901760
      %v673 = vsub.f32 %v671, %v672
      %v674 = vand.u32 %v673, 4294901760
      %675 = vmatmul.mubr.f32.gmra.mxu0 %v674
      %v676 = vpop.f32.mrf.mxu0
      %v677 = vadd.f32 0.0, %v676
      %v678 = vpop.f32.mrf.mxu0
      %679 = vmatprep.mubr.f32.mxu0 0.0
      %v680 = vand.u32 %v333, 4294901760
      %v681 = vsub.f32 %v333, %v680
      %v682 = vand.u32 %v681, 4294901760
      %v683 = vsub.f32 %v681, %v682
      %v684 = vand.u32 %v683, 4294901760
      %685 = vmatmul.mubr.f32.gmra.mxu0 %v684
      %v686 = vpop.f32.mrf.mxu0
      %v687 = vadd.f32 0.0, %v686
      %v688 = vpop.f32.mrf.mxu0
      %689 = vmatprep.mubr.f32.mxu0 0.0
      %v690 = vand.u32 %v336, 4294901760
      %v691 = vsub.f32 %v336, %v690
      %v692 = vand.u32 %v691, 4294901760
      %v693 = vsub.f32 %v691, %v692
      %v694 = vand.u32 %v693, 4294901760
      %695 = vmatmul.mubr.f32.gmra.mxu0 %v694
      %v696 = vpop.f32.mrf.mxu0
      %v697 = vadd.f32 0.0, %v696
      %v698 = vpop.f32.mrf.mxu0
      %699 = vmatprep.mubr.f32.mxu0 0.0
      %v700 = vand.u32 %v339, 4294901760
      %v701 = vsub.f32 %v339, %v700
      %v702 = vand.u32 %v701, 4294901760
      %v703 = vsub.f32 %v701, %v702
      %v704 = vand.u32 %v703, 4294901760
      %705 = vmatmul.mubr.f32.gmra.mxu0 %v704
      %v706 = vpop.f32.mrf.mxu0
      %v707 = vadd.f32 0.0, %v706
      %v708 = vpop.f32.mrf.mxu0
      %709 = vmatprep.mubr.f32.mxu0 0.0
      %v710 = vand.u32 %v342, 4294901760
      %v711 = vsub.f32 %v342, %v710
      %v712 = vand.u32 %v711, 4294901760
      %v713 = vsub.f32 %v711, %v712
      %v714 = vand.u32 %v713, 4294901760
      %715 = vmatmul.mubr.f32.gmra.mxu0 %v714
      %v716 = vpop.f32.mrf.mxu0
      %v717 = vadd.f32 0.0, %v716
      %v718 = vpop.f32.mrf.mxu0
      %719 = vmatprep.mubr.f32.mxu0 0.0
      %v720 = vand.u32 %v345, 4294901760
      %v721 = vsub.f32 %v345, %v720
      %v722 = vand.u32 %v721, 4294901760
      %v723 = vsub.f32 %v721, %v722
      %v724 = vand.u32 %v723, 4294901760
      %725 = vmatmul.mubr.f32.gmra.mxu0 %v724
      %v726 = vpop.f32.mrf.mxu0
      %v727 = vadd.f32 0.0, %v726
      %v728 = vpop.f32.mrf.mxu0
      %729 = vmatprep.mubr.f32.mxu0 0.0
      %v730 = vand.u32 %v348, 4294901760
      %v731 = vsub.f32 %v348, %v730
      %v732 = vand.u32 %v731, 4294901760
      %v733 = vsub.f32 %v731, %v732
      %v734 = vand.u32 %v733, 4294901760
      %735 = vmatmul.mubr.f32.gmra.mxu0 %v734
      %v736 = vpop.f32.mrf.mxu0
      %v737 = vadd.f32 0.0, %v736
      %v738 = vpop.f32.mrf.mxu0
      %739 = vmatprep.mubr.f32.mxu0 0.0
      %v740 = vand.u32 %v351, 4294901760
      %v741 = vsub.f32 %v351, %v740
      %v742 = vand.u32 %v741, 4294901760
      %v743 = vsub.f32 %v741, %v742
      %v744 = vand.u32 %v743, 4294901760
      %745 = vmatmul.mubr.f32.gmra.mxu0 %v744
      %v746 = vpop.f32.mrf.mxu0
      %v747 = vadd.f32 0.0, %v746
      %v748 = vpop.f32.mrf.mxu0
      %749 = vmatprep.mubr.f32.mxu0 0.0
      %v750 = vand.u32 %v354, 4294901760
      %v751 = vsub.f32 %v354, %v750
      %v752 = vand.u32 %v751, 4294901760
      %v753 = vsub.f32 %v751, %v752
      %v754 = vand.u32 %v753, 4294901760
      %755 = vmatmul.mubr.f32.gmra.mxu0 %v754
      %v756 = vpop.f32.mrf.mxu0
      %v757 = vadd.f32 0.0, %v756
      %v758 = vpop.f32.mrf.mxu0
      %759 = vmatprep.mubr.f32.mxu0 0.0
      %v760 = vand.u32 %v357, 4294901760
      %v761 = vsub.f32 %v357, %v760
      %v762 = vand.u32 %v761, 4294901760
      %v763 = vsub.f32 %v761, %v762
      %v764 = vand.u32 %v763, 4294901760
      %765 = vmatmul.mubr.f32.gmra.mxu0 %v764
      %v766 = vpop.f32.mrf.mxu0
      %v767 = vadd.f32 0.0, %v766
      %v768 = vpop.f32.mrf.mxu0
      %769 = vmatprep.mubr.f32.mxu0 0.0
      %v770 = vand.u32 %v360, 4294901760
      %v771 = vsub.f32 %v360, %v770
      %v772 = vand.u32 %v771, 4294901760
      %v773 = vsub.f32 %v771, %v772
      %v774 = vand.u32 %v773, 4294901760
      %775 = vmatmul.mubr.f32.gmra.mxu0 %v774
      %v776 = vpop.f32.mrf.mxu0
      %v777 = vadd.f32 0.0, %v776
      %v778 = vpop.f32.mrf.mxu0
      %779 = vmatprep.mubr.f32.mxu0 0.0
      %v780 = vand.u32 %v363, 4294901760
      %v781 = vsub.f32 %v363, %v780
      %v782 = vand.u32 %v781, 4294901760
      %v783 = vsub.f32 %v781, %v782
      %v784 = vand.u32 %v783, 4294901760
      %785 = vmatmul.mubr.f32.gmra.mxu0 %v784
      %v786 = vpop.f32.mrf.mxu0
      %v787 = vadd.f32 0.0, %v786
      %v788 = vpop.f32.mrf.mxu0
      %789 = vmatprep.mubr.f32.mxu0 0.0
      %v790 = vand.u32 %v366, 4294901760
      %v791 = vsub.f32 %v366, %v790
      %v792 = vand.u32 %v791, 4294901760
      %v793 = vsub.f32 %v791, %v792
      %v794 = vand.u32 %v793, 4294901760
      %795 = vmatmul.mubr.f32.gmra.mxu0 %v794
      %v796 = vpop.f32.mrf.mxu0
      %v797 = vadd.f32 0.0, %v796
      %v798 = vpop.f32.mrf.mxu0
      %799 = vmatprep.mubr.f32.mxu0 0.0
      %v800 = vand.u32 %v369, 4294901760
      %v801 = vsub.f32 %v369, %v800
      %v802 = vand.u32 %v801, 4294901760
      %v803 = vsub.f32 %v801, %v802
      %v804 = vand.u32 %v803, 4294901760
      %805 = vmatmul.mubr.f32.gmra.mxu0 %v804
      %v806 = vpop.f32.mrf.mxu0
      %v807 = vadd.f32 0.0, %v806
      %v808 = vpop.f32.mrf.mxu0
      %809 = vmatprep.mubr.f32.mxu0 0.0
      %v810 = vand.u32 %v372, 4294901760
      %v811 = vsub.f32 %v372, %v810
      %v812 = vand.u32 %v811, 4294901760
      %v813 = vsub.f32 %v811, %v812
      %v814 = vand.u32 %v813, 4294901760
      %815 = vmatmul.mubr.f32.gmra.mxu0 %v814
      %v816 = vpop.f32.mrf.mxu0
      %v817 = vadd.f32 0.0, %v816
      %v818 = vpop.f32.mrf.mxu0
      %819 = vmatprep.mubr.f32.mxu0 0.0
      %v820 = vand.u32 %v375, 4294901760
      %v821 = vsub.f32 %v375, %v820
      %v822 = vand.u32 %v821, 4294901760
      %v823 = vsub.f32 %v821, %v822
      %v824 = vand.u32 %v823, 4294901760
      %825 = vmatmul.mubr.f32.gmra.mxu0 %v824
      %v826 = vpop.f32.mrf.mxu0
      %v827 = vadd.f32 0.0, %v826
      %v828 = vpop.f32.mrf.mxu0
      %829 = vmatprep.mubr.f32.mxu0 0.0
      %v830 = vand.u32 %v378, 4294901760
      %v831 = vsub.f32 %v378, %v830
      %v832 = vand.u32 %v831, 4294901760
      %v833 = vsub.f32 %v831, %v832
      %v834 = vand.u32 %v833, 4294901760
      %835 = vmatmul.mubr.f32.gmra.mxu0 %v834
      %v836 = vpop.f32.mrf.mxu0
      %v837 = vadd.f32 0.0, %v836
      %v838 = vpop.f32.mrf.mxu0
      %839 = vmatprep.mubr.f32.mxu0 0.0
      %v840 = vand.u32 %v381, 4294901760
      %v841 = vsub.f32 %v381, %v840
      %v842 = vand.u32 %v841, 4294901760
      %v843 = vsub.f32 %v841, %v842
      %v844 = vand.u32 %v843, 4294901760
      %845 = vmatmul.mubr.f32.gmra.mxu0 %v844
      %v846 = vpop.f32.mrf.mxu0
      %v847 = vadd.f32 0.0, %v846
      %v848 = vpop.f32.mrf.mxu0
      %849 = vdwg.mxu0
      %850 = vmatprep.subr.mxu0 0.0
      %851 = vmatpush1.msra.mxu0 0.0
      %852 = vmatprep.subr.mxu0 0.0
      %853 = vmatpush1.msra.mxu0 0.0
      %854 = vmatprep.subr.mxu0 0.0
      %855 = vmatpush1.msra.mxu0 0.0
      %856 = vmatprep.subr.mxu0 0.0
      %857 = vmatpush1.msra.mxu0 0.0
      %858 = vmatprep.subr.mxu0 0.0
      %859 = vmatpush1.msra.mxu0 0.0
      %860 = vmatprep.subr.mxu0 0.0
      %861 = vmatpush1.msra.mxu0 0.0
      %862 = vmatprep.subr.mxu0 0.0
      %863 = vmatpush1.msra.mxu0 0.0
      %864 = vmatprep.subr.mxu0 0.0
      %865 = vmatpush1.msra.mxu0 0.0
      %866 = vmatprep.subr.mxu0 0.0
      %867 = vmatpush1.msra.mxu0 0.0
      %868 = vmatprep.subr.mxu0 0.0
      %869 = vmatpush1.msra.mxu0 0.0
      %870 = vmatprep.subr.mxu0 0.0
      %871 = vmatpush1.msra.mxu0 0.0
      %872 = vmatprep.subr.mxu0 0.0
      %873 = vmatpush1.msra.mxu0 0.0
      %874 = vmatprep.subr.mxu0 0.0
      %875 = vmatpush1.msra.mxu0 0.0
      %876 = vmatprep.subr.mxu0 0.0
      %877 = vmatpush1.msra.mxu0 0.0
      %878 = vmatprep.subr.mxu0 0.0
      %v879 = vand.u32 %v235, 4294901760
      %v880 = vsub.f32 %v235, %v879
      %v881 = vand.u32 %v880, 4294901760
      %v882 = vsub.f32 %v880, %v881
      %v883 = vand.u32 %v882, 4294901760
      %884 = vmatpush1.msra.mxu0 %v883
      %885 = vmatprep.subr.mxu0 0.0
      %v886 = vand.u32 %v234, 4294901760
      %v887 = vsub.f32 %v234, %v886
      %v888 = vand.u32 %v887, 4294901760
      %v889 = vsub.f32 %v887, %v888
      %v890 = vand.u32 %v889, 4294901760
      %891 = vmatpush1.msra.mxu0 %v890
      %892 = vmatprep.subr.mxu0 0.0
      %893 = vmatpush2.msra.mxu0 0.0
      %894 = vmatprep.subr.mxu0 0.0
      %895 = vmatpush2.msra.mxu0 0.0
      %896 = vmatprep.subr.mxu0 0.0
      %897 = vmatpush2.msra.mxu0 0.0
      %898 = vmatprep.subr.mxu0 0.0
      %899 = vmatpush2.msra.mxu0 0.0
      %900 = vmatprep.subr.mxu0 0.0
      %901 = vmatpush2.msra.mxu0 0.0
      %902 = vmatprep.subr.mxu0 0.0
      %903 = vmatpush2.msra.mxu0 0.0
      %904 = vmatprep.subr.mxu0 0.0
      %905 = vmatpush2.msra.mxu0 0.0
      %906 = vmatprep.subr.mxu0 0.0
      %907 = vmatpush2.msra.mxu0 0.0
      %908 = vmatprep.subr.mxu0 0.0
      %909 = vmatpush2.msra.mxu0 0.0
      %910 = vmatprep.subr.mxu0 0.0
      %911 = vmatpush2.msra.mxu0 0.0
      %912 = vmatprep.subr.mxu0 0.0
      %913 = vmatpush2.msra.mxu0 0.0
      %914 = vmatprep.subr.mxu0 0.0
      %915 = vmatpush2.msra.mxu0 0.0
      %916 = vmatprep.subr.mxu0 0.0
      %917 = vmatpush2.msra.mxu0 0.0
      %918 = vmatprep.subr.mxu0 0.0
      %919 = vmatpush2.msra.mxu0 0.0
      %920 = vmatprep.subr.mxu0 0.0
      %921 = vmatpush2.msra.mxu0 0.0
      %922 = vmatprep.subr.mxu0 0.0
      %923 = vmatpush2.msra.mxu0 0.0
      %924 = vmatprep.mubr.f32.mxu0 0.0
      %v925 = vand.u32 %v264, 4294901760
      %926 = vmatmul.mubr.f32.gmra.mxu0 %v925
      %v927 = vpop.f32.mrf.mxu0
      %v928 = vadd.f32 %v457, %v927
      %v929 = vpop.f32.mrf.mxu0
      %930 = vmatprep.mubr.f32.mxu0 0.0
      %v931 = vand.u32 %v267, 4294901760
      %932 = vmatmul.mubr.f32.gmra.mxu0 %v931
      %v933 = vpop.f32.mrf.mxu0
      %v934 = vadd.f32 %v467, %v933
      %v935 = vpop.f32.mrf.mxu0
      %936 = vmatprep.mubr.f32.mxu0 0.0
      %v937 = vand.u32 %v270, 4294901760
      %938 = vmatmul.mubr.f32.gmra.mxu0 %v937
      %v939 = vpop.f32.mrf.mxu0
      %v940 = vadd.f32 %v477, %v939
      %v941 = vpop.f32.mrf.mxu0
      %942 = vmatprep.mubr.f32.mxu0 0.0
      %v943 = vand.u32 %v273, 4294901760
      %944 = vmatmul.mubr.f32.gmra.mxu0 %v943
      %v945 = vpop.f32.mrf.mxu0
      %v946 = vadd.f32 %v487, %v945
      %v947 = vpop.f32.mrf.mxu0
      %948 = vmatprep.mubr.f32.mxu0 0.0
      %v949 = vand.u32 %v276, 4294901760
      %950 = vmatmul.mubr.f32.gmra.mxu0 %v949
      %v951 = vpop.f32.mrf.mxu0
      %v952 = vadd.f32 %v497, %v951
      %v953 = vpop.f32.mrf.mxu0
      %954 = vmatprep.mubr.f32.mxu0 0.0
      %v955 = vand.u32 %v279, 4294901760
      %956 = vmatmul.mubr.f32.gmra.mxu0 %v955
      %v957 = vpop.f32.mrf.mxu0
      %v958 = vadd.f32 %v507, %v957
      %v959 = vpop.f32.mrf.mxu0
      %960 = vmatprep.mubr.f32.mxu0 0.0
      %v961 = vand.u32 %v282, 4294901760
      %962 = vmatmul.mubr.f32.gmra.mxu0 %v961
      %v963 = vpop.f32.mrf.mxu0
      %v964 = vadd.f32 %v517, %v963
      %v965 = vpop.f32.mrf.mxu0
      %966 = vmatprep.mubr.f32.mxu0 0.0
      %v967 = vand.u32 %v285, 4294901760
      %968 = vmatmul.mubr.f32.gmra.mxu0 %v967
      %v969 = vpop.f32.mrf.mxu0
      %v970 = vadd.f32 %v527, %v969
      %v971 = vpop.f32.mrf.mxu0
      %972 = vmatprep.mubr.f32.mxu0 0.0
      %v973 = vand.u32 %v288, 4294901760
      %974 = vmatmul.mubr.f32.gmra.mxu0 %v973
      %v975 = vpop.f32.mrf.mxu0
      %v976 = vadd.f32 %v537, %v975
      %v977 = vpop.f32.mrf.mxu0
      %978 = vmatprep.mubr.f32.mxu0 0.0
      %v979 = vand.u32 %v291, 4294901760
      %980 = vmatmul.mubr.f32.gmra.mxu0 %v979
      %v981 = vpop.f32.mrf.mxu0
      %v982 = vadd.f32 %v547, %v981
      %v983 = vpop.f32.mrf.mxu0
      %984 = vmatprep.mubr.f32.mxu0 0.0
      %v985 = vand.u32 %v294, 4294901760
      %986 = vmatmul.mubr.f32.gmra.mxu0 %v985
      %v987 = vpop.f32.mrf.mxu0
      %v988 = vadd.f32 %v557, %v987
      %v989 = vpop.f32.mrf.mxu0
      %990 = vmatprep.mubr.f32.mxu0 0.0
      %v991 = vand.u32 %v297, 4294901760
      %992 = vmatmul.mubr.f32.gmra.mxu0 %v991
      %v993 = vpop.f32.mrf.mxu0
      %v994 = vadd.f32 %v567, %v993
      %v995 = vpop.f32.mrf.mxu0
      %996 = vmatprep.mubr.f32.mxu0 0.0
      %v997 = vand.u32 %v300, 4294901760
      %998 = vmatmul.mubr.f32.gmra.mxu0 %v997
      %v999 = vpop.f32.mrf.mxu0
      %v1000 = vadd.f32 %v577, %v999
      %v1001 = vpop.f32.mrf.mxu0
      %1002 = vmatprep.mubr.f32.mxu0 0.0
      %v1003 = vand.u32 %v303, 4294901760
      %1004 = vmatmul.mubr.f32.gmra.mxu0 %v1003
      %v1005 = vpop.f32.mrf.mxu0
      %v1006 = vadd.f32 %v587, %v1005
      %v1007 = vpop.f32.mrf.mxu0
      %1008 = vmatprep.mubr.f32.mxu0 0.0
      %v1009 = vand.u32 %v306, 4294901760
      %1010 = vmatmul.mubr.f32.gmra.mxu0 %v1009
      %v1011 = vpop.f32.mrf.mxu0
      %v1012 = vadd.f32 %v597, %v1011
      %v1013 = vpop.f32.mrf.mxu0
      %1014 = vmatprep.mubr.f32.mxu0 0.0
      %v1015 = vand.u32 %v309, 4294901760
      %1016 = vmatmul.mubr.f32.gmra.mxu0 %v1015
      %v1017 = vpop.f32.mrf.mxu0
      %v1018 = vadd.f32 %v607, %v1017
      %v1019 = vpop.f32.mrf.mxu0
      %1020 = vmatprep.mubr.f32.mxu0 0.0
      %v1021 = vand.u32 %v312, 4294901760
      %1022 = vmatmul.mubr.f32.gmra.mxu0 %v1021
      %v1023 = vpop.f32.mrf.mxu0
      %v1024 = vadd.f32 %v617, %v1023
      %v1025 = vpop.f32.mrf.mxu0
      %1026 = vmatprep.mubr.f32.mxu0 0.0
      %v1027 = vand.u32 %v315, 4294901760
      %1028 = vmatmul.mubr.f32.gmra.mxu0 %v1027
      %v1029 = vpop.f32.mrf.mxu0
      %v1030 = vadd.f32 %v627, %v1029
      %v1031 = vpop.f32.mrf.mxu0
      %1032 = vmatprep.mubr.f32.mxu0 0.0
      %v1033 = vand.u32 %v318, 4294901760
      %1034 = vmatmul.mubr.f32.gmra.mxu0 %v1033
      %v1035 = vpop.f32.mrf.mxu0
      %v1036 = vadd.f32 %v637, %v1035
      %v1037 = vpop.f32.mrf.mxu0
      %1038 = vmatprep.mubr.f32.mxu0 0.0
      %v1039 = vand.u32 %v321, 4294901760
      %1040 = vmatmul.mubr.f32.gmra.mxu0 %v1039
      %v1041 = vpop.f32.mrf.mxu0
      %v1042 = vadd.f32 %v647, %v1041
      %v1043 = vpop.f32.mrf.mxu0
      %1044 = vmatprep.mubr.f32.mxu0 0.0
      %v1045 = vand.u32 %v324, 4294901760
      %1046 = vmatmul.mubr.f32.gmra.mxu0 %v1045
      %v1047 = vpop.f32.mrf.mxu0
      %v1048 = vadd.f32 %v657, %v1047
      %v1049 = vpop.f32.mrf.mxu0
      %1050 = vmatprep.mubr.f32.mxu0 0.0
      %v1051 = vand.u32 %v327, 4294901760
      %1052 = vmatmul.mubr.f32.gmra.mxu0 %v1051
      %v1053 = vpop.f32.mrf.mxu0
      %v1054 = vadd.f32 %v667, %v1053
      %v1055 = vpop.f32.mrf.mxu0
      %1056 = vmatprep.mubr.f32.mxu0 0.0
      %v1057 = vand.u32 %v330, 4294901760
      %1058 = vmatmul.mubr.f32.gmra.mxu0 %v1057
      %v1059 = vpop.f32.mrf.mxu0
      %v1060 = vadd.f32 %v677, %v1059
      %v1061 = vpop.f32.mrf.mxu0
      %1062 = vmatprep.mubr.f32.mxu0 0.0
      %v1063 = vand.u32 %v333, 4294901760
      %1064 = vmatmul.mubr.f32.gmra.mxu0 %v1063
      %v1065 = vpop.f32.mrf.mxu0
      %v1066 = vadd.f32 %v687, %v1065
      %v1067 = vpop.f32.mrf.mxu0
      %1068 = vmatprep.mubr.f32.mxu0 0.0
      %v1069 = vand.u32 %v336, 4294901760
      %1070 = vmatmul.mubr.f32.gmra.mxu0 %v1069
      %v1071 = vpop.f32.mrf.mxu0
      %v1072 = vadd.f32 %v697, %v1071
      %v1073 = vpop.f32.mrf.mxu0
      %1074 = vmatprep.mubr.f32.mxu0 0.0
      %v1075 = vand.u32 %v339, 4294901760
      %1076 = vmatmul.mubr.f32.gmra.mxu0 %v1075
      %v1077 = vpop.f32.mrf.mxu0
      %v1078 = vadd.f32 %v707, %v1077
      %v1079 = vpop.f32.mrf.mxu0
      %1080 = vmatprep.mubr.f32.mxu0 0.0
      %v1081 = vand.u32 %v342, 4294901760
      %1082 = vmatmul.mubr.f32.gmra.mxu0 %v1081
      %v1083 = vpop.f32.mrf.mxu0
      %v1084 = vadd.f32 %v717, %v1083
      %v1085 = vpop.f32.mrf.mxu0
      %1086 = vmatprep.mubr.f32.mxu0 0.0
      %v1087 = vand.u32 %v345, 4294901760
      %1088 = vmatmul.mubr.f32.gmra.mxu0 %v1087
      %v1089 = vpop.f32.mrf.mxu0
      %v1090 = vadd.f32 %v727, %v1089
      %v1091 = vpop.f32.mrf.mxu0
      %1092 = vmatprep.mubr.f32.mxu0 0.0
      %v1093 = vand.u32 %v348, 4294901760
      %1094 = vmatmul.mubr.f32.gmra.mxu0 %v1093
      %v1095 = vpop.f32.mrf.mxu0
      %v1096 = vadd.f32 %v737, %v1095
      %v1097 = vpop.f32.mrf.mxu0
      %1098 = vmatprep.mubr.f32.mxu0 0.0
      %v1099 = vand.u32 %v351, 4294901760
      %1100 = vmatmul.mubr.f32.gmra.mxu0 %v1099
      %v1101 = vpop.f32.mrf.mxu0
      %v1102 = vadd.f32 %v747, %v1101
      %v1103 = vpop.f32.mrf.mxu0
      %1104 = vmatprep.mubr.f32.mxu0 0.0
      %v1105 = vand.u32 %v354, 4294901760
      %1106 = vmatmul.mubr.f32.gmra.mxu0 %v1105
      %v1107 = vpop.f32.mrf.mxu0
      %v1108 = vadd.f32 %v757, %v1107
      %v1109 = vpop.f32.mrf.mxu0
      %1110 = vmatprep.mubr.f32.mxu0 0.0
      %v1111 = vand.u32 %v357, 4294901760
      %1112 = vmatmul.mubr.f32.gmra.mxu0 %v1111
      %v1113 = vpop.f32.mrf.mxu0
      %v1114 = vadd.f32 %v767, %v1113
      %v1115 = vpop.f32.mrf.mxu0
      %1116 = vmatprep.mubr.f32.mxu0 0.0
      %v1117 = vand.u32 %v360, 4294901760
      %1118 = vmatmul.mubr.f32.gmra.mxu0 %v1117
      %v1119 = vpop.f32.mrf.mxu0
      %v1120 = vadd.f32 %v777, %v1119
      %v1121 = vpop.f32.mrf.mxu0
      %1122 = vmatprep.mubr.f32.mxu0 0.0
      %v1123 = vand.u32 %v363, 4294901760
      %1124 = vmatmul.mubr.f32.gmra.mxu0 %v1123
      %v1125 = vpop.f32.mrf.mxu0
      %v1126 = vadd.f32 %v787, %v1125
      %v1127 = vpop.f32.mrf.mxu0
      %1128 = vmatprep.mubr.f32.mxu0 0.0
      %v1129 = vand.u32 %v366, 4294901760
      %1130 = vmatmul.mubr.f32.gmra.mxu0 %v1129
      %v1131 = vpop.f32.mrf.mxu0
      %v1132 = vadd.f32 %v797, %v1131
      %v1133 = vpop.f32.mrf.mxu0
      %1134 = vmatprep.mubr.f32.mxu0 0.0
      %v1135 = vand.u32 %v369, 4294901760
      %1136 = vmatmul.mubr.f32.gmra.mxu0 %v1135
      %v1137 = vpop.f32.mrf.mxu0
      %v1138 = vadd.f32 %v807, %v1137
      %v1139 = vpop.f32.mrf.mxu0
      %1140 = vmatprep.mubr.f32.mxu0 0.0
      %v1141 = vand.u32 %v372, 4294901760
      %1142 = vmatmul.mubr.f32.gmra.mxu0 %v1141
      %v1143 = vpop.f32.mrf.mxu0
      %v1144 = vadd.f32 %v817, %v1143
      %v1145 = vpop.f32.mrf.mxu0
      %1146 = vmatprep.mubr.f32.mxu0 0.0
      %v1147 = vand.u32 %v375, 4294901760
      %1148 = vmatmul.mubr.f32.gmra.mxu0 %v1147
      %v1149 = vpop.f32.mrf.mxu0
      %v1150 = vadd.f32 %v827, %v1149
      %v1151 = vpop.f32.mrf.mxu0
      %1152 = vmatprep.mubr.f32.mxu0 0.0
      %v1153 = vand.u32 %v378, 4294901760
      %1154 = vmatmul.mubr.f32.gmra.mxu0 %v1153
      %v1155 = vpop.f32.mrf.mxu0
      %v1156 = vadd.f32 %v837, %v1155
      %v1157 = vpop.f32.mrf.mxu0
      %1158 = vmatprep.mubr.f32.mxu0 0.0
      %v1159 = vand.u32 %v381, 4294901760
      %1160 = vmatmul.mubr.f32.gmra.mxu0 %v1159
      %v1161 = vpop.f32.mrf.mxu0
      %v1162 = vadd.f32 %v847, %v1161
      %v1163 = vpop.f32.mrf.mxu0
      %1164 = vdwg.mxu0
      %1165 = vmatprep.subr.mxu0 0.0
      %1166 = vmatpush1.msra.mxu0 0.0
      %1167 = vmatprep.subr.mxu0 0.0
      %1168 = vmatpush1.msra.mxu0 0.0
      %1169 = vmatprep.subr.mxu0 0.0
      %1170 = vmatpush1.msra.mxu0 0.0
      %1171 = vmatprep.subr.mxu0 0.0
      %1172 = vmatpush1.msra.mxu0 0.0
      %1173 = vmatprep.subr.mxu0 0.0
      %1174 = vmatpush1.msra.mxu0 0.0
      %1175 = vmatprep.subr.mxu0 0.0
      %1176 = vmatpush1.msra.mxu0 0.0
      %1177 = vmatprep.subr.mxu0 0.0
      %1178 = vmatpush1.msra.mxu0 0.0
      %1179 = vmatprep.subr.mxu0 0.0
      %1180 = vmatpush1.msra.mxu0 0.0
      %1181 = vmatprep.subr.mxu0 0.0
      %1182 = vmatpush1.msra.mxu0 0.0
      %1183 = vmatprep.subr.mxu0 0.0
      %1184 = vmatpush1.msra.mxu0 0.0
      %1185 = vmatprep.subr.mxu0 0.0
      %1186 = vmatpush1.msra.mxu0 0.0
      %1187 = vmatprep.subr.mxu0 0.0
      %1188 = vmatpush1.msra.mxu0 0.0
      %1189 = vmatprep.subr.mxu0 0.0
      %1190 = vmatpush1.msra.mxu0 0.0
      %1191 = vmatprep.subr.mxu0 0.0
      %1192 = vmatpush1.msra.mxu0 0.0
      %1193 = vmatprep.subr.mxu0 0.0
      %v1194 = vand.u32 %v235, 4294901760
      %v1195 = vsub.f32 %v235, %v1194
      %1196 = vmatpush1.msra.mxu0 %v1195
      %1197 = vmatprep.subr.mxu0 0.0
      %v1198 = vand.u32 %v234, 4294901760
      %v1199 = vsub.f32 %v234, %v1198
      %1200 = vmatpush1.msra.mxu0 %v1199
      %1201 = vmatprep.subr.mxu0 0.0
      %1202 = vmatpush2.msra.mxu0 0.0
      %1203 = vmatprep.subr.mxu0 0.0
      %1204 = vmatpush2.msra.mxu0 0.0
      %1205 = vmatprep.subr.mxu0 0.0
      %1206 = vmatpush2.msra.mxu0 0.0
      %1207 = vmatprep.subr.mxu0 0.0
      %1208 = vmatpush2.msra.mxu0 0.0
      %1209 = vmatprep.subr.mxu0 0.0
      %1210 = vmatpush2.msra.mxu0 0.0
      %1211 = vmatprep.subr.mxu0 0.0
      %1212 = vmatpush2.msra.mxu0 0.0
      %1213 = vmatprep.subr.mxu0 0.0
      %1214 = vmatpush2.msra.mxu0 0.0
      %1215 = vmatprep.subr.mxu0 0.0
      %1216 = vmatpush2.msra.mxu0 0.0
      %1217 = vmatprep.subr.mxu0 0.0
      %1218 = vmatpush2.msra.mxu0 0.0
      %1219 = vmatprep.subr.mxu0 0.0
      %1220 = vmatpush2.msra.mxu0 0.0
      %1221 = vmatprep.subr.mxu0 0.0
      %1222 = vmatpush2.msra.mxu0 0.0
      %1223 = vmatprep.subr.mxu0 0.0
      %1224 = vmatpush2.msra.mxu0 0.0
      %1225 = vmatprep.subr.mxu0 0.0
      %1226 = vmatpush2.msra.mxu0 0.0
      %1227 = vmatprep.subr.mxu0 0.0
      %1228 = vmatpush2.msra.mxu0 0.0
      %1229 = vmatprep.subr.mxu0 0.0
      %1230 = vmatpush2.msra.mxu0 0.0
      %1231 = vmatprep.subr.mxu0 0.0
      %1232 = vmatpush2.msra.mxu0 0.0
      %1233 = vmatprep.mubr.f32.mxu0 0.0
      %v1234 = vand.u32 %v264, 4294901760
      %v1235 = vsub.f32 %v264, %v1234
      %1236 = vmatmul.mubr.f32.gmra.mxu0 %v1235
      %v1237 = vpop.f32.mrf.mxu0
      %v1238 = vadd.f32 %v928, %v1237
      %v1239 = vpop.f32.mrf.mxu0
      %1240 = vmatprep.mubr.f32.mxu0 0.0
      %v1241 = vand.u32 %v267, 4294901760
      %v1242 = vsub.f32 %v267, %v1241
      %1243 = vmatmul.mubr.f32.gmra.mxu0 %v1242
      %v1244 = vpop.f32.mrf.mxu0
      %v1245 = vadd.f32 %v934, %v1244
      %v1246 = vpop.f32.mrf.mxu0
      %1247 = vmatprep.mubr.f32.mxu0 0.0
      %v1248 = vand.u32 %v270, 4294901760
      %v1249 = vsub.f32 %v270, %v1248
      %1250 = vmatmul.mubr.f32.gmra.mxu0 %v1249
      %v1251 = vpop.f32.mrf.mxu0
      %v1252 = vadd.f32 %v940, %v1251
      %v1253 = vpop.f32.mrf.mxu0
      %1254 = vmatprep.mubr.f32.mxu0 0.0
      %v1255 = vand.u32 %v273, 4294901760
      %v1256 = vsub.f32 %v273, %v1255
      %1257 = vmatmul.mubr.f32.gmra.mxu0 %v1256
      %v1258 = vpop.f32.mrf.mxu0
      %v1259 = vadd.f32 %v946, %v1258
      %v1260 = vpop.f32.mrf.mxu0
      %1261 = vmatprep.mubr.f32.mxu0 0.0
      %v1262 = vand.u32 %v276, 4294901760
      %v1263 = vsub.f32 %v276, %v1262
      %1264 = vmatmul.mubr.f32.gmra.mxu0 %v1263
      %v1265 = vpop.f32.mrf.mxu0
      %v1266 = vadd.f32 %v952, %v1265
      %v1267 = vpop.f32.mrf.mxu0
      %1268 = vmatprep.mubr.f32.mxu0 0.0
      %v1269 = vand.u32 %v279, 4294901760
      %v1270 = vsub.f32 %v279, %v1269
      %1271 = vmatmul.mubr.f32.gmra.mxu0 %v1270
      %v1272 = vpop.f32.mrf.mxu0
      %v1273 = vadd.f32 %v958, %v1272
      %v1274 = vpop.f32.mrf.mxu0
      %1275 = vmatprep.mubr.f32.mxu0 0.0
      %v1276 = vand.u32 %v282, 4294901760
      %v1277 = vsub.f32 %v282, %v1276
      %1278 = vmatmul.mubr.f32.gmra.mxu0 %v1277
      %v1279 = vpop.f32.mrf.mxu0
      %v1280 = vadd.f32 %v964, %v1279
      %v1281 = vpop.f32.mrf.mxu0
      %1282 = vmatprep.mubr.f32.mxu0 0.0
      %v1283 = vand.u32 %v285, 4294901760
      %v1284 = vsub.f32 %v285, %v1283
      %1285 = vmatmul.mubr.f32.gmra.mxu0 %v1284
      %v1286 = vpop.f32.mrf.mxu0
      %v1287 = vadd.f32 %v970, %v1286
      %v1288 = vpop.f32.mrf.mxu0
      %1289 = vmatprep.mubr.f32.mxu0 0.0
      %v1290 = vand.u32 %v288, 4294901760
      %v1291 = vsub.f32 %v288, %v1290
      %1292 = vmatmul.mubr.f32.gmra.mxu0 %v1291
      %v1293 = vpop.f32.mrf.mxu0
      %v1294 = vadd.f32 %v976, %v1293
      %v1295 = vpop.f32.mrf.mxu0
      %1296 = vmatprep.mubr.f32.mxu0 0.0
      %v1297 = vand.u32 %v291, 4294901760
      %v1298 = vsub.f32 %v291, %v1297
      %1299 = vmatmul.mubr.f32.gmra.mxu0 %v1298
      %v1300 = vpop.f32.mrf.mxu0
      %v1301 = vadd.f32 %v982, %v1300
      %v1302 = vpop.f32.mrf.mxu0
      %1303 = vmatprep.mubr.f32.mxu0 0.0
      %v1304 = vand.u32 %v294, 4294901760
      %v1305 = vsub.f32 %v294, %v1304
      %1306 = vmatmul.mubr.f32.gmra.mxu0 %v1305
      %v1307 = vpop.f32.mrf.mxu0
      %v1308 = vadd.f32 %v988, %v1307
      %v1309 = vpop.f32.mrf.mxu0
      %1310 = vmatprep.mubr.f32.mxu0 0.0
      %v1311 = vand.u32 %v297, 4294901760
      %v1312 = vsub.f32 %v297, %v1311
      %1313 = vmatmul.mubr.f32.gmra.mxu0 %v1312
      %v1314 = vpop.f32.mrf.mxu0
      %v1315 = vadd.f32 %v994, %v1314
      %v1316 = vpop.f32.mrf.mxu0
      %1317 = vmatprep.mubr.f32.mxu0 0.0
      %v1318 = vand.u32 %v300, 4294901760
      %v1319 = vsub.f32 %v300, %v1318
      %1320 = vmatmul.mubr.f32.gmra.mxu0 %v1319
      %v1321 = vpop.f32.mrf.mxu0
      %v1322 = vadd.f32 %v1000, %v1321
      %v1323 = vpop.f32.mrf.mxu0
      %1324 = vmatprep.mubr.f32.mxu0 0.0
      %v1325 = vand.u32 %v303, 4294901760
      %v1326 = vsub.f32 %v303, %v1325
      %1327 = vmatmul.mubr.f32.gmra.mxu0 %v1326
      %v1328 = vpop.f32.mrf.mxu0
      %v1329 = vadd.f32 %v1006, %v1328
      %v1330 = vpop.f32.mrf.mxu0
      %1331 = vmatprep.mubr.f32.mxu0 0.0
      %v1332 = vand.u32 %v306, 4294901760
      %v1333 = vsub.f32 %v306, %v1332
      %1334 = vmatmul.mubr.f32.gmra.mxu0 %v1333
      %v1335 = vpop.f32.mrf.mxu0
      %v1336 = vadd.f32 %v1012, %v1335
      %v1337 = vpop.f32.mrf.mxu0
      %1338 = vmatprep.mubr.f32.mxu0 0.0
      %v1339 = vand.u32 %v309, 4294901760
      %v1340 = vsub.f32 %v309, %v1339
      %1341 = vmatmul.mubr.f32.gmra.mxu0 %v1340
      %v1342 = vpop.f32.mrf.mxu0
      %v1343 = vadd.f32 %v1018, %v1342
      %v1344 = vpop.f32.mrf.mxu0
      %1345 = vmatprep.mubr.f32.mxu0 0.0
      %v1346 = vand.u32 %v312, 4294901760
      %v1347 = vsub.f32 %v312, %v1346
      %1348 = vmatmul.mubr.f32.gmra.mxu0 %v1347
      %v1349 = vpop.f32.mrf.mxu0
      %v1350 = vadd.f32 %v1024, %v1349
      %v1351 = vpop.f32.mrf.mxu0
      %1352 = vmatprep.mubr.f32.mxu0 0.0
      %v1353 = vand.u32 %v315, 4294901760
      %v1354 = vsub.f32 %v315, %v1353
      %1355 = vmatmul.mubr.f32.gmra.mxu0 %v1354
      %v1356 = vpop.f32.mrf.mxu0
      %v1357 = vadd.f32 %v1030, %v1356
      %v1358 = vpop.f32.mrf.mxu0
      %1359 = vmatprep.mubr.f32.mxu0 0.0
      %v1360 = vand.u32 %v318, 4294901760
      %v1361 = vsub.f32 %v318, %v1360
      %1362 = vmatmul.mubr.f32.gmra.mxu0 %v1361
      %v1363 = vpop.f32.mrf.mxu0
      %v1364 = vadd.f32 %v1036, %v1363
      %v1365 = vpop.f32.mrf.mxu0
      %1366 = vmatprep.mubr.f32.mxu0 0.0
      %v1367 = vand.u32 %v321, 4294901760
      %v1368 = vsub.f32 %v321, %v1367
      %1369 = vmatmul.mubr.f32.gmra.mxu0 %v1368
      %v1370 = vpop.f32.mrf.mxu0
      %v1371 = vadd.f32 %v1042, %v1370
      %v1372 = vpop.f32.mrf.mxu0
      %1373 = vmatprep.mubr.f32.mxu0 0.0
      %v1374 = vand.u32 %v324, 4294901760
      %v1375 = vsub.f32 %v324, %v1374
      %1376 = vmatmul.mubr.f32.gmra.mxu0 %v1375
      %v1377 = vpop.f32.mrf.mxu0
      %v1378 = vadd.f32 %v1048, %v1377
      %v1379 = vpop.f32.mrf.mxu0
      %1380 = vmatprep.mubr.f32.mxu0 0.0
      %v1381 = vand.u32 %v327, 4294901760
      %v1382 = vsub.f32 %v327, %v1381
      %1383 = vmatmul.mubr.f32.gmra.mxu0 %v1382
      %v1384 = vpop.f32.mrf.mxu0
      %v1385 = vadd.f32 %v1054, %v1384
      %v1386 = vpop.f32.mrf.mxu0
      %1387 = vmatprep.mubr.f32.mxu0 0.0
      %v1388 = vand.u32 %v330, 4294901760
      %v1389 = vsub.f32 %v330, %v1388
      %1390 = vmatmul.mubr.f32.gmra.mxu0 %v1389
      %v1391 = vpop.f32.mrf.mxu0
      %v1392 = vadd.f32 %v1060, %v1391
      %v1393 = vpop.f32.mrf.mxu0
      %1394 = vmatprep.mubr.f32.mxu0 0.0
      %v1395 = vand.u32 %v333, 4294901760
      %v1396 = vsub.f32 %v333, %v1395
      %1397 = vmatmul.mubr.f32.gmra.mxu0 %v1396
      %v1398 = vpop.f32.mrf.mxu0
      %v1399 = vadd.f32 %v1066, %v1398
      %v1400 = vpop.f32.mrf.mxu0
      %1401 = vmatprep.mubr.f32.mxu0 0.0
      %v1402 = vand.u32 %v336, 4294901760
      %v1403 = vsub.f32 %v336, %v1402
      %1404 = vmatmul.mubr.f32.gmra.mxu0 %v1403
      %v1405 = vpop.f32.mrf.mxu0
      %v1406 = vadd.f32 %v1072, %v1405
      %v1407 = vpop.f32.mrf.mxu0
      %1408 = vmatprep.mubr.f32.mxu0 0.0
      %v1409 = vand.u32 %v339, 4294901760
      %v1410 = vsub.f32 %v339, %v1409
      %1411 = vmatmul.mubr.f32.gmra.mxu0 %v1410
      %v1412 = vpop.f32.mrf.mxu0
      %v1413 = vadd.f32 %v1078, %v1412
      %v1414 = vpop.f32.mrf.mxu0
      %1415 = vmatprep.mubr.f32.mxu0 0.0
      %v1416 = vand.u32 %v342, 4294901760
      %v1417 = vsub.f32 %v342, %v1416
      %1418 = vmatmul.mubr.f32.gmra.mxu0 %v1417
      %v1419 = vpop.f32.mrf.mxu0
      %v1420 = vadd.f32 %v1084, %v1419
      %v1421 = vpop.f32.mrf.mxu0
      %1422 = vmatprep.mubr.f32.mxu0 0.0
      %v1423 = vand.u32 %v345, 4294901760
      %v1424 = vsub.f32 %v345, %v1423
      %1425 = vmatmul.mubr.f32.gmra.mxu0 %v1424
      %v1426 = vpop.f32.mrf.mxu0
      %v1427 = vadd.f32 %v1090, %v1426
      %v1428 = vpop.f32.mrf.mxu0
      %1429 = vmatprep.mubr.f32.mxu0 0.0
      %v1430 = vand.u32 %v348, 4294901760
      %v1431 = vsub.f32 %v348, %v1430
      %1432 = vmatmul.mubr.f32.gmra.mxu0 %v1431
      %v1433 = vpop.f32.mrf.mxu0
      %v1434 = vadd.f32 %v1096, %v1433
      %v1435 = vpop.f32.mrf.mxu0
      %1436 = vmatprep.mubr.f32.mxu0 0.0
      %v1437 = vand.u32 %v351, 4294901760
      %v1438 = vsub.f32 %v351, %v1437
      %1439 = vmatmul.mubr.f32.gmra.mxu0 %v1438
      %v1440 = vpop.f32.mrf.mxu0
      %v1441 = vadd.f32 %v1102, %v1440
      %v1442 = vpop.f32.mrf.mxu0
      %1443 = vmatprep.mubr.f32.mxu0 0.0
      %v1444 = vand.u32 %v354, 4294901760
      %v1445 = vsub.f32 %v354, %v1444
      %1446 = vmatmul.mubr.f32.gmra.mxu0 %v1445
      %v1447 = vpop.f32.mrf.mxu0
      %v1448 = vadd.f32 %v1108, %v1447
      %v1449 = vpop.f32.mrf.mxu0
      %1450 = vmatprep.mubr.f32.mxu0 0.0
      %v1451 = vand.u32 %v357, 4294901760
      %v1452 = vsub.f32 %v357, %v1451
      %1453 = vmatmul.mubr.f32.gmra.mxu0 %v1452
      %v1454 = vpop.f32.mrf.mxu0
      %v1455 = vadd.f32 %v1114, %v1454
      %v1456 = vpop.f32.mrf.mxu0
      %1457 = vmatprep.mubr.f32.mxu0 0.0
      %v1458 = vand.u32 %v360, 4294901760
      %v1459 = vsub.f32 %v360, %v1458
      %1460 = vmatmul.mubr.f32.gmra.mxu0 %v1459
      %v1461 = vpop.f32.mrf.mxu0
      %v1462 = vadd.f32 %v1120, %v1461
      %v1463 = vpop.f32.mrf.mxu0
      %1464 = vmatprep.mubr.f32.mxu0 0.0
      %v1465 = vand.u32 %v363, 4294901760
      %v1466 = vsub.f32 %v363, %v1465
      %1467 = vmatmul.mubr.f32.gmra.mxu0 %v1466
      %v1468 = vpop.f32.mrf.mxu0
      %v1469 = vadd.f32 %v1126, %v1468
      %v1470 = vpop.f32.mrf.mxu0
      %1471 = vmatprep.mubr.f32.mxu0 0.0
      %v1472 = vand.u32 %v366, 4294901760
      %v1473 = vsub.f32 %v366, %v1472
      %1474 = vmatmul.mubr.f32.gmra.mxu0 %v1473
      %v1475 = vpop.f32.mrf.mxu0
      %v1476 = vadd.f32 %v1132, %v1475
      %v1477 = vpop.f32.mrf.mxu0
      %1478 = vmatprep.mubr.f32.mxu0 0.0
      %v1479 = vand.u32 %v369, 4294901760
      %v1480 = vsub.f32 %v369, %v1479
      %1481 = vmatmul.mubr.f32.gmra.mxu0 %v1480
      %v1482 = vpop.f32.mrf.mxu0
      %v1483 = vadd.f32 %v1138, %v1482
      %v1484 = vpop.f32.mrf.mxu0
      %1485 = vmatprep.mubr.f32.mxu0 0.0
      %v1486 = vand.u32 %v372, 4294901760
      %v1487 = vsub.f32 %v372, %v1486
      %1488 = vmatmul.mubr.f32.gmra.mxu0 %v1487
      %v1489 = vpop.f32.mrf.mxu0
      %v1490 = vadd.f32 %v1144, %v1489
      %v1491 = vpop.f32.mrf.mxu0
      %1492 = vmatprep.mubr.f32.mxu0 0.0
      %v1493 = vand.u32 %v375, 4294901760
      %v1494 = vsub.f32 %v375, %v1493
      %1495 = vmatmul.mubr.f32.gmra.mxu0 %v1494
      %v1496 = vpop.f32.mrf.mxu0
      %v1497 = vadd.f32 %v1150, %v1496
      %v1498 = vpop.f32.mrf.mxu0
      %1499 = vmatprep.mubr.f32.mxu0 0.0
      %v1500 = vand.u32 %v378, 4294901760
      %v1501 = vsub.f32 %v378, %v1500
      %1502 = vmatmul.mubr.f32.gmra.mxu0 %v1501
      %v1503 = vpop.f32.mrf.mxu0
      %v1504 = vadd.f32 %v1156, %v1503
      %v1505 = vpop.f32.mrf.mxu0
      %1506 = vmatprep.mubr.f32.mxu0 0.0
      %v1507 = vand.u32 %v381, 4294901760
      %v1508 = vsub.f32 %v381, %v1507
      %1509 = vmatmul.mubr.f32.gmra.mxu0 %v1508
      %v1510 = vpop.f32.mrf.mxu0
      %v1511 = vadd.f32 %v1162, %v1510
      %v1512 = vpop.f32.mrf.mxu0
      %1513 = vdwg.mxu0
      %1514 = vmatprep.subr.mxu0 0.0
      %1515 = vmatpush1.msra.mxu0 0.0
      %1516 = vmatprep.subr.mxu0 0.0
      %1517 = vmatpush1.msra.mxu0 0.0
      %1518 = vmatprep.subr.mxu0 0.0
      %1519 = vmatpush1.msra.mxu0 0.0
      %1520 = vmatprep.subr.mxu0 0.0
      %1521 = vmatpush1.msra.mxu0 0.0
      %1522 = vmatprep.subr.mxu0 0.0
      %1523 = vmatpush1.msra.mxu0 0.0
      %1524 = vmatprep.subr.mxu0 0.0
      %1525 = vmatpush1.msra.mxu0 0.0
      %1526 = vmatprep.subr.mxu0 0.0
      %1527 = vmatpush1.msra.mxu0 0.0
      %1528 = vmatprep.subr.mxu0 0.0
      %1529 = vmatpush1.msra.mxu0 0.0
      %1530 = vmatprep.subr.mxu0 0.0
      %1531 = vmatpush1.msra.mxu0 0.0
      %1532 = vmatprep.subr.mxu0 0.0
      %1533 = vmatpush1.msra.mxu0 0.0
      %1534 = vmatprep.subr.mxu0 0.0
      %1535 = vmatpush1.msra.mxu0 0.0
      %1536 = vmatprep.subr.mxu0 0.0
      %1537 = vmatpush1.msra.mxu0 0.0
      %1538 = vmatprep.subr.mxu0 0.0
      %1539 = vmatpush1.msra.mxu0 0.0
      %1540 = vmatprep.subr.mxu0 0.0
      %1541 = vmatpush1.msra.mxu0 0.0
      %1542 = vmatprep.subr.mxu0 0.0
      %v1543 = vand.u32 %v235, 4294901760
      %1544 = vmatpush1.msra.mxu0 %v1543
      %1545 = vmatprep.subr.mxu0 0.0
      %v1546 = vand.u32 %v234, 4294901760
      %1547 = vmatpush1.msra.mxu0 %v1546
      %1548 = vmatprep.subr.mxu0 0.0
      %1549 = vmatpush2.msra.mxu0 0.0
      %1550 = vmatprep.subr.mxu0 0.0
      %1551 = vmatpush2.msra.mxu0 0.0
      %1552 = vmatprep.subr.mxu0 0.0
      %1553 = vmatpush2.msra.mxu0 0.0
      %1554 = vmatprep.subr.mxu0 0.0
      %1555 = vmatpush2.msra.mxu0 0.0
      %1556 = vmatprep.subr.mxu0 0.0
      %1557 = vmatpush2.msra.mxu0 0.0
      %1558 = vmatprep.subr.mxu0 0.0
      %1559 = vmatpush2.msra.mxu0 0.0
      %1560 = vmatprep.subr.mxu0 0.0
      %1561 = vmatpush2.msra.mxu0 0.0
      %1562 = vmatprep.subr.mxu0 0.0
      %1563 = vmatpush2.msra.mxu0 0.0
      %1564 = vmatprep.subr.mxu0 0.0
      %1565 = vmatpush2.msra.mxu0 0.0
      %1566 = vmatprep.subr.mxu0 0.0
      %1567 = vmatpush2.msra.mxu0 0.0
      %1568 = vmatprep.subr.mxu0 0.0
      %1569 = vmatpush2.msra.mxu0 0.0
      %1570 = vmatprep.subr.mxu0 0.0
      %1571 = vmatpush2.msra.mxu0 0.0
      %1572 = vmatprep.subr.mxu0 0.0
      %1573 = vmatpush2.msra.mxu0 0.0
      %1574 = vmatprep.subr.mxu0 0.0
      %1575 = vmatpush2.msra.mxu0 0.0
      %1576 = vmatprep.subr.mxu0 0.0
      %1577 = vmatpush2.msra.mxu0 0.0
      %1578 = vmatprep.subr.mxu0 0.0
      %1579 = vmatpush2.msra.mxu0 0.0
      %1580 = vmatprep.mubr.f32.mxu0 0.0
      %v1581 = vand.u32 %v264, 4294901760
      %v1582 = vsub.f32 %v264, %v1581
      %v1583 = vand.u32 %v1582, 4294901760
      %1584 = vmatmul.mubr.f32.gmra.mxu0 %v1583
      %v1585 = vpop.f32.mrf.mxu0
      %v1586 = vadd.f32 %v1238, %v1585
      %v1587 = vpop.f32.mrf.mxu0
      %1588 = vmatprep.mubr.f32.mxu0 0.0
      %v1589 = vand.u32 %v267, 4294901760
      %v1590 = vsub.f32 %v267, %v1589
      %v1591 = vand.u32 %v1590, 4294901760
      %1592 = vmatmul.mubr.f32.gmra.mxu0 %v1591
      %v1593 = vpop.f32.mrf.mxu0
      %v1594 = vadd.f32 %v1245, %v1593
      %v1595 = vpop.f32.mrf.mxu0
      %1596 = vmatprep.mubr.f32.mxu0 0.0
      %v1597 = vand.u32 %v270, 4294901760
      %v1598 = vsub.f32 %v270, %v1597
      %v1599 = vand.u32 %v1598, 4294901760
      %1600 = vmatmul.mubr.f32.gmra.mxu0 %v1599
      %v1601 = vpop.f32.mrf.mxu0
      %v1602 = vadd.f32 %v1252, %v1601
      %v1603 = vpop.f32.mrf.mxu0
      %1604 = vmatprep.mubr.f32.mxu0 0.0
      %v1605 = vand.u32 %v273, 4294901760
      %v1606 = vsub.f32 %v273, %v1605
      %v1607 = vand.u32 %v1606, 4294901760
      %1608 = vmatmul.mubr.f32.gmra.mxu0 %v1607
      %v1609 = vpop.f32.mrf.mxu0
      %v1610 = vadd.f32 %v1259, %v1609
      %v1611 = vpop.f32.mrf.mxu0
      %1612 = vmatprep.mubr.f32.mxu0 0.0
      %v1613 = vand.u32 %v276, 4294901760
      %v1614 = vsub.f32 %v276, %v1613
      %v1615 = vand.u32 %v1614, 4294901760
      %1616 = vmatmul.mubr.f32.gmra.mxu0 %v1615
      %v1617 = vpop.f32.mrf.mxu0
      %v1618 = vadd.f32 %v1266, %v1617
      %v1619 = vpop.f32.mrf.mxu0
      %1620 = vmatprep.mubr.f32.mxu0 0.0
      %v1621 = vand.u32 %v279, 4294901760
      %v1622 = vsub.f32 %v279, %v1621
      %v1623 = vand.u32 %v1622, 4294901760
      %1624 = vmatmul.mubr.f32.gmra.mxu0 %v1623
      %v1625 = vpop.f32.mrf.mxu0
      %v1626 = vadd.f32 %v1273, %v1625
      %v1627 = vpop.f32.mrf.mxu0
      %1628 = vmatprep.mubr.f32.mxu0 0.0
      %v1629 = vand.u32 %v282, 4294901760
      %v1630 = vsub.f32 %v282, %v1629
      %v1631 = vand.u32 %v1630, 4294901760
      %1632 = vmatmul.mubr.f32.gmra.mxu0 %v1631
      %v1633 = vpop.f32.mrf.mxu0
      %v1634 = vadd.f32 %v1280, %v1633
      %v1635 = vpop.f32.mrf.mxu0
      %1636 = vmatprep.mubr.f32.mxu0 0.0
      %v1637 = vand.u32 %v285, 4294901760
      %v1638 = vsub.f32 %v285, %v1637
      %v1639 = vand.u32 %v1638, 4294901760
      %1640 = vmatmul.mubr.f32.gmra.mxu0 %v1639
      %v1641 = vpop.f32.mrf.mxu0
      %v1642 = vadd.f32 %v1287, %v1641
      %v1643 = vpop.f32.mrf.mxu0
      %1644 = vmatprep.mubr.f32.mxu0 0.0
      %v1645 = vand.u32 %v288, 4294901760
      %v1646 = vsub.f32 %v288, %v1645
      %v1647 = vand.u32 %v1646, 4294901760
      %1648 = vmatmul.mubr.f32.gmra.mxu0 %v1647
      %v1649 = vpop.f32.mrf.mxu0
      %v1650 = vadd.f32 %v1294, %v1649
      %v1651 = vpop.f32.mrf.mxu0
      %1652 = vmatprep.mubr.f32.mxu0 0.0
      %v1653 = vand.u32 %v291, 4294901760
      %v1654 = vsub.f32 %v291, %v1653
      %v1655 = vand.u32 %v1654, 4294901760
      %1656 = vmatmul.mubr.f32.gmra.mxu0 %v1655
      %v1657 = vpop.f32.mrf.mxu0
      %v1658 = vadd.f32 %v1301, %v1657
      %v1659 = vpop.f32.mrf.mxu0
      %1660 = vmatprep.mubr.f32.mxu0 0.0
      %v1661 = vand.u32 %v294, 4294901760
      %v1662 = vsub.f32 %v294, %v1661
      %v1663 = vand.u32 %v1662, 4294901760
      %1664 = vmatmul.mubr.f32.gmra.mxu0 %v1663
      %v1665 = vpop.f32.mrf.mxu0
      %v1666 = vadd.f32 %v1308, %v1665
      %v1667 = vpop.f32.mrf.mxu0
      %1668 = vmatprep.mubr.f32.mxu0 0.0
      %v1669 = vand.u32 %v297, 4294901760
      %v1670 = vsub.f32 %v297, %v1669
      %v1671 = vand.u32 %v1670, 4294901760
      %1672 = vmatmul.mubr.f32.gmra.mxu0 %v1671
      %v1673 = vpop.f32.mrf.mxu0
      %v1674 = vadd.f32 %v1315, %v1673
      %v1675 = vpop.f32.mrf.mxu0
      %1676 = vmatprep.mubr.f32.mxu0 0.0
      %v1677 = vand.u32 %v300, 4294901760
      %v1678 = vsub.f32 %v300, %v1677
      %v1679 = vand.u32 %v1678, 4294901760
      %1680 = vmatmul.mubr.f32.gmra.mxu0 %v1679
      %v1681 = vpop.f32.mrf.mxu0
      %v1682 = vadd.f32 %v1322, %v1681
      %v1683 = vpop.f32.mrf.mxu0
      %1684 = vmatprep.mubr.f32.mxu0 0.0
      %v1685 = vand.u32 %v303, 4294901760
      %v1686 = vsub.f32 %v303, %v1685
      %v1687 = vand.u32 %v1686, 4294901760
      %1688 = vmatmul.mubr.f32.gmra.mxu0 %v1687
      %v1689 = vpop.f32.mrf.mxu0
      %v1690 = vadd.f32 %v1329, %v1689
      %v1691 = vpop.f32.mrf.mxu0
      %1692 = vmatprep.mubr.f32.mxu0 0.0
      %v1693 = vand.u32 %v306, 4294901760
      %v1694 = vsub.f32 %v306, %v1693
      %v1695 = vand.u32 %v1694, 4294901760
      %1696 = vmatmul.mubr.f32.gmra.mxu0 %v1695
      %v1697 = vpop.f32.mrf.mxu0
      %v1698 = vadd.f32 %v1336, %v1697
      %v1699 = vpop.f32.mrf.mxu0
      %1700 = vmatprep.mubr.f32.mxu0 0.0
      %v1701 = vand.u32 %v309, 4294901760
      %v1702 = vsub.f32 %v309, %v1701
      %v1703 = vand.u32 %v1702, 4294901760
      %1704 = vmatmul.mubr.f32.gmra.mxu0 %v1703
      %v1705 = vpop.f32.mrf.mxu0
      %v1706 = vadd.f32 %v1343, %v1705
      %v1707 = vpop.f32.mrf.mxu0
      %1708 = vmatprep.mubr.f32.mxu0 0.0
      %v1709 = vand.u32 %v312, 4294901760
      %v1710 = vsub.f32 %v312, %v1709
      %v1711 = vand.u32 %v1710, 4294901760
      %1712 = vmatmul.mubr.f32.gmra.mxu0 %v1711
      %v1713 = vpop.f32.mrf.mxu0
      %v1714 = vadd.f32 %v1350, %v1713
      %v1715 = vpop.f32.mrf.mxu0
      %1716 = vmatprep.mubr.f32.mxu0 0.0
      %v1717 = vand.u32 %v315, 4294901760
      %v1718 = vsub.f32 %v315, %v1717
      %v1719 = vand.u32 %v1718, 4294901760
      %1720 = vmatmul.mubr.f32.gmra.mxu0 %v1719
      %v1721 = vpop.f32.mrf.mxu0
      %v1722 = vadd.f32 %v1357, %v1721
      %v1723 = vpop.f32.mrf.mxu0
      %1724 = vmatprep.mubr.f32.mxu0 0.0
      %v1725 = vand.u32 %v318, 4294901760
      %v1726 = vsub.f32 %v318, %v1725
      %v1727 = vand.u32 %v1726, 4294901760
      %1728 = vmatmul.mubr.f32.gmra.mxu0 %v1727
      %v1729 = vpop.f32.mrf.mxu0
      %v1730 = vadd.f32 %v1364, %v1729
      %v1731 = vpop.f32.mrf.mxu0
      %1732 = vmatprep.mubr.f32.mxu0 0.0
      %v1733 = vand.u32 %v321, 4294901760
      %v1734 = vsub.f32 %v321, %v1733
      %v1735 = vand.u32 %v1734, 4294901760
      %1736 = vmatmul.mubr.f32.gmra.mxu0 %v1735
      %v1737 = vpop.f32.mrf.mxu0
      %v1738 = vadd.f32 %v1371, %v1737
      %v1739 = vpop.f32.mrf.mxu0
      %1740 = vmatprep.mubr.f32.mxu0 0.0
      %v1741 = vand.u32 %v324, 4294901760
      %v1742 = vsub.f32 %v324, %v1741
      %v1743 = vand.u32 %v1742, 4294901760
      %1744 = vmatmul.mubr.f32.gmra.mxu0 %v1743
      %v1745 = vpop.f32.mrf.mxu0
      %v1746 = vadd.f32 %v1378, %v1745
      %v1747 = vpop.f32.mrf.mxu0
      %1748 = vmatprep.mubr.f32.mxu0 0.0
      %v1749 = vand.u32 %v327, 4294901760
      %v1750 = vsub.f32 %v327, %v1749
      %v1751 = vand.u32 %v1750, 4294901760
      %1752 = vmatmul.mubr.f32.gmra.mxu0 %v1751
      %v1753 = vpop.f32.mrf.mxu0
      %v1754 = vadd.f32 %v1385, %v1753
      %v1755 = vpop.f32.mrf.mxu0
      %1756 = vmatprep.mubr.f32.mxu0 0.0
      %v1757 = vand.u32 %v330, 4294901760
      %v1758 = vsub.f32 %v330, %v1757
      %v1759 = vand.u32 %v1758, 4294901760
      %1760 = vmatmul.mubr.f32.gmra.mxu0 %v1759
      %v1761 = vpop.f32.mrf.mxu0
      %v1762 = vadd.f32 %v1392, %v1761
      %v1763 = vpop.f32.mrf.mxu0
      %1764 = vmatprep.mubr.f32.mxu0 0.0
      %v1765 = vand.u32 %v333, 4294901760
      %v1766 = vsub.f32 %v333, %v1765
      %v1767 = vand.u32 %v1766, 4294901760
      %1768 = vmatmul.mubr.f32.gmra.mxu0 %v1767
      %v1769 = vpop.f32.mrf.mxu0
      %v1770 = vadd.f32 %v1399, %v1769
      %v1771 = vpop.f32.mrf.mxu0
      %1772 = vmatprep.mubr.f32.mxu0 0.0
      %v1773 = vand.u32 %v336, 4294901760
      %v1774 = vsub.f32 %v336, %v1773
      %v1775 = vand.u32 %v1774, 4294901760
      %1776 = vmatmul.mubr.f32.gmra.mxu0 %v1775
      %v1777 = vpop.f32.mrf.mxu0
      %v1778 = vadd.f32 %v1406, %v1777
      %v1779 = vpop.f32.mrf.mxu0
      %1780 = vmatprep.mubr.f32.mxu0 0.0
      %v1781 = vand.u32 %v339, 4294901760
      %v1782 = vsub.f32 %v339, %v1781
      %v1783 = vand.u32 %v1782, 4294901760
      %1784 = vmatmul.mubr.f32.gmra.mxu0 %v1783
      %v1785 = vpop.f32.mrf.mxu0
      %v1786 = vadd.f32 %v1413, %v1785
      %v1787 = vpop.f32.mrf.mxu0
      %1788 = vmatprep.mubr.f32.mxu0 0.0
      %v1789 = vand.u32 %v342, 4294901760
      %v1790 = vsub.f32 %v342, %v1789
      %v1791 = vand.u32 %v1790, 4294901760
      %1792 = vmatmul.mubr.f32.gmra.mxu0 %v1791
      %v1793 = vpop.f32.mrf.mxu0
      %v1794 = vadd.f32 %v1420, %v1793
      %v1795 = vpop.f32.mrf.mxu0
      %1796 = vmatprep.mubr.f32.mxu0 0.0
      %v1797 = vand.u32 %v345, 4294901760
      %v1798 = vsub.f32 %v345, %v1797
      %v1799 = vand.u32 %v1798, 4294901760
      %1800 = vmatmul.mubr.f32.gmra.mxu0 %v1799
      %v1801 = vpop.f32.mrf.mxu0
      %v1802 = vadd.f32 %v1427, %v1801
      %v1803 = vpop.f32.mrf.mxu0
      %1804 = vmatprep.mubr.f32.mxu0 0.0
      %v1805 = vand.u32 %v348, 4294901760
      %v1806 = vsub.f32 %v348, %v1805
      %v1807 = vand.u32 %v1806, 4294901760
      %1808 = vmatmul.mubr.f32.gmra.mxu0 %v1807
      %v1809 = vpop.f32.mrf.mxu0
      %v1810 = vadd.f32 %v1434, %v1809
      %v1811 = vpop.f32.mrf.mxu0
      %1812 = vmatprep.mubr.f32.mxu0 0.0
      %v1813 = vand.u32 %v351, 4294901760
      %v1814 = vsub.f32 %v351, %v1813
      %v1815 = vand.u32 %v1814, 4294901760
      %1816 = vmatmul.mubr.f32.gmra.mxu0 %v1815
      %v1817 = vpop.f32.mrf.mxu0
      %v1818 = vadd.f32 %v1441, %v1817
      %v1819 = vpop.f32.mrf.mxu0
      %1820 = vmatprep.mubr.f32.mxu0 0.0
      %v1821 = vand.u32 %v354, 4294901760
      %v1822 = vsub.f32 %v354, %v1821
      %v1823 = vand.u32 %v1822, 4294901760
      %1824 = vmatmul.mubr.f32.gmra.mxu0 %v1823
      %v1825 = vpop.f32.mrf.mxu0
      %v1826 = vadd.f32 %v1448, %v1825
      %v1827 = vpop.f32.mrf.mxu0
      %1828 = vmatprep.mubr.f32.mxu0 0.0
      %v1829 = vand.u32 %v357, 4294901760
      %v1830 = vsub.f32 %v357, %v1829
      %v1831 = vand.u32 %v1830, 4294901760
      %1832 = vmatmul.mubr.f32.gmra.mxu0 %v1831
      %v1833 = vpop.f32.mrf.mxu0
      %v1834 = vadd.f32 %v1455, %v1833
      %v1835 = vpop.f32.mrf.mxu0
      %1836 = vmatprep.mubr.f32.mxu0 0.0
      %v1837 = vand.u32 %v360, 4294901760
      %v1838 = vsub.f32 %v360, %v1837
      %v1839 = vand.u32 %v1838, 4294901760
      %1840 = vmatmul.mubr.f32.gmra.mxu0 %v1839
      %v1841 = vpop.f32.mrf.mxu0
      %v1842 = vadd.f32 %v1462, %v1841
      %v1843 = vpop.f32.mrf.mxu0
      %1844 = vmatprep.mubr.f32.mxu0 0.0
      %v1845 = vand.u32 %v363, 4294901760
      %v1846 = vsub.f32 %v363, %v1845
      %v1847 = vand.u32 %v1846, 4294901760
      %1848 = vmatmul.mubr.f32.gmra.mxu0 %v1847
      %v1849 = vpop.f32.mrf.mxu0
      %v1850 = vadd.f32 %v1469, %v1849
      %v1851 = vpop.f32.mrf.mxu0
      %1852 = vmatprep.mubr.f32.mxu0 0.0
      %v1853 = vand.u32 %v366, 4294901760
      %v1854 = vsub.f32 %v366, %v1853
      %v1855 = vand.u32 %v1854, 4294901760
      %1856 = vmatmul.mubr.f32.gmra.mxu0 %v1855
      %v1857 = vpop.f32.mrf.mxu0
      %v1858 = vadd.f32 %v1476, %v1857
      %v1859 = vpop.f32.mrf.mxu0
      %1860 = vmatprep.mubr.f32.mxu0 0.0
      %v1861 = vand.u32 %v369, 4294901760
      %v1862 = vsub.f32 %v369, %v1861
      %v1863 = vand.u32 %v1862, 4294901760
      %1864 = vmatmul.mubr.f32.gmra.mxu0 %v1863
      %v1865 = vpop.f32.mrf.mxu0
      %v1866 = vadd.f32 %v1483, %v1865
      %v1867 = vpop.f32.mrf.mxu0
      %1868 = vmatprep.mubr.f32.mxu0 0.0
      %v1869 = vand.u32 %v372, 4294901760
      %v1870 = vsub.f32 %v372, %v1869
      %v1871 = vand.u32 %v1870, 4294901760
      %1872 = vmatmul.mubr.f32.gmra.mxu0 %v1871
      %v1873 = vpop.f32.mrf.mxu0
      %v1874 = vadd.f32 %v1490, %v1873
      %v1875 = vpop.f32.mrf.mxu0
      %1876 = vmatprep.mubr.f32.mxu0 0.0
      %v1877 = vand.u32 %v375, 4294901760
      %v1878 = vsub.f32 %v375, %v1877
      %v1879 = vand.u32 %v1878, 4294901760
      %1880 = vmatmul.mubr.f32.gmra.mxu0 %v1879
      %v1881 = vpop.f32.mrf.mxu0
      %v1882 = vadd.f32 %v1497, %v1881
      %v1883 = vpop.f32.mrf.mxu0
      %1884 = vmatprep.mubr.f32.mxu0 0.0
      %v1885 = vand.u32 %v378, 4294901760
      %v1886 = vsub.f32 %v378, %v1885
      %v1887 = vand.u32 %v1886, 4294901760
      %1888 = vmatmul.mubr.f32.gmra.mxu0 %v1887
      %v1889 = vpop.f32.mrf.mxu0
      %v1890 = vadd.f32 %v1504, %v1889
      %v1891 = vpop.f32.mrf.mxu0
      %1892 = vmatprep.mubr.f32.mxu0 0.0
      %v1893 = vand.u32 %v381, 4294901760
      %v1894 = vsub.f32 %v381, %v1893
      %v1895 = vand.u32 %v1894, 4294901760
      %1896 = vmatmul.mubr.f32.gmra.mxu0 %v1895
      %v1897 = vpop.f32.mrf.mxu0
      %v1898 = vadd.f32 %v1511, %v1897
      %v1899 = vpop.f32.mrf.mxu0
      %1900 = vdwg.mxu0
      %1901 = vmatprep.subr.mxu0 0.0
      %1902 = vmatpush1.msra.mxu0 0.0
      %1903 = vmatprep.subr.mxu0 0.0
      %1904 = vmatpush1.msra.mxu0 0.0
      %1905 = vmatprep.subr.mxu0 0.0
      %1906 = vmatpush1.msra.mxu0 0.0
      %1907 = vmatprep.subr.mxu0 0.0
      %1908 = vmatpush1.msra.mxu0 0.0
      %1909 = vmatprep.subr.mxu0 0.0
      %1910 = vmatpush1.msra.mxu0 0.0
      %1911 = vmatprep.subr.mxu0 0.0
      %1912 = vmatpush1.msra.mxu0 0.0
      %1913 = vmatprep.subr.mxu0 0.0
      %1914 = vmatpush1.msra.mxu0 0.0
      %1915 = vmatprep.subr.mxu0 0.0
      %1916 = vmatpush1.msra.mxu0 0.0
      %1917 = vmatprep.subr.mxu0 0.0
      %1918 = vmatpush1.msra.mxu0 0.0
      %1919 = vmatprep.subr.mxu0 0.0
      %1920 = vmatpush1.msra.mxu0 0.0
      %1921 = vmatprep.subr.mxu0 0.0
      %1922 = vmatpush1.msra.mxu0 0.0
      %1923 = vmatprep.subr.mxu0 0.0
      %1924 = vmatpush1.msra.mxu0 0.0
      %1925 = vmatprep.subr.mxu0 0.0
      %1926 = vmatpush1.msra.mxu0 0.0
      %1927 = vmatprep.subr.mxu0 0.0
      %1928 = vmatpush1.msra.mxu0 0.0
      %1929 = vmatprep.subr.mxu0 0.0
      %v1930 = vand.u32 %v235, 4294901760
      %v1931 = vsub.f32 %v235, %v1930
      %v1932 = vand.u32 %v1931, 4294901760
      %1933 = vmatpush1.msra.mxu0 %v1932
      %1934 = vmatprep.subr.mxu0 0.0
      %v1935 = vand.u32 %v234, 4294901760
      %v1936 = vsub.f32 %v234, %v1935
      %v1937 = vand.u32 %v1936, 4294901760
      %1938 = vmatpush1.msra.mxu0 %v1937
      %1939 = vmatprep.subr.mxu0 0.0
      %1940 = vmatpush2.msra.mxu0 0.0
      %1941 = vmatprep.subr.mxu0 0.0
      %1942 = vmatpush2.msra.mxu0 0.0
      %1943 = vmatprep.subr.mxu0 0.0
      %1944 = vmatpush2.msra.mxu0 0.0
      %1945 = vmatprep.subr.mxu0 0.0
      %1946 = vmatpush2.msra.mxu0 0.0
      %1947 = vmatprep.subr.mxu0 0.0
      %1948 = vmatpush2.msra.mxu0 0.0
      %1949 = vmatprep.subr.mxu0 0.0
      %1950 = vmatpush2.msra.mxu0 0.0
      %1951 = vmatprep.subr.mxu0 0.0
      %1952 = vmatpush2.msra.mxu0 0.0
      %1953 = vmatprep.subr.mxu0 0.0
      %1954 = vmatpush2.msra.mxu0 0.0
      %1955 = vmatprep.subr.mxu0 0.0
      %1956 = vmatpush2.msra.mxu0 0.0
      %1957 = vmatprep.subr.mxu0 0.0
      %1958 = vmatpush2.msra.mxu0 0.0
      %1959 = vmatprep.subr.mxu0 0.0
      %1960 = vmatpush2.msra.mxu0 0.0
      %1961 = vmatprep.subr.mxu0 0.0
      %1962 = vmatpush2.msra.mxu0 0.0
      %1963 = vmatprep.subr.mxu0 0.0
      %1964 = vmatpush2.msra.mxu0 0.0
      %1965 = vmatprep.subr.mxu0 0.0
      %1966 = vmatpush2.msra.mxu0 0.0
      %1967 = vmatprep.subr.mxu0 0.0
      %1968 = vmatpush2.msra.mxu0 0.0
      %1969 = vmatprep.subr.mxu0 0.0
      %1970 = vmatpush2.msra.mxu0 0.0
      %1971 = vmatprep.mubr.f32.mxu0 0.0
      %v1972 = vand.u32 %v264, 4294901760
      %1973 = vmatmul.mubr.f32.gmra.mxu0 %v1972
      %v1974 = vpop.f32.mrf.mxu0
      %v1975 = vadd.f32 %v1586, %v1974
      %v1976 = vpop.f32.mrf.mxu0
      %1977 = vmatprep.mubr.f32.mxu0 0.0
      %v1978 = vand.u32 %v267, 4294901760
      %1979 = vmatmul.mubr.f32.gmra.mxu0 %v1978
      %v1980 = vpop.f32.mrf.mxu0
      %v1981 = vadd.f32 %v1594, %v1980
      %v1982 = vpop.f32.mrf.mxu0
      %1983 = vmatprep.mubr.f32.mxu0 0.0
      %v1984 = vand.u32 %v270, 4294901760
      %1985 = vmatmul.mubr.f32.gmra.mxu0 %v1984
      %v1986 = vpop.f32.mrf.mxu0
      %v1987 = vadd.f32 %v1602, %v1986
      %v1988 = vpop.f32.mrf.mxu0
      %1989 = vmatprep.mubr.f32.mxu0 0.0
      %v1990 = vand.u32 %v273, 4294901760
      %1991 = vmatmul.mubr.f32.gmra.mxu0 %v1990
      %v1992 = vpop.f32.mrf.mxu0
      %v1993 = vadd.f32 %v1610, %v1992
      %v1994 = vpop.f32.mrf.mxu0
      %1995 = vmatprep.mubr.f32.mxu0 0.0
      %v1996 = vand.u32 %v276, 4294901760
      %1997 = vmatmul.mubr.f32.gmra.mxu0 %v1996
      %v1998 = vpop.f32.mrf.mxu0
      %v1999 = vadd.f32 %v1618, %v1998
      %v2000 = vpop.f32.mrf.mxu0
      %2001 = vmatprep.mubr.f32.mxu0 0.0
      %v2002 = vand.u32 %v279, 4294901760
      %2003 = vmatmul.mubr.f32.gmra.mxu0 %v2002
      %v2004 = vpop.f32.mrf.mxu0
      %v2005 = vadd.f32 %v1626, %v2004
      %v2006 = vpop.f32.mrf.mxu0
      %2007 = vmatprep.mubr.f32.mxu0 0.0
      %v2008 = vand.u32 %v282, 4294901760
      %2009 = vmatmul.mubr.f32.gmra.mxu0 %v2008
      %v2010 = vpop.f32.mrf.mxu0
      %v2011 = vadd.f32 %v1634, %v2010
      %v2012 = vpop.f32.mrf.mxu0
      %2013 = vmatprep.mubr.f32.mxu0 0.0
      %v2014 = vand.u32 %v285, 4294901760
      %2015 = vmatmul.mubr.f32.gmra.mxu0 %v2014
      %v2016 = vpop.f32.mrf.mxu0
      %v2017 = vadd.f32 %v1642, %v2016
      %v2018 = vpop.f32.mrf.mxu0
      %2019 = vmatprep.mubr.f32.mxu0 0.0
      %v2020 = vand.u32 %v288, 4294901760
      %2021 = vmatmul.mubr.f32.gmra.mxu0 %v2020
      %v2022 = vpop.f32.mrf.mxu0
      %v2023 = vadd.f32 %v1650, %v2022
      %v2024 = vpop.f32.mrf.mxu0
      %2025 = vmatprep.mubr.f32.mxu0 0.0
      %v2026 = vand.u32 %v291, 4294901760
      %2027 = vmatmul.mubr.f32.gmra.mxu0 %v2026
      %v2028 = vpop.f32.mrf.mxu0
      %v2029 = vadd.f32 %v1658, %v2028
      %v2030 = vpop.f32.mrf.mxu0
      %2031 = vmatprep.mubr.f32.mxu0 0.0
      %v2032 = vand.u32 %v294, 4294901760
      %2033 = vmatmul.mubr.f32.gmra.mxu0 %v2032
      %v2034 = vpop.f32.mrf.mxu0
      %v2035 = vadd.f32 %v1666, %v2034
      %v2036 = vpop.f32.mrf.mxu0
      %2037 = vmatprep.mubr.f32.mxu0 0.0
      %v2038 = vand.u32 %v297, 4294901760
      %2039 = vmatmul.mubr.f32.gmra.mxu0 %v2038
      %v2040 = vpop.f32.mrf.mxu0
      %v2041 = vadd.f32 %v1674, %v2040
      %v2042 = vpop.f32.mrf.mxu0
      %2043 = vmatprep.mubr.f32.mxu0 0.0
      %v2044 = vand.u32 %v300, 4294901760
      %2045 = vmatmul.mubr.f32.gmra.mxu0 %v2044
      %v2046 = vpop.f32.mrf.mxu0
      %v2047 = vadd.f32 %v1682, %v2046
      %v2048 = vpop.f32.mrf.mxu0
      %2049 = vmatprep.mubr.f32.mxu0 0.0
      %v2050 = vand.u32 %v303, 4294901760
      %2051 = vmatmul.mubr.f32.gmra.mxu0 %v2050
      %v2052 = vpop.f32.mrf.mxu0
      %v2053 = vadd.f32 %v1690, %v2052
      %v2054 = vpop.f32.mrf.mxu0
      %2055 = vmatprep.mubr.f32.mxu0 0.0
      %v2056 = vand.u32 %v306, 4294901760
      %2057 = vmatmul.mubr.f32.gmra.mxu0 %v2056
      %v2058 = vpop.f32.mrf.mxu0
      %v2059 = vadd.f32 %v1698, %v2058
      %v2060 = vpop.f32.mrf.mxu0
      %2061 = vmatprep.mubr.f32.mxu0 0.0
      %v2062 = vand.u32 %v309, 4294901760
      %2063 = vmatmul.mubr.f32.gmra.mxu0 %v2062
      %v2064 = vpop.f32.mrf.mxu0
      %v2065 = vadd.f32 %v1706, %v2064
      %v2066 = vpop.f32.mrf.mxu0
      %2067 = vmatprep.mubr.f32.mxu0 0.0
      %v2068 = vand.u32 %v312, 4294901760
      %2069 = vmatmul.mubr.f32.gmra.mxu0 %v2068
      %v2070 = vpop.f32.mrf.mxu0
      %v2071 = vadd.f32 %v1714, %v2070
      %v2072 = vpop.f32.mrf.mxu0
      %2073 = vmatprep.mubr.f32.mxu0 0.0
      %v2074 = vand.u32 %v315, 4294901760
      %2075 = vmatmul.mubr.f32.gmra.mxu0 %v2074
      %v2076 = vpop.f32.mrf.mxu0
      %v2077 = vadd.f32 %v1722, %v2076
      %v2078 = vpop.f32.mrf.mxu0
      %2079 = vmatprep.mubr.f32.mxu0 0.0
      %v2080 = vand.u32 %v318, 4294901760
      %2081 = vmatmul.mubr.f32.gmra.mxu0 %v2080
      %v2082 = vpop.f32.mrf.mxu0
      %v2083 = vadd.f32 %v1730, %v2082
      %v2084 = vpop.f32.mrf.mxu0
      %2085 = vmatprep.mubr.f32.mxu0 0.0
      %v2086 = vand.u32 %v321, 4294901760
      %2087 = vmatmul.mubr.f32.gmra.mxu0 %v2086
      %v2088 = vpop.f32.mrf.mxu0
      %v2089 = vadd.f32 %v1738, %v2088
      %v2090 = vpop.f32.mrf.mxu0
      %2091 = vmatprep.mubr.f32.mxu0 0.0
      %v2092 = vand.u32 %v324, 4294901760
      %2093 = vmatmul.mubr.f32.gmra.mxu0 %v2092
      %v2094 = vpop.f32.mrf.mxu0
      %v2095 = vadd.f32 %v1746, %v2094
      %v2096 = vpop.f32.mrf.mxu0
      %2097 = vmatprep.mubr.f32.mxu0 0.0
      %v2098 = vand.u32 %v327, 4294901760
      %2099 = vmatmul.mubr.f32.gmra.mxu0 %v2098
      %v2100 = vpop.f32.mrf.mxu0
      %v2101 = vadd.f32 %v1754, %v2100
      %v2102 = vpop.f32.mrf.mxu0
      %2103 = vmatprep.mubr.f32.mxu0 0.0
      %v2104 = vand.u32 %v330, 4294901760
      %2105 = vmatmul.mubr.f32.gmra.mxu0 %v2104
      %v2106 = vpop.f32.mrf.mxu0
      %v2107 = vadd.f32 %v1762, %v2106
      %v2108 = vpop.f32.mrf.mxu0
      %2109 = vmatprep.mubr.f32.mxu0 0.0
      %v2110 = vand.u32 %v333, 4294901760
      %2111 = vmatmul.mubr.f32.gmra.mxu0 %v2110
      %v2112 = vpop.f32.mrf.mxu0
      %v2113 = vadd.f32 %v1770, %v2112
      %v2114 = vpop.f32.mrf.mxu0
      %2115 = vmatprep.mubr.f32.mxu0 0.0
      %v2116 = vand.u32 %v336, 4294901760
      %2117 = vmatmul.mubr.f32.gmra.mxu0 %v2116
      %v2118 = vpop.f32.mrf.mxu0
      %v2119 = vadd.f32 %v1778, %v2118
      %v2120 = vpop.f32.mrf.mxu0
      %2121 = vmatprep.mubr.f32.mxu0 0.0
      %v2122 = vand.u32 %v339, 4294901760
      %2123 = vmatmul.mubr.f32.gmra.mxu0 %v2122
      %v2124 = vpop.f32.mrf.mxu0
      %v2125 = vadd.f32 %v1786, %v2124
      %v2126 = vpop.f32.mrf.mxu0
      %2127 = vmatprep.mubr.f32.mxu0 0.0
      %v2128 = vand.u32 %v342, 4294901760
      %2129 = vmatmul.mubr.f32.gmra.mxu0 %v2128
      %v2130 = vpop.f32.mrf.mxu0
      %v2131 = vadd.f32 %v1794, %v2130
      %v2132 = vpop.f32.mrf.mxu0
      %2133 = vmatprep.mubr.f32.mxu0 0.0
      %v2134 = vand.u32 %v345, 4294901760
      %2135 = vmatmul.mubr.f32.gmra.mxu0 %v2134
      %v2136 = vpop.f32.mrf.mxu0
      %v2137 = vadd.f32 %v1802, %v2136
      %v2138 = vpop.f32.mrf.mxu0
      %2139 = vmatprep.mubr.f32.mxu0 0.0
      %v2140 = vand.u32 %v348, 4294901760
      %2141 = vmatmul.mubr.f32.gmra.mxu0 %v2140
      %v2142 = vpop.f32.mrf.mxu0
      %v2143 = vadd.f32 %v1810, %v2142
      %v2144 = vpop.f32.mrf.mxu0
      %2145 = vmatprep.mubr.f32.mxu0 0.0
      %v2146 = vand.u32 %v351, 4294901760
      %2147 = vmatmul.mubr.f32.gmra.mxu0 %v2146
      %v2148 = vpop.f32.mrf.mxu0
      %v2149 = vadd.f32 %v1818, %v2148
      %v2150 = vpop.f32.mrf.mxu0
      %2151 = vmatprep.mubr.f32.mxu0 0.0
      %v2152 = vand.u32 %v354, 4294901760
      %2153 = vmatmul.mubr.f32.gmra.mxu0 %v2152
      %v2154 = vpop.f32.mrf.mxu0
      %v2155 = vadd.f32 %v1826, %v2154
      %v2156 = vpop.f32.mrf.mxu0
      %2157 = vmatprep.mubr.f32.mxu0 0.0
      %v2158 = vand.u32 %v357, 4294901760
      %2159 = vmatmul.mubr.f32.gmra.mxu0 %v2158
      %v2160 = vpop.f32.mrf.mxu0
      %v2161 = vadd.f32 %v1834, %v2160
      %v2162 = vpop.f32.mrf.mxu0
      %2163 = vmatprep.mubr.f32.mxu0 0.0
      %v2164 = vand.u32 %v360, 4294901760
      %2165 = vmatmul.mubr.f32.gmra.mxu0 %v2164
      %v2166 = vpop.f32.mrf.mxu0
      %v2167 = vadd.f32 %v1842, %v2166
      %v2168 = vpop.f32.mrf.mxu0
      %2169 = vmatprep.mubr.f32.mxu0 0.0
      %v2170 = vand.u32 %v363, 4294901760
      %2171 = vmatmul.mubr.f32.gmra.mxu0 %v2170
      %v2172 = vpop.f32.mrf.mxu0
      %v2173 = vadd.f32 %v1850, %v2172
      %v2174 = vpop.f32.mrf.mxu0
      %2175 = vmatprep.mubr.f32.mxu0 0.0
      %v2176 = vand.u32 %v366, 4294901760
      %2177 = vmatmul.mubr.f32.gmra.mxu0 %v2176
      %v2178 = vpop.f32.mrf.mxu0
      %v2179 = vadd.f32 %v1858, %v2178
      %v2180 = vpop.f32.mrf.mxu0
      %2181 = vmatprep.mubr.f32.mxu0 0.0
      %v2182 = vand.u32 %v369, 4294901760
      %2183 = vmatmul.mubr.f32.gmra.mxu0 %v2182
      %v2184 = vpop.f32.mrf.mxu0
      %v2185 = vadd.f32 %v1866, %v2184
      %v2186 = vpop.f32.mrf.mxu0
      %2187 = vmatprep.mubr.f32.mxu0 0.0
      %v2188 = vand.u32 %v372, 4294901760
      %2189 = vmatmul.mubr.f32.gmra.mxu0 %v2188
      %v2190 = vpop.f32.mrf.mxu0
      %v2191 = vadd.f32 %v1874, %v2190
      %v2192 = vpop.f32.mrf.mxu0
      %2193 = vmatprep.mubr.f32.mxu0 0.0
      %v2194 = vand.u32 %v375, 4294901760
      %2195 = vmatmul.mubr.f32.gmra.mxu0 %v2194
      %v2196 = vpop.f32.mrf.mxu0
      %v2197 = vadd.f32 %v1882, %v2196
      %v2198 = vpop.f32.mrf.mxu0
      %2199 = vmatprep.mubr.f32.mxu0 0.0
      %v2200 = vand.u32 %v378, 4294901760
      %2201 = vmatmul.mubr.f32.gmra.mxu0 %v2200
      %v2202 = vpop.f32.mrf.mxu0
      %v2203 = vadd.f32 %v1890, %v2202
      %v2204 = vpop.f32.mrf.mxu0
      %2205 = vmatprep.mubr.f32.mxu0 0.0
      %v2206 = vand.u32 %v381, 4294901760
      %2207 = vmatmul.mubr.f32.gmra.mxu0 %v2206
      %v2208 = vpop.f32.mrf.mxu0
      %v2209 = vadd.f32 %v1898, %v2208
      %v2210 = vpop.f32.mrf.mxu0
      %2211 = vdwg.mxu0
      %2212 = vmatprep.subr.mxu0 0.0
      %2213 = vmatpush1.msra.mxu0 0.0
      %2214 = vmatprep.subr.mxu0 0.0
      %2215 = vmatpush1.msra.mxu0 0.0
      %2216 = vmatprep.subr.mxu0 0.0
      %2217 = vmatpush1.msra.mxu0 0.0
      %2218 = vmatprep.subr.mxu0 0.0
      %2219 = vmatpush1.msra.mxu0 0.0
      %2220 = vmatprep.subr.mxu0 0.0
      %2221 = vmatpush1.msra.mxu0 0.0
      %2222 = vmatprep.subr.mxu0 0.0
      %2223 = vmatpush1.msra.mxu0 0.0
      %2224 = vmatprep.subr.mxu0 0.0
      %2225 = vmatpush1.msra.mxu0 0.0
      %2226 = vmatprep.subr.mxu0 0.0
      %2227 = vmatpush1.msra.mxu0 0.0
      %2228 = vmatprep.subr.mxu0 0.0
      %2229 = vmatpush1.msra.mxu0 0.0
      %2230 = vmatprep.subr.mxu0 0.0
      %2231 = vmatpush1.msra.mxu0 0.0
      %2232 = vmatprep.subr.mxu0 0.0
      %2233 = vmatpush1.msra.mxu0 0.0
      %2234 = vmatprep.subr.mxu0 0.0
      %2235 = vmatpush1.msra.mxu0 0.0
      %2236 = vmatprep.subr.mxu0 0.0
      %2237 = vmatpush1.msra.mxu0 0.0
      %2238 = vmatprep.subr.mxu0 0.0
      %2239 = vmatpush1.msra.mxu0 0.0
      %2240 = vmatprep.subr.mxu0 0.0
      %v2241 = vand.u32 %v235, 4294901760
      %2242 = vmatpush1.msra.mxu0 %v2241
      %2243 = vmatprep.subr.mxu0 0.0
      %v2244 = vand.u32 %v234, 4294901760
      %2245 = vmatpush1.msra.mxu0 %v2244
      %2246 = vmatprep.subr.mxu0 0.0
      %2247 = vmatpush2.msra.mxu0 0.0
      %2248 = vmatprep.subr.mxu0 0.0
      %2249 = vmatpush2.msra.mxu0 0.0
      %2250 = vmatprep.subr.mxu0 0.0
      %2251 = vmatpush2.msra.mxu0 0.0
      %2252 = vmatprep.subr.mxu0 0.0
      %2253 = vmatpush2.msra.mxu0 0.0
      %2254 = vmatprep.subr.mxu0 0.0
      %2255 = vmatpush2.msra.mxu0 0.0
      %2256 = vmatprep.subr.mxu0 0.0
      %2257 = vmatpush2.msra.mxu0 0.0
      %2258 = vmatprep.subr.mxu0 0.0
      %2259 = vmatpush2.msra.mxu0 0.0
      %2260 = vmatprep.subr.mxu0 0.0
      %2261 = vmatpush2.msra.mxu0 0.0
      %2262 = vmatprep.subr.mxu0 0.0
      %2263 = vmatpush2.msra.mxu0 0.0
      %2264 = vmatprep.subr.mxu0 0.0
      %2265 = vmatpush2.msra.mxu0 0.0
      %2266 = vmatprep.subr.mxu0 0.0
      %2267 = vmatpush2.msra.mxu0 0.0
      %2268 = vmatprep.subr.mxu0 0.0
      %2269 = vmatpush2.msra.mxu0 0.0
      %2270 = vmatprep.subr.mxu0 0.0
      %2271 = vmatpush2.msra.mxu0 0.0
      %2272 = vmatprep.subr.mxu0 0.0
      %2273 = vmatpush2.msra.mxu0 0.0
      %2274 = vmatprep.subr.mxu0 0.0
      %2275 = vmatpush2.msra.mxu0 0.0
      %2276 = vmatprep.subr.mxu0 0.0
      %2277 = vmatpush2.msra.mxu0 0.0
      %2278 = vmatprep.mubr.f32.mxu0 0.0
      %v2279 = vand.u32 %v264, 4294901760
      %2280 = vmatmul.mubr.f32.gmra.mxu0 %v2279
      %v2281 = vpop.f32.mrf.mxu0
      %v2282 = vadd.f32 %v1975, %v2281
      %v2283 = vpop.f32.mrf.mxu0
      %2284 = vmatprep.mubr.f32.mxu0 0.0
      %v2285 = vand.u32 %v267, 4294901760
      %2286 = vmatmul.mubr.f32.gmra.mxu0 %v2285
      %v2287 = vpop.f32.mrf.mxu0
      %v2288 = vadd.f32 %v1981, %v2287
      %v2289 = vpop.f32.mrf.mxu0
      %2290 = vmatprep.mubr.f32.mxu0 0.0
      %v2291 = vand.u32 %v270, 4294901760
      %2292 = vmatmul.mubr.f32.gmra.mxu0 %v2291
      %v2293 = vpop.f32.mrf.mxu0
      %v2294 = vadd.f32 %v1987, %v2293
      %v2295 = vpop.f32.mrf.mxu0
      %2296 = vmatprep.mubr.f32.mxu0 0.0
      %v2297 = vand.u32 %v273, 4294901760
      %2298 = vmatmul.mubr.f32.gmra.mxu0 %v2297
      %v2299 = vpop.f32.mrf.mxu0
      %v2300 = vadd.f32 %v1993, %v2299
      %v2301 = vpop.f32.mrf.mxu0
      %2302 = vmatprep.mubr.f32.mxu0 0.0
      %v2303 = vand.u32 %v276, 4294901760
      %2304 = vmatmul.mubr.f32.gmra.mxu0 %v2303
      %v2305 = vpop.f32.mrf.mxu0
      %v2306 = vadd.f32 %v1999, %v2305
      %v2307 = vpop.f32.mrf.mxu0
      %2308 = vmatprep.mubr.f32.mxu0 0.0
      %v2309 = vand.u32 %v279, 4294901760
      %2310 = vmatmul.mubr.f32.gmra.mxu0 %v2309
      %v2311 = vpop.f32.mrf.mxu0
      %v2312 = vadd.f32 %v2005, %v2311
      %v2313 = vpop.f32.mrf.mxu0
      %2314 = vmatprep.mubr.f32.mxu0 0.0
      %v2315 = vand.u32 %v282, 4294901760
      %2316 = vmatmul.mubr.f32.gmra.mxu0 %v2315
      %v2317 = vpop.f32.mrf.mxu0
      %v2318 = vadd.f32 %v2011, %v2317
      %v2319 = vpop.f32.mrf.mxu0
      %2320 = vmatprep.mubr.f32.mxu0 0.0
      %v2321 = vand.u32 %v285, 4294901760
      %2322 = vmatmul.mubr.f32.gmra.mxu0 %v2321
      %v2323 = vpop.f32.mrf.mxu0
      %v2324 = vadd.f32 %v2017, %v2323
      %v2325 = vpop.f32.mrf.mxu0
      %2326 = vmatprep.mubr.f32.mxu0 0.0
      %v2327 = vand.u32 %v288, 4294901760
      %2328 = vmatmul.mubr.f32.gmra.mxu0 %v2327
      %v2329 = vpop.f32.mrf.mxu0
      %v2330 = vadd.f32 %v2023, %v2329
      %v2331 = vpop.f32.mrf.mxu0
      %2332 = vmatprep.mubr.f32.mxu0 0.0
      %v2333 = vand.u32 %v291, 4294901760
      %2334 = vmatmul.mubr.f32.gmra.mxu0 %v2333
      %v2335 = vpop.f32.mrf.mxu0
      %v2336 = vadd.f32 %v2029, %v2335
      %v2337 = vpop.f32.mrf.mxu0
      %2338 = vmatprep.mubr.f32.mxu0 0.0
      %v2339 = vand.u32 %v294, 4294901760
      %2340 = vmatmul.mubr.f32.gmra.mxu0 %v2339
      %v2341 = vpop.f32.mrf.mxu0
      %v2342 = vadd.f32 %v2035, %v2341
      %v2343 = vpop.f32.mrf.mxu0
      %2344 = vmatprep.mubr.f32.mxu0 0.0
      %v2345 = vand.u32 %v297, 4294901760
      %2346 = vmatmul.mubr.f32.gmra.mxu0 %v2345
      %v2347 = vpop.f32.mrf.mxu0
      %v2348 = vadd.f32 %v2041, %v2347
      %v2349 = vpop.f32.mrf.mxu0
      %2350 = vmatprep.mubr.f32.mxu0 0.0
      %v2351 = vand.u32 %v300, 4294901760
      %2352 = vmatmul.mubr.f32.gmra.mxu0 %v2351
      %v2353 = vpop.f32.mrf.mxu0
      %v2354 = vadd.f32 %v2047, %v2353
      %v2355 = vpop.f32.mrf.mxu0
      %2356 = vmatprep.mubr.f32.mxu0 0.0
      %v2357 = vand.u32 %v303, 4294901760
      %2358 = vmatmul.mubr.f32.gmra.mxu0 %v2357
      %v2359 = vpop.f32.mrf.mxu0
      %v2360 = vadd.f32 %v2053, %v2359
      %v2361 = vpop.f32.mrf.mxu0
      %2362 = vmatprep.mubr.f32.mxu0 0.0
      %v2363 = vand.u32 %v306, 4294901760
      %2364 = vmatmul.mubr.f32.gmra.mxu0 %v2363
      %v2365 = vpop.f32.mrf.mxu0
      %v2366 = vadd.f32 %v2059, %v2365
      %v2367 = vpop.f32.mrf.mxu0
      %2368 = vmatprep.mubr.f32.mxu0 0.0
      %v2369 = vand.u32 %v309, 4294901760
      %2370 = vmatmul.mubr.f32.gmra.mxu0 %v2369
      %v2371 = vpop.f32.mrf.mxu0
      %v2372 = vadd.f32 %v2065, %v2371
      %v2373 = vpop.f32.mrf.mxu0
      %2374 = vmatprep.mubr.f32.mxu0 0.0
      %v2375 = vand.u32 %v312, 4294901760
      %2376 = vmatmul.mubr.f32.gmra.mxu0 %v2375
      %v2377 = vpop.f32.mrf.mxu0
      %v2378 = vadd.f32 %v2071, %v2377
      %v2379 = vpop.f32.mrf.mxu0
      %2380 = vmatprep.mubr.f32.mxu0 0.0
      %v2381 = vand.u32 %v315, 4294901760
      %2382 = vmatmul.mubr.f32.gmra.mxu0 %v2381
      %v2383 = vpop.f32.mrf.mxu0
      %v2384 = vadd.f32 %v2077, %v2383
      %v2385 = vpop.f32.mrf.mxu0
      %2386 = vmatprep.mubr.f32.mxu0 0.0
      %v2387 = vand.u32 %v318, 4294901760
      %2388 = vmatmul.mubr.f32.gmra.mxu0 %v2387
      %v2389 = vpop.f32.mrf.mxu0
      %v2390 = vadd.f32 %v2083, %v2389
      %v2391 = vpop.f32.mrf.mxu0
      %2392 = vmatprep.mubr.f32.mxu0 0.0
      %v2393 = vand.u32 %v321, 4294901760
      %2394 = vmatmul.mubr.f32.gmra.mxu0 %v2393
      %v2395 = vpop.f32.mrf.mxu0
      %v2396 = vadd.f32 %v2089, %v2395
      %v2397 = vpop.f32.mrf.mxu0
      %2398 = vmatprep.mubr.f32.mxu0 0.0
      %v2399 = vand.u32 %v324, 4294901760
      %2400 = vmatmul.mubr.f32.gmra.mxu0 %v2399
      %v2401 = vpop.f32.mrf.mxu0
      %v2402 = vadd.f32 %v2095, %v2401
      %v2403 = vpop.f32.mrf.mxu0
      %2404 = vmatprep.mubr.f32.mxu0 0.0
      %v2405 = vand.u32 %v327, 4294901760
      %2406 = vmatmul.mubr.f32.gmra.mxu0 %v2405
      %v2407 = vpop.f32.mrf.mxu0
      %v2408 = vadd.f32 %v2101, %v2407
      %v2409 = vpop.f32.mrf.mxu0
      %2410 = vmatprep.mubr.f32.mxu0 0.0
      %v2411 = vand.u32 %v330, 4294901760
      %2412 = vmatmul.mubr.f32.gmra.mxu0 %v2411
      %v2413 = vpop.f32.mrf.mxu0
      %v2414 = vadd.f32 %v2107, %v2413
      %v2415 = vpop.f32.mrf.mxu0
      %2416 = vmatprep.mubr.f32.mxu0 0.0
      %v2417 = vand.u32 %v333, 4294901760
      %2418 = vmatmul.mubr.f32.gmra.mxu0 %v2417
      %v2419 = vpop.f32.mrf.mxu0
      %v2420 = vadd.f32 %v2113, %v2419
      %v2421 = vpop.f32.mrf.mxu0
      %2422 = vmatprep.mubr.f32.mxu0 0.0
      %v2423 = vand.u32 %v336, 4294901760
      %2424 = vmatmul.mubr.f32.gmra.mxu0 %v2423
      %v2425 = vpop.f32.mrf.mxu0
      %v2426 = vadd.f32 %v2119, %v2425
      %v2427 = vpop.f32.mrf.mxu0
      %2428 = vmatprep.mubr.f32.mxu0 0.0
      %v2429 = vand.u32 %v339, 4294901760
      %2430 = vmatmul.mubr.f32.gmra.mxu0 %v2429
      %v2431 = vpop.f32.mrf.mxu0
      %v2432 = vadd.f32 %v2125, %v2431
      %v2433 = vpop.f32.mrf.mxu0
      %2434 = vmatprep.mubr.f32.mxu0 0.0
      %v2435 = vand.u32 %v342, 4294901760
      %2436 = vmatmul.mubr.f32.gmra.mxu0 %v2435
      %v2437 = vpop.f32.mrf.mxu0
      %v2438 = vadd.f32 %v2131, %v2437
      %v2439 = vpop.f32.mrf.mxu0
      %2440 = vmatprep.mubr.f32.mxu0 0.0
      %v2441 = vand.u32 %v345, 4294901760
      %2442 = vmatmul.mubr.f32.gmra.mxu0 %v2441
      %v2443 = vpop.f32.mrf.mxu0
      %v2444 = vadd.f32 %v2137, %v2443
      %v2445 = vpop.f32.mrf.mxu0
      %2446 = vmatprep.mubr.f32.mxu0 0.0
      %v2447 = vand.u32 %v348, 4294901760
      %2448 = vmatmul.mubr.f32.gmra.mxu0 %v2447
      %v2449 = vpop.f32.mrf.mxu0
      %v2450 = vadd.f32 %v2143, %v2449
      %v2451 = vpop.f32.mrf.mxu0
      %2452 = vmatprep.mubr.f32.mxu0 0.0
      %v2453 = vand.u32 %v351, 4294901760
      %2454 = vmatmul.mubr.f32.gmra.mxu0 %v2453
      %v2455 = vpop.f32.mrf.mxu0
      %v2456 = vadd.f32 %v2149, %v2455
      %v2457 = vpop.f32.mrf.mxu0
      %2458 = vmatprep.mubr.f32.mxu0 0.0
      %v2459 = vand.u32 %v354, 4294901760
      %2460 = vmatmul.mubr.f32.gmra.mxu0 %v2459
      %v2461 = vpop.f32.mrf.mxu0
      %v2462 = vadd.f32 %v2155, %v2461
      %v2463 = vpop.f32.mrf.mxu0
      %2464 = vmatprep.mubr.f32.mxu0 0.0
      %v2465 = vand.u32 %v357, 4294901760
      %2466 = vmatmul.mubr.f32.gmra.mxu0 %v2465
      %v2467 = vpop.f32.mrf.mxu0
      %v2468 = vadd.f32 %v2161, %v2467
      %v2469 = vpop.f32.mrf.mxu0
      %2470 = vmatprep.mubr.f32.mxu0 0.0
      %v2471 = vand.u32 %v360, 4294901760
      %2472 = vmatmul.mubr.f32.gmra.mxu0 %v2471
      %v2473 = vpop.f32.mrf.mxu0
      %v2474 = vadd.f32 %v2167, %v2473
      %v2475 = vpop.f32.mrf.mxu0
      %2476 = vmatprep.mubr.f32.mxu0 0.0
      %v2477 = vand.u32 %v363, 4294901760
      %2478 = vmatmul.mubr.f32.gmra.mxu0 %v2477
      %v2479 = vpop.f32.mrf.mxu0
      %v2480 = vadd.f32 %v2173, %v2479
      %v2481 = vpop.f32.mrf.mxu0
      %2482 = vmatprep.mubr.f32.mxu0 0.0
      %v2483 = vand.u32 %v366, 4294901760
      %2484 = vmatmul.mubr.f32.gmra.mxu0 %v2483
      %v2485 = vpop.f32.mrf.mxu0
      %v2486 = vadd.f32 %v2179, %v2485
      %v2487 = vpop.f32.mrf.mxu0
      %2488 = vmatprep.mubr.f32.mxu0 0.0
      %v2489 = vand.u32 %v369, 4294901760
      %2490 = vmatmul.mubr.f32.gmra.mxu0 %v2489
      %v2491 = vpop.f32.mrf.mxu0
      %v2492 = vadd.f32 %v2185, %v2491
      %v2493 = vpop.f32.mrf.mxu0
      %2494 = vmatprep.mubr.f32.mxu0 0.0
      %v2495 = vand.u32 %v372, 4294901760
      %2496 = vmatmul.mubr.f32.gmra.mxu0 %v2495
      %v2497 = vpop.f32.mrf.mxu0
      %v2498 = vadd.f32 %v2191, %v2497
      %v2499 = vpop.f32.mrf.mxu0
      %2500 = vmatprep.mubr.f32.mxu0 0.0
      %v2501 = vand.u32 %v375, 4294901760
      %2502 = vmatmul.mubr.f32.gmra.mxu0 %v2501
      %v2503 = vpop.f32.mrf.mxu0
      %v2504 = vadd.f32 %v2197, %v2503
      %v2505 = vpop.f32.mrf.mxu0
      %2506 = vmatprep.mubr.f32.mxu0 0.0
      %v2507 = vand.u32 %v378, 4294901760
      %2508 = vmatmul.mubr.f32.gmra.mxu0 %v2507
      %v2509 = vpop.f32.mrf.mxu0
      %v2510 = vadd.f32 %v2203, %v2509
      %v2511 = vpop.f32.mrf.mxu0
      %2512 = vmatprep.mubr.f32.mxu0 0.0
      %v2513 = vand.u32 %v381, 4294901760
      %2514 = vmatmul.mubr.f32.gmra.mxu0 %v2513
      %v2515 = vpop.f32.mrf.mxu0
      %v2516 = vadd.f32 %v2209, %v2515
      %v2517 = vpop.f32.mrf.mxu0
      %2518 = vdwg.mxu0
      %2519 = vxpose.xlu0.b32.start [1/16] %v2282, 128
      %2520 = vxpose.xlu0.b32.cont [2/16] %v2288, 128
      %2521 = vxpose.xlu0.b32.cont [3/16] 0.0, 128
      %2522 = vxpose.xlu0.b32.cont [4/16] 0.0, 128
      %2523 = vxpose.xlu0.b32.cont [5/16] 0.0, 128
      %2524 = vxpose.xlu0.b32.cont [6/16] 0.0, 128
      %2525 = vxpose.xlu0.b32.cont [7/16] 0.0, 128
      %2526 = vxpose.xlu0.b32.cont [8/16] 0.0, 128
      %2527 = vxpose.xlu0.b32.cont [9/16] 0.0, 128
      %2528 = vxpose.xlu0.b32.cont [10/16] 0.0, 128
      %2529 = vxpose.xlu0.b32.cont [11/16] 0.0, 128
      %2530 = vxpose.xlu0.b32.cont [12/16] 0.0, 128
      %2531 = vxpose.xlu0.b32.cont [13/16] 0.0, 128
      %2532 = vxpose.xlu0.b32.cont [14/16] 0.0, 128
      %2533 = vxpose.xlu0.b32.cont [15/16] 0.0, 128
      %2534 = vxpose.xlu0.b32.end [16/16] 0.0, 128
      %v2535 = vpop.trf.xlu0
      %v2536 = vpop.trf.xlu0
      %v2537 = vpop.trf.xlu0
      %v2538 = vpop.trf.xlu0
      %v2539 = vpop.trf.xlu0
      %v2540 = vpop.trf.xlu0
      %v2541 = vpop.trf.xlu0
      %v2542 = vpop.trf.xlu0
      %v2543 = vpop.trf.xlu0
      %v2544 = vpop.trf.xlu0
      %v2545 = vpop.trf.xlu0
      %v2546 = vpop.trf.xlu0
      %v2547 = vpop.trf.xlu0
      %v2548 = vpop.trf.xlu0
      %v2549 = vpop.trf.xlu0
      %v2550 = vpop.trf.xlu0
      %2551 = vxpose.xlu0.b32.start [1/16] %v2294, 128
      %2552 = vxpose.xlu0.b32.cont [2/16] %v2300, 128
      %2553 = vxpose.xlu0.b32.cont [3/16] 0.0, 128
      %2554 = vxpose.xlu0.b32.cont [4/16] 0.0, 128
      %2555 = vxpose.xlu0.b32.cont [5/16] 0.0, 128
      %2556 = vxpose.xlu0.b32.cont [6/16] 0.0, 128
      %2557 = vxpose.xlu0.b32.cont [7/16] 0.0, 128
      %2558 = vxpose.xlu0.b32.cont [8/16] 0.0, 128
      %2559 = vxpose.xlu0.b32.cont [9/16] 0.0, 128
      %2560 = vxpose.xlu0.b32.cont [10/16] 0.0, 128
      %2561 = vxpose.xlu0.b32.cont [11/16] 0.0, 128
      %2562 = vxpose.xlu0.b32.cont [12/16] 0.0, 128
      %2563 = vxpose.xlu0.b32.cont [13/16] 0.0, 128
      %2564 = vxpose.xlu0.b32.cont [14/16] 0.0, 128
      %2565 = vxpose.xlu0.b32.cont [15/16] 0.0, 128
      %2566 = vxpose.xlu0.b32.end [16/16] 0.0, 128
      %v2567 = vpop.trf.xlu0
      %v2568 = vpop.trf.xlu0
      %v2569 = vpop.trf.xlu0
      %v2570 = vpop.trf.xlu0
      %v2571 = vpop.trf.xlu0
      %v2572 = vpop.trf.xlu0
      %v2573 = vpop.trf.xlu0
      %v2574 = vpop.trf.xlu0
      %v2575 = vpop.trf.xlu0
      %v2576 = vpop.trf.xlu0
      %v2577 = vpop.trf.xlu0
      %v2578 = vpop.trf.xlu0
      %v2579 = vpop.trf.xlu0
      %v2580 = vpop.trf.xlu0
      %v2581 = vpop.trf.xlu0
      %v2582 = vpop.trf.xlu0
      %2583 = vxpose.xlu0.b32.start [1/16] %v2306, 128
      %2584 = vxpose.xlu0.b32.cont [2/16] %v2312, 128
      %2585 = vxpose.xlu0.b32.cont [3/16] 0.0, 128
      %2586 = vxpose.xlu0.b32.cont [4/16] 0.0, 128
      %2587 = vxpose.xlu0.b32.cont [5/16] 0.0, 128
      %2588 = vxpose.xlu0.b32.cont [6/16] 0.0, 128
      %2589 = vxpose.xlu0.b32.cont [7/16] 0.0, 128
      %2590 = vxpose.xlu0.b32.cont [8/16] 0.0, 128
      %2591 = vxpose.xlu0.b32.cont [9/16] 0.0, 128
      %2592 = vxpose.xlu0.b32.cont [10/16] 0.0, 128
      %2593 = vxpose.xlu0.b32.cont [11/16] 0.0, 128
      %2594 = vxpose.xlu0.b32.cont [12/16] 0.0, 128
      %2595 = vxpose.xlu0.b32.cont [13/16] 0.0, 128
      %2596 = vxpose.xlu0.b32.cont [14/16] 0.0, 128
      %2597 = vxpose.xlu0.b32.cont [15/16] 0.0, 128
      %2598 = vxpose.xlu0.b32.end [16/16] 0.0, 128
      %v2599 = vpop.trf.xlu0
      %v2600 = vpop.trf.xlu0
      %v2601 = vpop.trf.xlu0
      %v2602 = vpop.trf.xlu0
      %v2603 = vpop.trf.xlu0
      %v2604 = vpop.trf.xlu0
      %v2605 = vpop.trf.xlu0
      %v2606 = vpop.trf.xlu0
      %v2607 = vpop.trf.xlu0
      %v2608 = vpop.trf.xlu0
      %v2609 = vpop.trf.xlu0
      %v2610 = vpop.trf.xlu0
      %v2611 = vpop.trf.xlu0
      %v2612 = vpop.trf.xlu0
      %v2613 = vpop.trf.xlu0
      %v2614 = vpop.trf.xlu0
      %2615 = vxpose.xlu0.b32.start [1/16] %v2318, 128
      %2616 = vxpose.xlu0.b32.cont [2/16] %v2324, 128
      %2617 = vxpose.xlu0.b32.cont [3/16] 0.0, 128
      %2618 = vxpose.xlu0.b32.cont [4/16] 0.0, 128
      %2619 = vxpose.xlu0.b32.cont [5/16] 0.0, 128
      %2620 = vxpose.xlu0.b32.cont [6/16] 0.0, 128
      %2621 = vxpose.xlu0.b32.cont [7/16] 0.0, 128
      %2622 = vxpose.xlu0.b32.cont [8/16] 0.0, 128
      %2623 = vxpose.xlu0.b32.cont [9/16] 0.0, 128
      %2624 = vxpose.xlu0.b32.cont [10/16] 0.0, 128
      %2625 = vxpose.xlu0.b32.cont [11/16] 0.0, 128
      %2626 = vxpose.xlu0.b32.cont [12/16] 0.0, 128
      %2627 = vxpose.xlu0.b32.cont [13/16] 0.0, 128
      %2628 = vxpose.xlu0.b32.cont [14/16] 0.0, 128
      %2629 = vxpose.xlu0.b32.cont [15/16] 0.0, 128
      %2630 = vxpose.xlu0.b32.end [16/16] 0.0, 128
      %v2631 = vpop.trf.xlu0
      %v2632 = vpop.trf.xlu0
      %v2633 = vpop.trf.xlu0
      %v2634 = vpop.trf.xlu0
      %v2635 = vpop.trf.xlu0
      %v2636 = vpop.trf.xlu0
      %v2637 = vpop.trf.xlu0
      %v2638 = vpop.trf.xlu0
      %v2639 = vpop.trf.xlu0
      %v2640 = vpop.trf.xlu0
      %v2641 = vpop.trf.xlu0
      %v2642 = vpop.trf.xlu0
      %v2643 = vpop.trf.xlu0
      %v2644 = vpop.trf.xlu0
      %v2645 = vpop.trf.xlu0
      %v2646 = vpop.trf.xlu0
      %2647 = vxpose.xlu0.b32.start [1/16] %v2330, 128
      %2648 = vxpose.xlu0.b32.cont [2/16] %v2336, 128
      %2649 = vxpose.xlu0.b32.cont [3/16] 0.0, 128
      %2650 = vxpose.xlu0.b32.cont [4/16] 0.0, 128
      %2651 = vxpose.xlu0.b32.cont [5/16] 0.0, 128
      %2652 = vxpose.xlu0.b32.cont [6/16] 0.0, 128
      %2653 = vxpose.xlu0.b32.cont [7/16] 0.0, 128
      %2654 = vxpose.xlu0.b32.cont [8/16] 0.0, 128
      %2655 = vxpose.xlu0.b32.cont [9/16] 0.0, 128
      %2656 = vxpose.xlu0.b32.cont [10/16] 0.0, 128
      %2657 = vxpose.xlu0.b32.cont [11/16] 0.0, 128
      %2658 = vxpose.xlu0.b32.cont [12/16] 0.0, 128
      %2659 = vxpose.xlu0.b32.cont [13/16] 0.0, 128
      %2660 = vxpose.xlu0.b32.cont [14/16] 0.0, 128
      %2661 = vxpose.xlu0.b32.cont [15/16] 0.0, 128
      %2662 = vxpose.xlu0.b32.end [16/16] 0.0, 128
      %v2663 = vpop.trf.xlu0
      %v2664 = vpop.trf.xlu0
      %v2665 = vpop.trf.xlu0
      %v2666 = vpop.trf.xlu0
      %v2667 = vpop.trf.xlu0
      %v2668 = vpop.trf.xlu0
      %v2669 = vpop.trf.xlu0
      %v2670 = vpop.trf.xlu0
      %v2671 = vpop.trf.xlu0
      %v2672 = vpop.trf.xlu0
      %v2673 = vpop.trf.xlu0
      %v2674 = vpop.trf.xlu0
      %v2675 = vpop.trf.xlu0
      %v2676 = vpop.trf.xlu0
      %v2677 = vpop.trf.xlu0
      %v2678 = vpop.trf.xlu0
      %2679 = vxpose.xlu0.b32.start [1/16] %v2342, 128
      %2680 = vxpose.xlu0.b32.cont [2/16] %v2348, 128
      %2681 = vxpose.xlu0.b32.cont [3/16] 0.0, 128
      %2682 = vxpose.xlu0.b32.cont [4/16] 0.0, 128
      %2683 = vxpose.xlu0.b32.cont [5/16] 0.0, 128
      %2684 = vxpose.xlu0.b32.cont [6/16] 0.0, 128
      %2685 = vxpose.xlu0.b32.cont [7/16] 0.0, 128
      %2686 = vxpose.xlu0.b32.cont [8/16] 0.0, 128
      %2687 = vxpose.xlu0.b32.cont [9/16] 0.0, 128
      %2688 = vxpose.xlu0.b32.cont [10/16] 0.0, 128
      %2689 = vxpose.xlu0.b32.cont [11/16] 0.0, 128
      %2690 = vxpose.xlu0.b32.cont [12/16] 0.0, 128
      %2691 = vxpose.xlu0.b32.cont [13/16] 0.0, 128
      %2692 = vxpose.xlu0.b32.cont [14/16] 0.0, 128
      %2693 = vxpose.xlu0.b32.cont [15/16] 0.0, 128
      %2694 = vxpose.xlu0.b32.end [16/16] 0.0, 128
      %v2695 = vpop.trf.xlu0
      %v2696 = vpop.trf.xlu0
      %v2697 = vpop.trf.xlu0
      %v2698 = vpop.trf.xlu0
      %v2699 = vpop.trf.xlu0
      %v2700 = vpop.trf.xlu0
      %v2701 = vpop.trf.xlu0
      %v2702 = vpop.trf.xlu0
      %v2703 = vpop.trf.xlu0
      %v2704 = vpop.trf.xlu0
      %v2705 = vpop.trf.xlu0
      %v2706 = vpop.trf.xlu0
      %v2707 = vpop.trf.xlu0
      %v2708 = vpop.trf.xlu0
      %v2709 = vpop.trf.xlu0
      %v2710 = vpop.trf.xlu0
      %2711 = vxpose.xlu0.b32.start [1/16] %v2354, 128
      %2712 = vxpose.xlu0.b32.cont [2/16] %v2360, 128
      %2713 = vxpose.xlu0.b32.cont [3/16] 0.0, 128
      %2714 = vxpose.xlu0.b32.cont [4/16] 0.0, 128
      %2715 = vxpose.xlu0.b32.cont [5/16] 0.0, 128
      %2716 = vxpose.xlu0.b32.cont [6/16] 0.0, 128
      %2717 = vxpose.xlu0.b32.cont [7/16] 0.0, 128
      %2718 = vxpose.xlu0.b32.cont [8/16] 0.0, 128
      %2719 = vxpose.xlu0.b32.cont [9/16] 0.0, 128
      %2720 = vxpose.xlu0.b32.cont [10/16] 0.0, 128
      %2721 = vxpose.xlu0.b32.cont [11/16] 0.0, 128
      %2722 = vxpose.xlu0.b32.cont [12/16] 0.0, 128
      %2723 = vxpose.xlu0.b32.cont [13/16] 0.0, 128
      %2724 = vxpose.xlu0.b32.cont [14/16] 0.0, 128
      %2725 = vxpose.xlu0.b32.cont [15/16] 0.0, 128
      %2726 = vxpose.xlu0.b32.end [16/16] 0.0, 128
      %v2727 = vpop.trf.xlu0
      %v2728 = vpop.trf.xlu0
      %v2729 = vpop.trf.xlu0
      %v2730 = vpop.trf.xlu0
      %v2731 = vpop.trf.xlu0
      %v2732 = vpop.trf.xlu0
      %v2733 = vpop.trf.xlu0
      %v2734 = vpop.trf.xlu0
      %v2735 = vpop.trf.xlu0
      %v2736 = vpop.trf.xlu0
      %v2737 = vpop.trf.xlu0
      %v2738 = vpop.trf.xlu0
      %v2739 = vpop.trf.xlu0
      %v2740 = vpop.trf.xlu0
      %v2741 = vpop.trf.xlu0
      %v2742 = vpop.trf.xlu0
      %2743 = vxpose.xlu0.b32.start [1/16] %v2366, 128
      %2744 = vxpose.xlu0.b32.cont [2/16] %v2372, 128
      %2745 = vxpose.xlu0.b32.cont [3/16] 0.0, 128
      %2746 = vxpose.xlu0.b32.cont [4/16] 0.0, 128
      %2747 = vxpose.xlu0.b32.cont [5/16] 0.0, 128
      %2748 = vxpose.xlu0.b32.cont [6/16] 0.0, 128
      %2749 = vxpose.xlu0.b32.cont [7/16] 0.0, 128
      %2750 = vxpose.xlu0.b32.cont [8/16] 0.0, 128
      %2751 = vxpose.xlu0.b32.cont [9/16] 0.0, 128
      %2752 = vxpose.xlu0.b32.cont [10/16] 0.0, 128
      %2753 = vxpose.xlu0.b32.cont [11/16] 0.0, 128
      %2754 = vxpose.xlu0.b32.cont [12/16] 0.0, 128
      %2755 = vxpose.xlu0.b32.cont [13/16] 0.0, 128
      %2756 = vxpose.xlu0.b32.cont [14/16] 0.0, 128
      %2757 = vxpose.xlu0.b32.cont [15/16] 0.0, 128
      %2758 = vxpose.xlu0.b32.end [16/16] 0.0, 128
      %v2759 = vpop.trf.xlu0
      %v2760 = vpop.trf.xlu0
      %v2761 = vpop.trf.xlu0
      %v2762 = vpop.trf.xlu0
      %v2763 = vpop.trf.xlu0
      %v2764 = vpop.trf.xlu0
      %v2765 = vpop.trf.xlu0
      %v2766 = vpop.trf.xlu0
      %v2767 = vpop.trf.xlu0
      %v2768 = vpop.trf.xlu0
      %v2769 = vpop.trf.xlu0
      %v2770 = vpop.trf.xlu0
      %v2771 = vpop.trf.xlu0
      %v2772 = vpop.trf.xlu0
      %v2773 = vpop.trf.xlu0
      %v2774 = vpop.trf.xlu0
      %2775 = vxpose.xlu0.b32.start [1/16] %v2378, 128
      %2776 = vxpose.xlu0.b32.cont [2/16] %v2384, 128
      %2777 = vxpose.xlu0.b32.cont [3/16] 0.0, 128
      %2778 = vxpose.xlu0.b32.cont [4/16] 0.0, 128
      %2779 = vxpose.xlu0.b32.cont [5/16] 0.0, 128
      %2780 = vxpose.xlu0.b32.cont [6/16] 0.0, 128
      %2781 = vxpose.xlu0.b32.cont [7/16] 0.0, 128
      %2782 = vxpose.xlu0.b32.cont [8/16] 0.0, 128
      %2783 = vxpose.xlu0.b32.cont [9/16] 0.0, 128
      %2784 = vxpose.xlu0.b32.cont [10/16] 0.0, 128
      %2785 = vxpose.xlu0.b32.cont [11/16] 0.0, 128
      %2786 = vxpose.xlu0.b32.cont [12/16] 0.0, 128
      %2787 = vxpose.xlu0.b32.cont [13/16] 0.0, 128
      %2788 = vxpose.xlu0.b32.cont [14/16] 0.0, 128
      %2789 = vxpose.xlu0.b32.cont [15/16] 0.0, 128
      %2790 = vxpose.xlu0.b32.end [16/16] 0.0, 128
      %v2791 = vpop.trf.xlu0
      %v2792 = vpop.trf.xlu0
      %v2793 = vpop.trf.xlu0
      %v2794 = vpop.trf.xlu0
      %v2795 = vpop.trf.xlu0
      %v2796 = vpop.trf.xlu0
      %v2797 = vpop.trf.xlu0
      %v2798 = vpop.trf.xlu0
      %v2799 = vpop.trf.xlu0
      %v2800 = vpop.trf.xlu0
      %v2801 = vpop.trf.xlu0
      %v2802 = vpop.trf.xlu0
      %v2803 = vpop.trf.xlu0
      %v2804 = vpop.trf.xlu0
      %v2805 = vpop.trf.xlu0
      %v2806 = vpop.trf.xlu0
      %2807 = vxpose.xlu0.b32.start [1/16] %v2390, 128
      %2808 = vxpose.xlu0.b32.cont [2/16] %v2396, 128
      %2809 = vxpose.xlu0.b32.cont [3/16] 0.0, 128
      %2810 = vxpose.xlu0.b32.cont [4/16] 0.0, 128
      %2811 = vxpose.xlu0.b32.cont [5/16] 0.0, 128
      %2812 = vxpose.xlu0.b32.cont [6/16] 0.0, 128
      %2813 = vxpose.xlu0.b32.cont [7/16] 0.0, 128
      %2814 = vxpose.xlu0.b32.cont [8/16] 0.0, 128
      %2815 = vxpose.xlu0.b32.cont [9/16] 0.0, 128
      %2816 = vxpose.xlu0.b32.cont [10/16] 0.0, 128
      %2817 = vxpose.xlu0.b32.cont [11/16] 0.0, 128
      %2818 = vxpose.xlu0.b32.cont [12/16] 0.0, 128
      %2819 = vxpose.xlu0.b32.cont [13/16] 0.0, 128
      %2820 = vxpose.xlu0.b32.cont [14/16] 0.0, 128
      %2821 = vxpose.xlu0.b32.cont [15/16] 0.0, 128
      %2822 = vxpose.xlu0.b32.end [16/16] 0.0, 128
      %v2823 = vpop.trf.xlu0
      %v2824 = vpop.trf.xlu0
      %v2825 = vpop.trf.xlu0
      %v2826 = vpop.trf.xlu0
      %v2827 = vpop.trf.xlu0
      %v2828 = vpop.trf.xlu0
      %v2829 = vpop.trf.xlu0
      %v2830 = vpop.trf.xlu0
      %v2831 = vpop.trf.xlu0
      %v2832 = vpop.trf.xlu0
      %v2833 = vpop.trf.xlu0
      %v2834 = vpop.trf.xlu0
      %v2835 = vpop.trf.xlu0
      %v2836 = vpop.trf.xlu0
      %v2837 = vpop.trf.xlu0
      %v2838 = vpop.trf.xlu0
      %2839 = vxpose.xlu0.b32.start [1/16] %v2402, 128
      %2840 = vxpose.xlu0.b32.cont [2/16] %v2408, 128
      %2841 = vxpose.xlu0.b32.cont [3/16] 0.0, 128
      %2842 = vxpose.xlu0.b32.cont [4/16] 0.0, 128
      %2843 = vxpose.xlu0.b32.cont [5/16] 0.0, 128
      %2844 = vxpose.xlu0.b32.cont [6/16] 0.0, 128
      %2845 = vxpose.xlu0.b32.cont [7/16] 0.0, 128
      %2846 = vxpose.xlu0.b32.cont [8/16] 0.0, 128
      %2847 = vxpose.xlu0.b32.cont [9/16] 0.0, 128
      %2848 = vxpose.xlu0.b32.cont [10/16] 0.0, 128
      %2849 = vxpose.xlu0.b32.cont [11/16] 0.0, 128
      %2850 = vxpose.xlu0.b32.cont [12/16] 0.0, 128
      %2851 = vxpose.xlu0.b32.cont [13/16] 0.0, 128
      %2852 = vxpose.xlu0.b32.cont [14/16] 0.0, 128
      %2853 = vxpose.xlu0.b32.cont [15/16] 0.0, 128
      %2854 = vxpose.xlu0.b32.end [16/16] 0.0, 128
      %v2855 = vpop.trf.xlu0
      %v2856 = vpop.trf.xlu0
      %v2857 = vpop.trf.xlu0
      %v2858 = vpop.trf.xlu0
      %v2859 = vpop.trf.xlu0
      %v2860 = vpop.trf.xlu0
      %v2861 = vpop.trf.xlu0
      %v2862 = vpop.trf.xlu0
      %v2863 = vpop.trf.xlu0
      %v2864 = vpop.trf.xlu0
      %v2865 = vpop.trf.xlu0
      %v2866 = vpop.trf.xlu0
      %v2867 = vpop.trf.xlu0
      %v2868 = vpop.trf.xlu0
      %v2869 = vpop.trf.xlu0
      %v2870 = vpop.trf.xlu0
      %2871 = vxpose.xlu0.b32.start [1/16] %v2414, 128
      %2872 = vxpose.xlu0.b32.cont [2/16] %v2420, 128
      %2873 = vxpose.xlu0.b32.cont [3/16] 0.0, 128
      %2874 = vxpose.xlu0.b32.cont [4/16] 0.0, 128
      %2875 = vxpose.xlu0.b32.cont [5/16] 0.0, 128
      %2876 = vxpose.xlu0.b32.cont [6/16] 0.0, 128
      %2877 = vxpose.xlu0.b32.cont [7/16] 0.0, 128
      %2878 = vxpose.xlu0.b32.cont [8/16] 0.0, 128
      %2879 = vxpose.xlu0.b32.cont [9/16] 0.0, 128
      %2880 = vxpose.xlu0.b32.cont [10/16] 0.0, 128
      %2881 = vxpose.xlu0.b32.cont [11/16] 0.0, 128
      %2882 = vxpose.xlu0.b32.cont [12/16] 0.0, 128
      %2883 = vxpose.xlu0.b32.cont [13/16] 0.0, 128
      %2884 = vxpose.xlu0.b32.cont [14/16] 0.0, 128
      %2885 = vxpose.xlu0.b32.cont [15/16] 0.0, 128
      %2886 = vxpose.xlu0.b32.end [16/16] 0.0, 128
      %v2887 = vpop.trf.xlu0
      %v2888 = vpop.trf.xlu0
      %v2889 = vpop.trf.xlu0
      %v2890 = vpop.trf.xlu0
      %v2891 = vpop.trf.xlu0
      %v2892 = vpop.trf.xlu0
      %v2893 = vpop.trf.xlu0
      %v2894 = vpop.trf.xlu0
      %v2895 = vpop.trf.xlu0
      %v2896 = vpop.trf.xlu0
      %v2897 = vpop.trf.xlu0
      %v2898 = vpop.trf.xlu0
      %v2899 = vpop.trf.xlu0
      %v2900 = vpop.trf.xlu0
      %v2901 = vpop.trf.xlu0
      %v2902 = vpop.trf.xlu0
      %2903 = vxpose.xlu0.b32.start [1/16] %v2426, 128
      %2904 = vxpose.xlu0.b32.cont [2/16] %v2432, 128
      %2905 = vxpose.xlu0.b32.cont [3/16] 0.0, 128
      %2906 = vxpose.xlu0.b32.cont [4/16] 0.0, 128
      %2907 = vxpose.xlu0.b32.cont [5/16] 0.0, 128
      %2908 = vxpose.xlu0.b32.cont [6/16] 0.0, 128
      %2909 = vxpose.xlu0.b32.cont [7/16] 0.0, 128
      %2910 = vxpose.xlu0.b32.cont [8/16] 0.0, 128
      %2911 = vxpose.xlu0.b32.cont [9/16] 0.0, 128
      %2912 = vxpose.xlu0.b32.cont [10/16] 0.0, 128
      %2913 = vxpose.xlu0.b32.cont [11/16] 0.0, 128
      %2914 = vxpose.xlu0.b32.cont [12/16] 0.0, 128
      %2915 = vxpose.xlu0.b32.cont [13/16] 0.0, 128
      %2916 = vxpose.xlu0.b32.cont [14/16] 0.0, 128
      %2917 = vxpose.xlu0.b32.cont [15/16] 0.0, 128
      %2918 = vxpose.xlu0.b32.end [16/16] 0.0, 128
      %v2919 = vpop.trf.xlu0
      %v2920 = vpop.trf.xlu0
      %v2921 = vpop.trf.xlu0
      %v2922 = vpop.trf.xlu0
      %v2923 = vpop.trf.xlu0
      %v2924 = vpop.trf.xlu0
      %v2925 = vpop.trf.xlu0
      %v2926 = vpop.trf.xlu0
      %v2927 = vpop.trf.xlu0
      %v2928 = vpop.trf.xlu0
      %v2929 = vpop.trf.xlu0
      %v2930 = vpop.trf.xlu0
      %v2931 = vpop.trf.xlu0
      %v2932 = vpop.trf.xlu0
      %v2933 = vpop.trf.xlu0
      %v2934 = vpop.trf.xlu0
      %2935 = vxpose.xlu0.b32.start [1/16] %v2438, 128
      %2936 = vxpose.xlu0.b32.cont [2/16] %v2444, 128
      %2937 = vxpose.xlu0.b32.cont [3/16] 0.0, 128
      %2938 = vxpose.xlu0.b32.cont [4/16] 0.0, 128
      %2939 = vxpose.xlu0.b32.cont [5/16] 0.0, 128
      %2940 = vxpose.xlu0.b32.cont [6/16] 0.0, 128
      %2941 = vxpose.xlu0.b32.cont [7/16] 0.0, 128
      %2942 = vxpose.xlu0.b32.cont [8/16] 0.0, 128
      %2943 = vxpose.xlu0.b32.cont [9/16] 0.0, 128
      %2944 = vxpose.xlu0.b32.cont [10/16] 0.0, 128
      %2945 = vxpose.xlu0.b32.cont [11/16] 0.0, 128
      %2946 = vxpose.xlu0.b32.cont [12/16] 0.0, 128
      %2947 = vxpose.xlu0.b32.cont [13/16] 0.0, 128
      %2948 = vxpose.xlu0.b32.cont [14/16] 0.0, 128
      %2949 = vxpose.xlu0.b32.cont [15/16] 0.0, 128
      %2950 = vxpose.xlu0.b32.end [16/16] 0.0, 128
      %v2951 = vpop.trf.xlu0
      %v2952 = vpop.trf.xlu0
      %v2953 = vpop.trf.xlu0
      %v2954 = vpop.trf.xlu0
      %v2955 = vpop.trf.xlu0
      %v2956 = vpop.trf.xlu0
      %v2957 = vpop.trf.xlu0
      %v2958 = vpop.trf.xlu0
      %v2959 = vpop.trf.xlu0
      %v2960 = vpop.trf.xlu0
      %v2961 = vpop.trf.xlu0
      %v2962 = vpop.trf.xlu0
      %v2963 = vpop.trf.xlu0
      %v2964 = vpop.trf.xlu0
      %v2965 = vpop.trf.xlu0
      %v2966 = vpop.trf.xlu0
      %2967 = vxpose.xlu0.b32.start [1/16] %v2450, 128
      %2968 = vxpose.xlu0.b32.cont [2/16] %v2456, 128
      %2969 = vxpose.xlu0.b32.cont [3/16] 0.0, 128
      %2970 = vxpose.xlu0.b32.cont [4/16] 0.0, 128
      %2971 = vxpose.xlu0.b32.cont [5/16] 0.0, 128
      %2972 = vxpose.xlu0.b32.cont [6/16] 0.0, 128
      %2973 = vxpose.xlu0.b32.cont [7/16] 0.0, 128
      %2974 = vxpose.xlu0.b32.cont [8/16] 0.0, 128
      %2975 = vxpose.xlu0.b32.cont [9/16] 0.0, 128
      %2976 = vxpose.xlu0.b32.cont [10/16] 0.0, 128
      %2977 = vxpose.xlu0.b32.cont [11/16] 0.0, 128
      %2978 = vxpose.xlu0.b32.cont [12/16] 0.0, 128
      %2979 = vxpose.xlu0.b32.cont [13/16] 0.0, 128
      %2980 = vxpose.xlu0.b32.cont [14/16] 0.0, 128
      %2981 = vxpose.xlu0.b32.cont [15/16] 0.0, 128
      %2982 = vxpose.xlu0.b32.end [16/16] 0.0, 128
      %v2983 = vpop.trf.xlu0
      %v2984 = vpop.trf.xlu0
      %v2985 = vpop.trf.xlu0
      %v2986 = vpop.trf.xlu0
      %v2987 = vpop.trf.xlu0
      %v2988 = vpop.trf.xlu0
      %v2989 = vpop.trf.xlu0
      %v2990 = vpop.trf.xlu0
      %v2991 = vpop.trf.xlu0
      %v2992 = vpop.trf.xlu0
      %v2993 = vpop.trf.xlu0
      %v2994 = vpop.trf.xlu0
      %v2995 = vpop.trf.xlu0
      %v2996 = vpop.trf.xlu0
      %v2997 = vpop.trf.xlu0
      %v2998 = vpop.trf.xlu0
      %2999 = vxpose.xlu0.b32.start [1/16] %v2462, 128
      %3000 = vxpose.xlu0.b32.cont [2/16] %v2468, 128
      %3001 = vxpose.xlu0.b32.cont [3/16] 0.0, 128
      %3002 = vxpose.xlu0.b32.cont [4/16] 0.0, 128
      %3003 = vxpose.xlu0.b32.cont [5/16] 0.0, 128
      %3004 = vxpose.xlu0.b32.cont [6/16] 0.0, 128
      %3005 = vxpose.xlu0.b32.cont [7/16] 0.0, 128
      %3006 = vxpose.xlu0.b32.cont [8/16] 0.0, 128
      %3007 = vxpose.xlu0.b32.cont [9/16] 0.0, 128
      %3008 = vxpose.xlu0.b32.cont [10/16] 0.0, 128
      %3009 = vxpose.xlu0.b32.cont [11/16] 0.0, 128
      %3010 = vxpose.xlu0.b32.cont [12/16] 0.0, 128
      %3011 = vxpose.xlu0.b32.cont [13/16] 0.0, 128
      %3012 = vxpose.xlu0.b32.cont [14/16] 0.0, 128
      %3013 = vxpose.xlu0.b32.cont [15/16] 0.0, 128
      %3014 = vxpose.xlu0.b32.end [16/16] 0.0, 128
      %v3015 = vpop.trf.xlu0
      %v3016 = vpop.trf.xlu0
      %v3017 = vpop.trf.xlu0
      %v3018 = vpop.trf.xlu0
      %v3019 = vpop.trf.xlu0
      %v3020 = vpop.trf.xlu0
      %v3021 = vpop.trf.xlu0
      %v3022 = vpop.trf.xlu0
      %v3023 = vpop.trf.xlu0
      %v3024 = vpop.trf.xlu0
      %v3025 = vpop.trf.xlu0
      %v3026 = vpop.trf.xlu0
      %v3027 = vpop.trf.xlu0
      %v3028 = vpop.trf.xlu0
      %v3029 = vpop.trf.xlu0
      %v3030 = vpop.trf.xlu0
      %3031 = vxpose.xlu0.b32.start [1/16] %v2474, 128
      %3032 = vxpose.xlu0.b32.cont [2/16] %v2480, 128
      %3033 = vxpose.xlu0.b32.cont [3/16] 0.0, 128
      %3034 = vxpose.xlu0.b32.cont [4/16] 0.0, 128
      %3035 = vxpose.xlu0.b32.cont [5/16] 0.0, 128
      %3036 = vxpose.xlu0.b32.cont [6/16] 0.0, 128
      %3037 = vxpose.xlu0.b32.cont [7/16] 0.0, 128
      %3038 = vxpose.xlu0.b32.cont [8/16] 0.0, 128
      %3039 = vxpose.xlu0.b32.cont [9/16] 0.0, 128
      %3040 = vxpose.xlu0.b32.cont [10/16] 0.0, 128
      %3041 = vxpose.xlu0.b32.cont [11/16] 0.0, 128
      %3042 = vxpose.xlu0.b32.cont [12/16] 0.0, 128
      %3043 = vxpose.xlu0.b32.cont [13/16] 0.0, 128
      %3044 = vxpose.xlu0.b32.cont [14/16] 0.0, 128
      %3045 = vxpose.xlu0.b32.cont [15/16] 0.0, 128
      %3046 = vxpose.xlu0.b32.end [16/16] 0.0, 128
      %v3047 = vpop.trf.xlu0
      %v3048 = vpop.trf.xlu0
      %v3049 = vpop.trf.xlu0
      %v3050 = vpop.trf.xlu0
      %v3051 = vpop.trf.xlu0
      %v3052 = vpop.trf.xlu0
      %v3053 = vpop.trf.xlu0
      %v3054 = vpop.trf.xlu0
      %v3055 = vpop.trf.xlu0
      %v3056 = vpop.trf.xlu0
      %v3057 = vpop.trf.xlu0
      %v3058 = vpop.trf.xlu0
      %v3059 = vpop.trf.xlu0
      %v3060 = vpop.trf.xlu0
      %v3061 = vpop.trf.xlu0
      %v3062 = vpop.trf.xlu0
      %3063 = vxpose.xlu0.b32.start [1/16] %v2486, 128
      %3064 = vxpose.xlu0.b32.cont [2/16] %v2492, 128
      %3065 = vxpose.xlu0.b32.cont [3/16] 0.0, 128
      %3066 = vxpose.xlu0.b32.cont [4/16] 0.0, 128
      %3067 = vxpose.xlu0.b32.cont [5/16] 0.0, 128
      %3068 = vxpose.xlu0.b32.cont [6/16] 0.0, 128
      %3069 = vxpose.xlu0.b32.cont [7/16] 0.0, 128
      %3070 = vxpose.xlu0.b32.cont [8/16] 0.0, 128
      %3071 = vxpose.xlu0.b32.cont [9/16] 0.0, 128
      %3072 = vxpose.xlu0.b32.cont [10/16] 0.0, 128
      %3073 = vxpose.xlu0.b32.cont [11/16] 0.0, 128
      %3074 = vxpose.xlu0.b32.cont [12/16] 0.0, 128
      %3075 = vxpose.xlu0.b32.cont [13/16] 0.0, 128
      %3076 = vxpose.xlu0.b32.cont [14/16] 0.0, 128
      %3077 = vxpose.xlu0.b32.cont [15/16] 0.0, 128
      %3078 = vxpose.xlu0.b32.end [16/16] 0.0, 128
      %v3079 = vpop.trf.xlu0
      %v3080 = vpop.trf.xlu0
      %v3081 = vpop.trf.xlu0
      %v3082 = vpop.trf.xlu0
      %v3083 = vpop.trf.xlu0
      %v3084 = vpop.trf.xlu0
      %v3085 = vpop.trf.xlu0
      %v3086 = vpop.trf.xlu0
      %v3087 = vpop.trf.xlu0
      %v3088 = vpop.trf.xlu0
      %v3089 = vpop.trf.xlu0
      %v3090 = vpop.trf.xlu0
      %v3091 = vpop.trf.xlu0
      %v3092 = vpop.trf.xlu0
      %v3093 = vpop.trf.xlu0
      %v3094 = vpop.trf.xlu0
      %3095 = vxpose.xlu0.b32.start [1/16] %v2498, 128
      %3096 = vxpose.xlu0.b32.cont [2/16] %v2504, 128
      %3097 = vxpose.xlu0.b32.cont [3/16] 0.0, 128
      %3098 = vxpose.xlu0.b32.cont [4/16] 0.0, 128
      %3099 = vxpose.xlu0.b32.cont [5/16] 0.0, 128
      %3100 = vxpose.xlu0.b32.cont [6/16] 0.0, 128
      %3101 = vxpose.xlu0.b32.cont [7/16] 0.0, 128
      %3102 = vxpose.xlu0.b32.cont [8/16] 0.0, 128
      %3103 = vxpose.xlu0.b32.cont [9/16] 0.0, 128
      %3104 = vxpose.xlu0.b32.cont [10/16] 0.0, 128
      %3105 = vxpose.xlu0.b32.cont [11/16] 0.0, 128
      %3106 = vxpose.xlu0.b32.cont [12/16] 0.0, 128
      %3107 = vxpose.xlu0.b32.cont [13/16] 0.0, 128
      %3108 = vxpose.xlu0.b32.cont [14/16] 0.0, 128
      %3109 = vxpose.xlu0.b32.cont [15/16] 0.0, 128
      %3110 = vxpose.xlu0.b32.end [16/16] 0.0, 128
      %v3111 = vpop.trf.xlu0
      %v3112 = vpop.trf.xlu0
      %v3113 = vpop.trf.xlu0
      %v3114 = vpop.trf.xlu0
      %v3115 = vpop.trf.xlu0
      %v3116 = vpop.trf.xlu0
      %v3117 = vpop.trf.xlu0
      %v3118 = vpop.trf.xlu0
      %v3119 = vpop.trf.xlu0
      %v3120 = vpop.trf.xlu0
      %v3121 = vpop.trf.xlu0
      %v3122 = vpop.trf.xlu0
      %v3123 = vpop.trf.xlu0
      %v3124 = vpop.trf.xlu0
      %v3125 = vpop.trf.xlu0
      %v3126 = vpop.trf.xlu0
      %3127 = vxpose.xlu0.b32.start [1/16] %v2510, 128
      %3128 = vxpose.xlu0.b32.cont [2/16] %v2516, 128
      %3129 = vxpose.xlu0.b32.cont [3/16] 0.0, 128
      %3130 = vxpose.xlu0.b32.cont [4/16] 0.0, 128
      %3131 = vxpose.xlu0.b32.cont [5/16] 0.0, 128
      %3132 = vxpose.xlu0.b32.cont [6/16] 0.0, 128
      %3133 = vxpose.xlu0.b32.cont [7/16] 0.0, 128
      %3134 = vxpose.xlu0.b32.cont [8/16] 0.0, 128
      %3135 = vxpose.xlu0.b32.cont [9/16] 0.0, 128
      %3136 = vxpose.xlu0.b32.cont [10/16] 0.0, 128
      %3137 = vxpose.xlu0.b32.cont [11/16] 0.0, 128
      %3138 = vxpose.xlu0.b32.cont [12/16] 0.0, 128
      %3139 = vxpose.xlu0.b32.cont [13/16] 0.0, 128
      %3140 = vxpose.xlu0.b32.cont [14/16] 0.0, 128
      %3141 = vxpose.xlu0.b32.cont [15/16] 0.0, 128
      %3142 = vxpose.xlu0.b32.end [16/16] 0.0, 128
      %v3143 = vpop.trf.xlu0
      %v3144 = vpop.trf.xlu0
      %v3145 = vpop.trf.xlu0
      %v3146 = vpop.trf.xlu0
      %v3147 = vpop.trf.xlu0
      %v3148 = vpop.trf.xlu0
      %v3149 = vpop.trf.xlu0
      %v3150 = vpop.trf.xlu0
      %v3151 = vpop.trf.xlu0
      %v3152 = vpop.trf.xlu0
      %v3153 = vpop.trf.xlu0
      %v3154 = vpop.trf.xlu0
      %v3155 = vpop.trf.xlu0
      %v3156 = vpop.trf.xlu0
      %v3157 = vpop.trf.xlu0
      %v3158 = vpop.trf.xlu0
      %v3160 = vsel %vm262, %v2535, 0
      %v3163 = vsel %vm262, %v2536, 0
      %v3166 = vsel %vm262, %v2567, 0
      %v3169 = vsel %vm262, %v2568, 0
      %v3172 = vsel %vm262, %v2599, 0
      %v3175 = vsel %vm262, %v2600, 0
      %v3178 = vsel %vm262, %v2631, 0
      %v3181 = vsel %vm262, %v2632, 0
      %v3184 = vsel %vm262, %v2663, 0
      %v3187 = vsel %vm262, %v2664, 0
      %v3190 = vsel %vm262, %v2695, 0
      %v3193 = vsel %vm262, %v2696, 0
      %v3196 = vsel %vm262, %v2727, 0
      %v3199 = vsel %vm262, %v2728, 0
      %v3202 = vsel %vm262, %v2759, 0
      %v3205 = vsel %vm262, %v2760, 0
      %v3208 = vsel %vm262, %v2791, 0
      %v3211 = vsel %vm262, %v2792, 0
      %v3214 = vsel %vm262, %v2823, 0
      %v3217 = vsel %vm262, %v2824, 0
      %v3220 = vsel %vm262, %v2855, 0
      %v3223 = vsel %vm262, %v2856, 0
      %v3226 = vsel %vm262, %v2887, 0
      %v3229 = vsel %vm262, %v2888, 0
      %v3232 = vsel %vm262, %v2919, 0
      %v3235 = vsel %vm262, %v2920, 0
      %v3238 = vsel %vm262, %v2951, 0
      %v3241 = vsel %vm262, %v2952, 0
      %v3244 = vsel %vm262, %v2983, 0
      %v3247 = vsel %vm262, %v2984, 0
      %v3250 = vsel %vm262, %v3015, 0
      %v3253 = vsel %vm262, %v3016, 0
      %v3256 = vsel %vm262, %v3047, 0
      %v3259 = vsel %vm262, %v3048, 0
      %v3262 = vsel %vm262, %v3079, 0
      %v3265 = vsel %vm262, %v3080, 0
      %v3268 = vsel %vm262, %v3111, 0
      %v3271 = vsel %vm262, %v3112, 0
      %v3274 = vsel %vm262, %v3143, 0
      %v3277 = vsel %vm262, %v3144, 0
      %3279 = vmatprep.subr.mxu0 0.0
      %3280 = vmatpush1.msra.mxu0 0.0
      %3281 = vmatprep.subr.mxu0 0.0
      %3282 = vmatpush1.msra.mxu0 0.0
      %3283 = vmatprep.subr.mxu0 0.0
      %3284 = vmatpush1.msra.mxu0 0.0
      %3285 = vmatprep.subr.mxu0 0.0
      %3286 = vmatpush1.msra.mxu0 0.0
      %3287 = vmatprep.subr.mxu0 0.0
      %3288 = vmatpush1.msra.mxu0 0.0
      %3289 = vmatprep.subr.mxu0 0.0
      %3290 = vmatpush1.msra.mxu0 0.0
      %3291 = vmatprep.subr.mxu0 0.0
      %3292 = vmatpush1.msra.mxu0 0.0
      %3293 = vmatprep.subr.mxu0 0.0
      %3294 = vmatpush1.msra.mxu0 0.0
      %3295 = vmatprep.subr.mxu0 0.0
      %3296 = vmatpush1.msra.mxu0 0.0
      %3297 = vmatprep.subr.mxu0 0.0
      %3298 = vmatpush1.msra.mxu0 0.0
      %3299 = vmatprep.subr.mxu0 0.0
      %3300 = vmatpush1.msra.mxu0 0.0
      %3301 = vmatprep.subr.mxu0 0.0
      %3302 = vmatpush1.msra.mxu0 0.0
      %3303 = vmatprep.subr.mxu0 0.0
      %3304 = vmatpush1.msra.mxu0 0.0
      %3305 = vmatprep.subr.mxu0 0.0
      %3306 = vmatpush1.msra.mxu0 0.0
      %3307 = vmatprep.subr.mxu0 0.0
      %v3308 = vand.u32 %v237, 4294901760
      %3309 = vmatpush1.msra.mxu0 %v3308
      %3310 = vmatprep.subr.mxu0 0.0
      %v3311 = vand.u32 %v236, 4294901760
      %3312 = vmatpush1.msra.mxu0 %v3311
      %3313 = vmatprep.subr.mxu0 0.0
      %3314 = vmatpush2.msra.mxu0 0.0
      %3315 = vmatprep.subr.mxu0 0.0
      %3316 = vmatpush2.msra.mxu0 0.0
      %3317 = vmatprep.subr.mxu0 0.0
      %3318 = vmatpush2.msra.mxu0 0.0
      %3319 = vmatprep.subr.mxu0 0.0
      %3320 = vmatpush2.msra.mxu0 0.0
      %3321 = vmatprep.subr.mxu0 0.0
      %3322 = vmatpush2.msra.mxu0 0.0
      %3323 = vmatprep.subr.mxu0 0.0
      %3324 = vmatpush2.msra.mxu0 0.0
      %3325 = vmatprep.subr.mxu0 0.0
      %3326 = vmatpush2.msra.mxu0 0.0
      %3327 = vmatprep.subr.mxu0 0.0
      %3328 = vmatpush2.msra.mxu0 0.0
      %3329 = vmatprep.subr.mxu0 0.0
      %3330 = vmatpush2.msra.mxu0 0.0
      %3331 = vmatprep.subr.mxu0 0.0
      %3332 = vmatpush2.msra.mxu0 0.0
      %3333 = vmatprep.subr.mxu0 0.0
      %3334 = vmatpush2.msra.mxu0 0.0
      %3335 = vmatprep.subr.mxu0 0.0
      %3336 = vmatpush2.msra.mxu0 0.0
      %3337 = vmatprep.subr.mxu0 0.0
      %3338 = vmatpush2.msra.mxu0 0.0
      %3339 = vmatprep.subr.mxu0 0.0
      %3340 = vmatpush2.msra.mxu0 0.0
      %3341 = vmatprep.subr.mxu0 0.0
      %3342 = vmatpush2.msra.mxu0 0.0
      %3343 = vmatprep.subr.mxu0 0.0
      %3344 = vmatpush2.msra.mxu0 0.0
      %3345 = vmatprep.mubr.f32.mxu0 0.0
      %v3346 = vand.u32 %v3160, 4294901760
      %v3347 = vsub.f32 %v3160, %v3346
      %v3348 = vand.u32 %v3347, 4294901760
      %v3349 = vsub.f32 %v3347, %v3348
      %v3350 = vand.u32 %v3349, 4294901760
      %3351 = vmatmul.mubr.f32.gmra.mxu0 %v3350
      %v3352 = vpop.f32.mrf.mxu0
      %v3353 = vadd.f32 0.0, %v3352
      %v3354 = vpop.f32.mrf.mxu0
      %3355 = vmatprep.mubr.f32.mxu0 0.0
      %v3356 = vand.u32 %v3163, 4294901760
      %v3357 = vsub.f32 %v3163, %v3356
      %v3358 = vand.u32 %v3357, 4294901760
      %v3359 = vsub.f32 %v3357, %v3358
      %v3360 = vand.u32 %v3359, 4294901760
      %3361 = vmatmul.mubr.f32.gmra.mxu0 %v3360
      %v3362 = vpop.f32.mrf.mxu0
      %v3363 = vadd.f32 0.0, %v3362
      %v3364 = vpop.f32.mrf.mxu0
      %3365 = vmatprep.mubr.f32.mxu0 0.0
      %v3366 = vand.u32 %v3166, 4294901760
      %v3367 = vsub.f32 %v3166, %v3366
      %v3368 = vand.u32 %v3367, 4294901760
      %v3369 = vsub.f32 %v3367, %v3368
      %v3370 = vand.u32 %v3369, 4294901760
      %3371 = vmatmul.mubr.f32.gmra.mxu0 %v3370
      %v3372 = vpop.f32.mrf.mxu0
      %v3373 = vadd.f32 0.0, %v3372
      %v3374 = vpop.f32.mrf.mxu0
      %3375 = vmatprep.mubr.f32.mxu0 0.0
      %v3376 = vand.u32 %v3169, 4294901760
      %v3377 = vsub.f32 %v3169, %v3376
      %v3378 = vand.u32 %v3377, 4294901760
      %v3379 = vsub.f32 %v3377, %v3378
      %v3380 = vand.u32 %v3379, 4294901760
      %3381 = vmatmul.mubr.f32.gmra.mxu0 %v3380
      %v3382 = vpop.f32.mrf.mxu0
      %v3383 = vadd.f32 0.0, %v3382
      %v3384 = vpop.f32.mrf.mxu0
      %3385 = vmatprep.mubr.f32.mxu0 0.0
      %v3386 = vand.u32 %v3172, 4294901760
      %v3387 = vsub.f32 %v3172, %v3386
      %v3388 = vand.u32 %v3387, 4294901760
      %v3389 = vsub.f32 %v3387, %v3388
      %v3390 = vand.u32 %v3389, 4294901760
      %3391 = vmatmul.mubr.f32.gmra.mxu0 %v3390
      %v3392 = vpop.f32.mrf.mxu0
      %v3393 = vadd.f32 0.0, %v3392
      %v3394 = vpop.f32.mrf.mxu0
      %3395 = vmatprep.mubr.f32.mxu0 0.0
      %v3396 = vand.u32 %v3175, 4294901760
      %v3397 = vsub.f32 %v3175, %v3396
      %v3398 = vand.u32 %v3397, 4294901760
      %v3399 = vsub.f32 %v3397, %v3398
      %v3400 = vand.u32 %v3399, 4294901760
      %3401 = vmatmul.mubr.f32.gmra.mxu0 %v3400
      %v3402 = vpop.f32.mrf.mxu0
      %v3403 = vadd.f32 0.0, %v3402
      %v3404 = vpop.f32.mrf.mxu0
      %3405 = vmatprep.mubr.f32.mxu0 0.0
      %v3406 = vand.u32 %v3178, 4294901760
      %v3407 = vsub.f32 %v3178, %v3406
      %v3408 = vand.u32 %v3407, 4294901760
      %v3409 = vsub.f32 %v3407, %v3408
      %v3410 = vand.u32 %v3409, 4294901760
      %3411 = vmatmul.mubr.f32.gmra.mxu0 %v3410
      %v3412 = vpop.f32.mrf.mxu0
      %v3413 = vadd.f32 0.0, %v3412
      %v3414 = vpop.f32.mrf.mxu0
      %3415 = vmatprep.mubr.f32.mxu0 0.0
      %v3416 = vand.u32 %v3181, 4294901760
      %v3417 = vsub.f32 %v3181, %v3416
      %v3418 = vand.u32 %v3417, 4294901760
      %v3419 = vsub.f32 %v3417, %v3418
      %v3420 = vand.u32 %v3419, 4294901760
      %3421 = vmatmul.mubr.f32.gmra.mxu0 %v3420
      %v3422 = vpop.f32.mrf.mxu0
      %v3423 = vadd.f32 0.0, %v3422
      %v3424 = vpop.f32.mrf.mxu0
      %3425 = vmatprep.mubr.f32.mxu0 0.0
      %v3426 = vand.u32 %v3184, 4294901760
      %v3427 = vsub.f32 %v3184, %v3426
      %v3428 = vand.u32 %v3427, 4294901760
      %v3429 = vsub.f32 %v3427, %v3428
      %v3430 = vand.u32 %v3429, 4294901760
      %3431 = vmatmul.mubr.f32.gmra.mxu0 %v3430
      %v3432 = vpop.f32.mrf.mxu0
      %v3433 = vadd.f32 0.0, %v3432
      %v3434 = vpop.f32.mrf.mxu0
      %3435 = vmatprep.mubr.f32.mxu0 0.0
      %v3436 = vand.u32 %v3187, 4294901760
      %v3437 = vsub.f32 %v3187, %v3436
      %v3438 = vand.u32 %v3437, 4294901760
      %v3439 = vsub.f32 %v3437, %v3438
      %v3440 = vand.u32 %v3439, 4294901760
      %3441 = vmatmul.mubr.f32.gmra.mxu0 %v3440
      %v3442 = vpop.f32.mrf.mxu0
      %v3443 = vadd.f32 0.0, %v3442
      %v3444 = vpop.f32.mrf.mxu0
      %3445 = vmatprep.mubr.f32.mxu0 0.0
      %v3446 = vand.u32 %v3190, 4294901760
      %v3447 = vsub.f32 %v3190, %v3446
      %v3448 = vand.u32 %v3447, 4294901760
      %v3449 = vsub.f32 %v3447, %v3448
      %v3450 = vand.u32 %v3449, 4294901760
      %3451 = vmatmul.mubr.f32.gmra.mxu0 %v3450
      %v3452 = vpop.f32.mrf.mxu0
      %v3453 = vadd.f32 0.0, %v3452
      %v3454 = vpop.f32.mrf.mxu0
      %3455 = vmatprep.mubr.f32.mxu0 0.0
      %v3456 = vand.u32 %v3193, 4294901760
      %v3457 = vsub.f32 %v3193, %v3456
      %v3458 = vand.u32 %v3457, 4294901760
      %v3459 = vsub.f32 %v3457, %v3458
      %v3460 = vand.u32 %v3459, 4294901760
      %3461 = vmatmul.mubr.f32.gmra.mxu0 %v3460
      %v3462 = vpop.f32.mrf.mxu0
      %v3463 = vadd.f32 0.0, %v3462
      %v3464 = vpop.f32.mrf.mxu0
      %3465 = vmatprep.mubr.f32.mxu0 0.0
      %v3466 = vand.u32 %v3196, 4294901760
      %v3467 = vsub.f32 %v3196, %v3466
      %v3468 = vand.u32 %v3467, 4294901760
      %v3469 = vsub.f32 %v3467, %v3468
      %v3470 = vand.u32 %v3469, 4294901760
      %3471 = vmatmul.mubr.f32.gmra.mxu0 %v3470
      %v3472 = vpop.f32.mrf.mxu0
      %v3473 = vadd.f32 0.0, %v3472
      %v3474 = vpop.f32.mrf.mxu0
      %3475 = vmatprep.mubr.f32.mxu0 0.0
      %v3476 = vand.u32 %v3199, 4294901760
      %v3477 = vsub.f32 %v3199, %v3476
      %v3478 = vand.u32 %v3477, 4294901760
      %v3479 = vsub.f32 %v3477, %v3478
      %v3480 = vand.u32 %v3479, 4294901760
      %3481 = vmatmul.mubr.f32.gmra.mxu0 %v3480
      %v3482 = vpop.f32.mrf.mxu0
      %v3483 = vadd.f32 0.0, %v3482
      %v3484 = vpop.f32.mrf.mxu0
      %3485 = vmatprep.mubr.f32.mxu0 0.0
      %v3486 = vand.u32 %v3202, 4294901760
      %v3487 = vsub.f32 %v3202, %v3486
      %v3488 = vand.u32 %v3487, 4294901760
      %v3489 = vsub.f32 %v3487, %v3488
      %v3490 = vand.u32 %v3489, 4294901760
      %3491 = vmatmul.mubr.f32.gmra.mxu0 %v3490
      %v3492 = vpop.f32.mrf.mxu0
      %v3493 = vadd.f32 0.0, %v3492
      %v3494 = vpop.f32.mrf.mxu0
      %3495 = vmatprep.mubr.f32.mxu0 0.0
      %v3496 = vand.u32 %v3205, 4294901760
      %v3497 = vsub.f32 %v3205, %v3496
      %v3498 = vand.u32 %v3497, 4294901760
      %v3499 = vsub.f32 %v3497, %v3498
      %v3500 = vand.u32 %v3499, 4294901760
      %3501 = vmatmul.mubr.f32.gmra.mxu0 %v3500
      %v3502 = vpop.f32.mrf.mxu0
      %v3503 = vadd.f32 0.0, %v3502
      %v3504 = vpop.f32.mrf.mxu0
      %3505 = vmatprep.mubr.f32.mxu0 0.0
      %v3506 = vand.u32 %v3208, 4294901760
      %v3507 = vsub.f32 %v3208, %v3506
      %v3508 = vand.u32 %v3507, 4294901760
      %v3509 = vsub.f32 %v3507, %v3508
      %v3510 = vand.u32 %v3509, 4294901760
      %3511 = vmatmul.mubr.f32.gmra.mxu0 %v3510
      %v3512 = vpop.f32.mrf.mxu0
      %v3513 = vadd.f32 0.0, %v3512
      %v3514 = vpop.f32.mrf.mxu0
      %3515 = vmatprep.mubr.f32.mxu0 0.0
      %v3516 = vand.u32 %v3211, 4294901760
      %v3517 = vsub.f32 %v3211, %v3516
      %v3518 = vand.u32 %v3517, 4294901760
      %v3519 = vsub.f32 %v3517, %v3518
      %v3520 = vand.u32 %v3519, 4294901760
      %3521 = vmatmul.mubr.f32.gmra.mxu0 %v3520
      %v3522 = vpop.f32.mrf.mxu0
      %v3523 = vadd.f32 0.0, %v3522
      %v3524 = vpop.f32.mrf.mxu0
      %3525 = vmatprep.mubr.f32.mxu0 0.0
      %v3526 = vand.u32 %v3214, 4294901760
      %v3527 = vsub.f32 %v3214, %v3526
      %v3528 = vand.u32 %v3527, 4294901760
      %v3529 = vsub.f32 %v3527, %v3528
      %v3530 = vand.u32 %v3529, 4294901760
      %3531 = vmatmul.mubr.f32.gmra.mxu0 %v3530
      %v3532 = vpop.f32.mrf.mxu0
      %v3533 = vadd.f32 0.0, %v3532
      %v3534 = vpop.f32.mrf.mxu0
      %3535 = vmatprep.mubr.f32.mxu0 0.0
      %v3536 = vand.u32 %v3217, 4294901760
      %v3537 = vsub.f32 %v3217, %v3536
      %v3538 = vand.u32 %v3537, 4294901760
      %v3539 = vsub.f32 %v3537, %v3538
      %v3540 = vand.u32 %v3539, 4294901760
      %3541 = vmatmul.mubr.f32.gmra.mxu0 %v3540
      %v3542 = vpop.f32.mrf.mxu0
      %v3543 = vadd.f32 0.0, %v3542
      %v3544 = vpop.f32.mrf.mxu0
      %3545 = vmatprep.mubr.f32.mxu0 0.0
      %v3546 = vand.u32 %v3220, 4294901760
      %v3547 = vsub.f32 %v3220, %v3546
      %v3548 = vand.u32 %v3547, 4294901760
      %v3549 = vsub.f32 %v3547, %v3548
      %v3550 = vand.u32 %v3549, 4294901760
      %3551 = vmatmul.mubr.f32.gmra.mxu0 %v3550
      %v3552 = vpop.f32.mrf.mxu0
      %v3553 = vadd.f32 0.0, %v3552
      %v3554 = vpop.f32.mrf.mxu0
      %3555 = vmatprep.mubr.f32.mxu0 0.0
      %v3556 = vand.u32 %v3223, 4294901760
      %v3557 = vsub.f32 %v3223, %v3556
      %v3558 = vand.u32 %v3557, 4294901760
      %v3559 = vsub.f32 %v3557, %v3558
      %v3560 = vand.u32 %v3559, 4294901760
      %3561 = vmatmul.mubr.f32.gmra.mxu0 %v3560
      %v3562 = vpop.f32.mrf.mxu0
      %v3563 = vadd.f32 0.0, %v3562
      %v3564 = vpop.f32.mrf.mxu0
      %3565 = vmatprep.mubr.f32.mxu0 0.0
      %v3566 = vand.u32 %v3226, 4294901760
      %v3567 = vsub.f32 %v3226, %v3566
      %v3568 = vand.u32 %v3567, 4294901760
      %v3569 = vsub.f32 %v3567, %v3568
      %v3570 = vand.u32 %v3569, 4294901760
      %3571 = vmatmul.mubr.f32.gmra.mxu0 %v3570
      %v3572 = vpop.f32.mrf.mxu0
      %v3573 = vadd.f32 0.0, %v3572
      %v3574 = vpop.f32.mrf.mxu0
      %3575 = vmatprep.mubr.f32.mxu0 0.0
      %v3576 = vand.u32 %v3229, 4294901760
      %v3577 = vsub.f32 %v3229, %v3576
      %v3578 = vand.u32 %v3577, 4294901760
      %v3579 = vsub.f32 %v3577, %v3578
      %v3580 = vand.u32 %v3579, 4294901760
      %3581 = vmatmul.mubr.f32.gmra.mxu0 %v3580
      %v3582 = vpop.f32.mrf.mxu0
      %v3583 = vadd.f32 0.0, %v3582
      %v3584 = vpop.f32.mrf.mxu0
      %3585 = vmatprep.mubr.f32.mxu0 0.0
      %v3586 = vand.u32 %v3232, 4294901760
      %v3587 = vsub.f32 %v3232, %v3586
      %v3588 = vand.u32 %v3587, 4294901760
      %v3589 = vsub.f32 %v3587, %v3588
      %v3590 = vand.u32 %v3589, 4294901760
      %3591 = vmatmul.mubr.f32.gmra.mxu0 %v3590
      %v3592 = vpop.f32.mrf.mxu0
      %v3593 = vadd.f32 0.0, %v3592
      %v3594 = vpop.f32.mrf.mxu0
      %3595 = vmatprep.mubr.f32.mxu0 0.0
      %v3596 = vand.u32 %v3235, 4294901760
      %v3597 = vsub.f32 %v3235, %v3596
      %v3598 = vand.u32 %v3597, 4294901760
      %v3599 = vsub.f32 %v3597, %v3598
      %v3600 = vand.u32 %v3599, 4294901760
      %3601 = vmatmul.mubr.f32.gmra.mxu0 %v3600
      %v3602 = vpop.f32.mrf.mxu0
      %v3603 = vadd.f32 0.0, %v3602
      %v3604 = vpop.f32.mrf.mxu0
      %3605 = vmatprep.mubr.f32.mxu0 0.0
      %v3606 = vand.u32 %v3238, 4294901760
      %v3607 = vsub.f32 %v3238, %v3606
      %v3608 = vand.u32 %v3607, 4294901760
      %v3609 = vsub.f32 %v3607, %v3608
      %v3610 = vand.u32 %v3609, 4294901760
      %3611 = vmatmul.mubr.f32.gmra.mxu0 %v3610
      %v3612 = vpop.f32.mrf.mxu0
      %v3613 = vadd.f32 0.0, %v3612
      %v3614 = vpop.f32.mrf.mxu0
      %3615 = vmatprep.mubr.f32.mxu0 0.0
      %v3616 = vand.u32 %v3241, 4294901760
      %v3617 = vsub.f32 %v3241, %v3616
      %v3618 = vand.u32 %v3617, 4294901760
      %v3619 = vsub.f32 %v3617, %v3618
      %v3620 = vand.u32 %v3619, 4294901760
      %3621 = vmatmul.mubr.f32.gmra.mxu0 %v3620
      %v3622 = vpop.f32.mrf.mxu0
      %v3623 = vadd.f32 0.0, %v3622
      %v3624 = vpop.f32.mrf.mxu0
      %3625 = vmatprep.mubr.f32.mxu0 0.0
      %v3626 = vand.u32 %v3244, 4294901760
      %v3627 = vsub.f32 %v3244, %v3626
      %v3628 = vand.u32 %v3627, 4294901760
      %v3629 = vsub.f32 %v3627, %v3628
      %v3630 = vand.u32 %v3629, 4294901760
      %3631 = vmatmul.mubr.f32.gmra.mxu0 %v3630
      %v3632 = vpop.f32.mrf.mxu0
      %v3633 = vadd.f32 0.0, %v3632
      %v3634 = vpop.f32.mrf.mxu0
      %3635 = vmatprep.mubr.f32.mxu0 0.0
      %v3636 = vand.u32 %v3247, 4294901760
      %v3637 = vsub.f32 %v3247, %v3636
      %v3638 = vand.u32 %v3637, 4294901760
      %v3639 = vsub.f32 %v3637, %v3638
      %v3640 = vand.u32 %v3639, 4294901760
      %3641 = vmatmul.mubr.f32.gmra.mxu0 %v3640
      %v3642 = vpop.f32.mrf.mxu0
      %v3643 = vadd.f32 0.0, %v3642
      %v3644 = vpop.f32.mrf.mxu0
      %3645 = vmatprep.mubr.f32.mxu0 0.0
      %v3646 = vand.u32 %v3250, 4294901760
      %v3647 = vsub.f32 %v3250, %v3646
      %v3648 = vand.u32 %v3647, 4294901760
      %v3649 = vsub.f32 %v3647, %v3648
      %v3650 = vand.u32 %v3649, 4294901760
      %3651 = vmatmul.mubr.f32.gmra.mxu0 %v3650
      %v3652 = vpop.f32.mrf.mxu0
      %v3653 = vadd.f32 0.0, %v3652
      %v3654 = vpop.f32.mrf.mxu0
      %3655 = vmatprep.mubr.f32.mxu0 0.0
      %v3656 = vand.u32 %v3253, 4294901760
      %v3657 = vsub.f32 %v3253, %v3656
      %v3658 = vand.u32 %v3657, 4294901760
      %v3659 = vsub.f32 %v3657, %v3658
      %v3660 = vand.u32 %v3659, 4294901760
      %3661 = vmatmul.mubr.f32.gmra.mxu0 %v3660
      %v3662 = vpop.f32.mrf.mxu0
      %v3663 = vadd.f32 0.0, %v3662
      %v3664 = vpop.f32.mrf.mxu0
      %3665 = vmatprep.mubr.f32.mxu0 0.0
      %v3666 = vand.u32 %v3256, 4294901760
      %v3667 = vsub.f32 %v3256, %v3666
      %v3668 = vand.u32 %v3667, 4294901760
      %v3669 = vsub.f32 %v3667, %v3668
      %v3670 = vand.u32 %v3669, 4294901760
      %3671 = vmatmul.mubr.f32.gmra.mxu0 %v3670
      %v3672 = vpop.f32.mrf.mxu0
      %v3673 = vadd.f32 0.0, %v3672
      %v3674 = vpop.f32.mrf.mxu0
      %3675 = vmatprep.mubr.f32.mxu0 0.0
      %v3676 = vand.u32 %v3259, 4294901760
      %v3677 = vsub.f32 %v3259, %v3676
      %v3678 = vand.u32 %v3677, 4294901760
      %v3679 = vsub.f32 %v3677, %v3678
      %v3680 = vand.u32 %v3679, 4294901760
      %3681 = vmatmul.mubr.f32.gmra.mxu0 %v3680
      %v3682 = vpop.f32.mrf.mxu0
      %v3683 = vadd.f32 0.0, %v3682
      %v3684 = vpop.f32.mrf.mxu0
      %3685 = vmatprep.mubr.f32.mxu0 0.0
      %v3686 = vand.u32 %v3262, 4294901760
      %v3687 = vsub.f32 %v3262, %v3686
      %v3688 = vand.u32 %v3687, 4294901760
      %v3689 = vsub.f32 %v3687, %v3688
      %v3690 = vand.u32 %v3689, 4294901760
      %3691 = vmatmul.mubr.f32.gmra.mxu0 %v3690
      %v3692 = vpop.f32.mrf.mxu0
      %v3693 = vadd.f32 0.0, %v3692
      %v3694 = vpop.f32.mrf.mxu0
      %3695 = vmatprep.mubr.f32.mxu0 0.0
      %v3696 = vand.u32 %v3265, 4294901760
      %v3697 = vsub.f32 %v3265, %v3696
      %v3698 = vand.u32 %v3697, 4294901760
      %v3699 = vsub.f32 %v3697, %v3698
      %v3700 = vand.u32 %v3699, 4294901760
      %3701 = vmatmul.mubr.f32.gmra.mxu0 %v3700
      %v3702 = vpop.f32.mrf.mxu0
      %v3703 = vadd.f32 0.0, %v3702
      %v3704 = vpop.f32.mrf.mxu0
      %3705 = vmatprep.mubr.f32.mxu0 0.0
      %v3706 = vand.u32 %v3268, 4294901760
      %v3707 = vsub.f32 %v3268, %v3706
      %v3708 = vand.u32 %v3707, 4294901760
      %v3709 = vsub.f32 %v3707, %v3708
      %v3710 = vand.u32 %v3709, 4294901760
      %3711 = vmatmul.mubr.f32.gmra.mxu0 %v3710
      %v3712 = vpop.f32.mrf.mxu0
      %v3713 = vadd.f32 0.0, %v3712
      %v3714 = vpop.f32.mrf.mxu0
      %3715 = vmatprep.mubr.f32.mxu0 0.0
      %v3716 = vand.u32 %v3271, 4294901760
      %v3717 = vsub.f32 %v3271, %v3716
      %v3718 = vand.u32 %v3717, 4294901760
      %v3719 = vsub.f32 %v3717, %v3718
      %v3720 = vand.u32 %v3719, 4294901760
      %3721 = vmatmul.mubr.f32.gmra.mxu0 %v3720
      %v3722 = vpop.f32.mrf.mxu0
      %v3723 = vadd.f32 0.0, %v3722
      %v3724 = vpop.f32.mrf.mxu0
      %3725 = vmatprep.mubr.f32.mxu0 0.0
      %v3726 = vand.u32 %v3274, 4294901760
      %v3727 = vsub.f32 %v3274, %v3726
      %v3728 = vand.u32 %v3727, 4294901760
      %v3729 = vsub.f32 %v3727, %v3728
      %v3730 = vand.u32 %v3729, 4294901760
      %3731 = vmatmul.mubr.f32.gmra.mxu0 %v3730
      %v3732 = vpop.f32.mrf.mxu0
      %v3733 = vadd.f32 0.0, %v3732
      %v3734 = vpop.f32.mrf.mxu0
      %3735 = vmatprep.mubr.f32.mxu0 0.0
      %v3736 = vand.u32 %v3277, 4294901760
      %v3737 = vsub.f32 %v3277, %v3736
      %v3738 = vand.u32 %v3737, 4294901760
      %v3739 = vsub.f32 %v3737, %v3738
      %v3740 = vand.u32 %v3739, 4294901760
      %3741 = vmatmul.mubr.f32.gmra.mxu0 %v3740
      %v3742 = vpop.f32.mrf.mxu0
      %v3743 = vadd.f32 0.0, %v3742
      %v3744 = vpop.f32.mrf.mxu0
      %3745 = vdwg.mxu0
      %3746 = vmatprep.subr.mxu0 0.0
      %3747 = vmatpush1.msra.mxu0 0.0
      %3748 = vmatprep.subr.mxu0 0.0
      %3749 = vmatpush1.msra.mxu0 0.0
      %3750 = vmatprep.subr.mxu0 0.0
      %3751 = vmatpush1.msra.mxu0 0.0
      %3752 = vmatprep.subr.mxu0 0.0
      %3753 = vmatpush1.msra.mxu0 0.0
      %3754 = vmatprep.subr.mxu0 0.0
      %3755 = vmatpush1.msra.mxu0 0.0
      %3756 = vmatprep.subr.mxu0 0.0
      %3757 = vmatpush1.msra.mxu0 0.0
      %3758 = vmatprep.subr.mxu0 0.0
      %3759 = vmatpush1.msra.mxu0 0.0
      %3760 = vmatprep.subr.mxu0 0.0
      %3761 = vmatpush1.msra.mxu0 0.0
      %3762 = vmatprep.subr.mxu0 0.0
      %3763 = vmatpush1.msra.mxu0 0.0
      %3764 = vmatprep.subr.mxu0 0.0
      %3765 = vmatpush1.msra.mxu0 0.0
      %3766 = vmatprep.subr.mxu0 0.0
      %3767 = vmatpush1.msra.mxu0 0.0
      %3768 = vmatprep.subr.mxu0 0.0
      %3769 = vmatpush1.msra.mxu0 0.0
      %3770 = vmatprep.subr.mxu0 0.0
      %3771 = vmatpush1.msra.mxu0 0.0
      %3772 = vmatprep.subr.mxu0 0.0
      %3773 = vmatpush1.msra.mxu0 0.0
      %3774 = vmatprep.subr.mxu0 0.0
      %v3775 = vand.u32 %v237, 4294901760
      %v3776 = vsub.f32 %v237, %v3775
      %v3777 = vand.u32 %v3776, 4294901760
      %v3778 = vsub.f32 %v3776, %v3777
      %v3779 = vand.u32 %v3778, 4294901760
      %3780 = vmatpush1.msra.mxu0 %v3779
      %3781 = vmatprep.subr.mxu0 0.0
      %v3782 = vand.u32 %v236, 4294901760
      %v3783 = vsub.f32 %v236, %v3782
      %v3784 = vand.u32 %v3783, 4294901760
      %v3785 = vsub.f32 %v3783, %v3784
      %v3786 = vand.u32 %v3785, 4294901760
      %3787 = vmatpush1.msra.mxu0 %v3786
      %3788 = vmatprep.subr.mxu0 0.0
      %3789 = vmatpush2.msra.mxu0 0.0
      %3790 = vmatprep.subr.mxu0 0.0
      %3791 = vmatpush2.msra.mxu0 0.0
      %3792 = vmatprep.subr.mxu0 0.0
      %3793 = vmatpush2.msra.mxu0 0.0
      %3794 = vmatprep.subr.mxu0 0.0
      %3795 = vmatpush2.msra.mxu0 0.0
      %3796 = vmatprep.subr.mxu0 0.0
      %3797 = vmatpush2.msra.mxu0 0.0
      %3798 = vmatprep.subr.mxu0 0.0
      %3799 = vmatpush2.msra.mxu0 0.0
      %3800 = vmatprep.subr.mxu0 0.0
      %3801 = vmatpush2.msra.mxu0 0.0
      %3802 = vmatprep.subr.mxu0 0.0
      %3803 = vmatpush2.msra.mxu0 0.0
      %3804 = vmatprep.subr.mxu0 0.0
      %3805 = vmatpush2.msra.mxu0 0.0
      %3806 = vmatprep.subr.mxu0 0.0
      %3807 = vmatpush2.msra.mxu0 0.0
      %3808 = vmatprep.subr.mxu0 0.0
      %3809 = vmatpush2.msra.mxu0 0.0
      %3810 = vmatprep.subr.mxu0 0.0
      %3811 = vmatpush2.msra.mxu0 0.0
      %3812 = vmatprep.subr.mxu0 0.0
      %3813 = vmatpush2.msra.mxu0 0.0
      %3814 = vmatprep.subr.mxu0 0.0
      %3815 = vmatpush2.msra.mxu0 0.0
      %3816 = vmatprep.subr.mxu0 0.0
      %3817 = vmatpush2.msra.mxu0 0.0
      %3818 = vmatprep.subr.mxu0 0.0
      %3819 = vmatpush2.msra.mxu0 0.0
      %3820 = vmatprep.mubr.f32.mxu0 0.0
      %v3821 = vand.u32 %v3160, 4294901760
      %3822 = vmatmul.mubr.f32.gmra.mxu0 %v3821
      %v3823 = vpop.f32.mrf.mxu0
      %v3824 = vadd.f32 %v3353, %v3823
      %v3825 = vpop.f32.mrf.mxu0
      %3826 = vmatprep.mubr.f32.mxu0 0.0
      %v3827 = vand.u32 %v3163, 4294901760
      %3828 = vmatmul.mubr.f32.gmra.mxu0 %v3827
      %v3829 = vpop.f32.mrf.mxu0
      %v3830 = vadd.f32 %v3363, %v3829
      %v3831 = vpop.f32.mrf.mxu0
      %3832 = vmatprep.mubr.f32.mxu0 0.0
      %v3833 = vand.u32 %v3166, 4294901760
      %3834 = vmatmul.mubr.f32.gmra.mxu0 %v3833
      %v3835 = vpop.f32.mrf.mxu0
      %v3836 = vadd.f32 %v3373, %v3835
      %v3837 = vpop.f32.mrf.mxu0
      %3838 = vmatprep.mubr.f32.mxu0 0.0
      %v3839 = vand.u32 %v3169, 4294901760
      %3840 = vmatmul.mubr.f32.gmra.mxu0 %v3839
      %v3841 = vpop.f32.mrf.mxu0
      %v3842 = vadd.f32 %v3383, %v3841
      %v3843 = vpop.f32.mrf.mxu0
      %3844 = vmatprep.mubr.f32.mxu0 0.0
      %v3845 = vand.u32 %v3172, 4294901760
      %3846 = vmatmul.mubr.f32.gmra.mxu0 %v3845
      %v3847 = vpop.f32.mrf.mxu0
      %v3848 = vadd.f32 %v3393, %v3847
      %v3849 = vpop.f32.mrf.mxu0
      %3850 = vmatprep.mubr.f32.mxu0 0.0
      %v3851 = vand.u32 %v3175, 4294901760
      %3852 = vmatmul.mubr.f32.gmra.mxu0 %v3851
      %v3853 = vpop.f32.mrf.mxu0
      %v3854 = vadd.f32 %v3403, %v3853
      %v3855 = vpop.f32.mrf.mxu0
      %3856 = vmatprep.mubr.f32.mxu0 0.0
      %v3857 = vand.u32 %v3178, 4294901760
      %3858 = vmatmul.mubr.f32.gmra.mxu0 %v3857
      %v3859 = vpop.f32.mrf.mxu0
      %v3860 = vadd.f32 %v3413, %v3859
      %v3861 = vpop.f32.mrf.mxu0
      %3862 = vmatprep.mubr.f32.mxu0 0.0
      %v3863 = vand.u32 %v3181, 4294901760
      %3864 = vmatmul.mubr.f32.gmra.mxu0 %v3863
      %v3865 = vpop.f32.mrf.mxu0
      %v3866 = vadd.f32 %v3423, %v3865
      %v3867 = vpop.f32.mrf.mxu0
      %3868 = vmatprep.mubr.f32.mxu0 0.0
      %v3869 = vand.u32 %v3184, 4294901760
      %3870 = vmatmul.mubr.f32.gmra.mxu0 %v3869
      %v3871 = vpop.f32.mrf.mxu0
      %v3872 = vadd.f32 %v3433, %v3871
      %v3873 = vpop.f32.mrf.mxu0
      %3874 = vmatprep.mubr.f32.mxu0 0.0
      %v3875 = vand.u32 %v3187, 4294901760
      %3876 = vmatmul.mubr.f32.gmra.mxu0 %v3875
      %v3877 = vpop.f32.mrf.mxu0
      %v3878 = vadd.f32 %v3443, %v3877
      %v3879 = vpop.f32.mrf.mxu0
      %3880 = vmatprep.mubr.f32.mxu0 0.0
      %v3881 = vand.u32 %v3190, 4294901760
      %3882 = vmatmul.mubr.f32.gmra.mxu0 %v3881
      %v3883 = vpop.f32.mrf.mxu0
      %v3884 = vadd.f32 %v3453, %v3883
      %v3885 = vpop.f32.mrf.mxu0
      %3886 = vmatprep.mubr.f32.mxu0 0.0
      %v3887 = vand.u32 %v3193, 4294901760
      %3888 = vmatmul.mubr.f32.gmra.mxu0 %v3887
      %v3889 = vpop.f32.mrf.mxu0
      %v3890 = vadd.f32 %v3463, %v3889
      %v3891 = vpop.f32.mrf.mxu0
      %3892 = vmatprep.mubr.f32.mxu0 0.0
      %v3893 = vand.u32 %v3196, 4294901760
      %3894 = vmatmul.mubr.f32.gmra.mxu0 %v3893
      %v3895 = vpop.f32.mrf.mxu0
      %v3896 = vadd.f32 %v3473, %v3895
      %v3897 = vpop.f32.mrf.mxu0
      %3898 = vmatprep.mubr.f32.mxu0 0.0
      %v3899 = vand.u32 %v3199, 4294901760
      %3900 = vmatmul.mubr.f32.gmra.mxu0 %v3899
      %v3901 = vpop.f32.mrf.mxu0
      %v3902 = vadd.f32 %v3483, %v3901
      %v3903 = vpop.f32.mrf.mxu0
      %3904 = vmatprep.mubr.f32.mxu0 0.0
      %v3905 = vand.u32 %v3202, 4294901760
      %3906 = vmatmul.mubr.f32.gmra.mxu0 %v3905
      %v3907 = vpop.f32.mrf.mxu0
      %v3908 = vadd.f32 %v3493, %v3907
      %v3909 = vpop.f32.mrf.mxu0
      %3910 = vmatprep.mubr.f32.mxu0 0.0
      %v3911 = vand.u32 %v3205, 4294901760
      %3912 = vmatmul.mubr.f32.gmra.mxu0 %v3911
      %v3913 = vpop.f32.mrf.mxu0
      %v3914 = vadd.f32 %v3503, %v3913
      %v3915 = vpop.f32.mrf.mxu0
      %3916 = vmatprep.mubr.f32.mxu0 0.0
      %v3917 = vand.u32 %v3208, 4294901760
      %3918 = vmatmul.mubr.f32.gmra.mxu0 %v3917
      %v3919 = vpop.f32.mrf.mxu0
      %v3920 = vadd.f32 %v3513, %v3919
      %v3921 = vpop.f32.mrf.mxu0
      %3922 = vmatprep.mubr.f32.mxu0 0.0
      %v3923 = vand.u32 %v3211, 4294901760
      %3924 = vmatmul.mubr.f32.gmra.mxu0 %v3923
      %v3925 = vpop.f32.mrf.mxu0
      %v3926 = vadd.f32 %v3523, %v3925
      %v3927 = vpop.f32.mrf.mxu0
      %3928 = vmatprep.mubr.f32.mxu0 0.0
      %v3929 = vand.u32 %v3214, 4294901760
      %3930 = vmatmul.mubr.f32.gmra.mxu0 %v3929
      %v3931 = vpop.f32.mrf.mxu0
      %v3932 = vadd.f32 %v3533, %v3931
      %v3933 = vpop.f32.mrf.mxu0
      %3934 = vmatprep.mubr.f32.mxu0 0.0
      %v3935 = vand.u32 %v3217, 4294901760
      %3936 = vmatmul.mubr.f32.gmra.mxu0 %v3935
      %v3937 = vpop.f32.mrf.mxu0
      %v3938 = vadd.f32 %v3543, %v3937
      %v3939 = vpop.f32.mrf.mxu0
      %3940 = vmatprep.mubr.f32.mxu0 0.0
      %v3941 = vand.u32 %v3220, 4294901760
      %3942 = vmatmul.mubr.f32.gmra.mxu0 %v3941
      %v3943 = vpop.f32.mrf.mxu0
      %v3944 = vadd.f32 %v3553, %v3943
      %v3945 = vpop.f32.mrf.mxu0
      %3946 = vmatprep.mubr.f32.mxu0 0.0
      %v3947 = vand.u32 %v3223, 4294901760
      %3948 = vmatmul.mubr.f32.gmra.mxu0 %v3947
      %v3949 = vpop.f32.mrf.mxu0
      %v3950 = vadd.f32 %v3563, %v3949
      %v3951 = vpop.f32.mrf.mxu0
      %3952 = vmatprep.mubr.f32.mxu0 0.0
      %v3953 = vand.u32 %v3226, 4294901760
      %3954 = vmatmul.mubr.f32.gmra.mxu0 %v3953
      %v3955 = vpop.f32.mrf.mxu0
      %v3956 = vadd.f32 %v3573, %v3955
      %v3957 = vpop.f32.mrf.mxu0
      %3958 = vmatprep.mubr.f32.mxu0 0.0
      %v3959 = vand.u32 %v3229, 4294901760
      %3960 = vmatmul.mubr.f32.gmra.mxu0 %v3959
      %v3961 = vpop.f32.mrf.mxu0
      %v3962 = vadd.f32 %v3583, %v3961
      %v3963 = vpop.f32.mrf.mxu0
      %3964 = vmatprep.mubr.f32.mxu0 0.0
      %v3965 = vand.u32 %v3232, 4294901760
      %3966 = vmatmul.mubr.f32.gmra.mxu0 %v3965
      %v3967 = vpop.f32.mrf.mxu0
      %v3968 = vadd.f32 %v3593, %v3967
      %v3969 = vpop.f32.mrf.mxu0
      %3970 = vmatprep.mubr.f32.mxu0 0.0
      %v3971 = vand.u32 %v3235, 4294901760
      %3972 = vmatmul.mubr.f32.gmra.mxu0 %v3971
      %v3973 = vpop.f32.mrf.mxu0
      %v3974 = vadd.f32 %v3603, %v3973
      %v3975 = vpop.f32.mrf.mxu0
      %3976 = vmatprep.mubr.f32.mxu0 0.0
      %v3977 = vand.u32 %v3238, 4294901760
      %3978 = vmatmul.mubr.f32.gmra.mxu0 %v3977
      %v3979 = vpop.f32.mrf.mxu0
      %v3980 = vadd.f32 %v3613, %v3979
      %v3981 = vpop.f32.mrf.mxu0
      %3982 = vmatprep.mubr.f32.mxu0 0.0
      %v3983 = vand.u32 %v3241, 4294901760
      %3984 = vmatmul.mubr.f32.gmra.mxu0 %v3983
      %v3985 = vpop.f32.mrf.mxu0
      %v3986 = vadd.f32 %v3623, %v3985
      %v3987 = vpop.f32.mrf.mxu0
      %3988 = vmatprep.mubr.f32.mxu0 0.0
      %v3989 = vand.u32 %v3244, 4294901760
      %3990 = vmatmul.mubr.f32.gmra.mxu0 %v3989
      %v3991 = vpop.f32.mrf.mxu0
      %v3992 = vadd.f32 %v3633, %v3991
      %v3993 = vpop.f32.mrf.mxu0
      %3994 = vmatprep.mubr.f32.mxu0 0.0
      %v3995 = vand.u32 %v3247, 4294901760
      %3996 = vmatmul.mubr.f32.gmra.mxu0 %v3995
      %v3997 = vpop.f32.mrf.mxu0
      %v3998 = vadd.f32 %v3643, %v3997
      %v3999 = vpop.f32.mrf.mxu0
      %4000 = vmatprep.mubr.f32.mxu0 0.0
      %v4001 = vand.u32 %v3250, 4294901760
      %4002 = vmatmul.mubr.f32.gmra.mxu0 %v4001
      %v4003 = vpop.f32.mrf.mxu0
      %v4004 = vadd.f32 %v3653, %v4003
      %v4005 = vpop.f32.mrf.mxu0
      %4006 = vmatprep.mubr.f32.mxu0 0.0
      %v4007 = vand.u32 %v3253, 4294901760
      %4008 = vmatmul.mubr.f32.gmra.mxu0 %v4007
      %v4009 = vpop.f32.mrf.mxu0
      %v4010 = vadd.f32 %v3663, %v4009
      %v4011 = vpop.f32.mrf.mxu0
      %4012 = vmatprep.mubr.f32.mxu0 0.0
      %v4013 = vand.u32 %v3256, 4294901760
      %4014 = vmatmul.mubr.f32.gmra.mxu0 %v4013
      %v4015 = vpop.f32.mrf.mxu0
      %v4016 = vadd.f32 %v3673, %v4015
      %v4017 = vpop.f32.mrf.mxu0
      %4018 = vmatprep.mubr.f32.mxu0 0.0
      %v4019 = vand.u32 %v3259, 4294901760
      %4020 = vmatmul.mubr.f32.gmra.mxu0 %v4019
      %v4021 = vpop.f32.mrf.mxu0
      %v4022 = vadd.f32 %v3683, %v4021
      %v4023 = vpop.f32.mrf.mxu0
      %4024 = vmatprep.mubr.f32.mxu0 0.0
      %v4025 = vand.u32 %v3262, 4294901760
      %4026 = vmatmul.mubr.f32.gmra.mxu0 %v4025
      %v4027 = vpop.f32.mrf.mxu0
      %v4028 = vadd.f32 %v3693, %v4027
      %v4029 = vpop.f32.mrf.mxu0
      %4030 = vmatprep.mubr.f32.mxu0 0.0
      %v4031 = vand.u32 %v3265, 4294901760
      %4032 = vmatmul.mubr.f32.gmra.mxu0 %v4031
      %v4033 = vpop.f32.mrf.mxu0
      %v4034 = vadd.f32 %v3703, %v4033
      %v4035 = vpop.f32.mrf.mxu0
      %4036 = vmatprep.mubr.f32.mxu0 0.0
      %v4037 = vand.u32 %v3268, 4294901760
      %4038 = vmatmul.mubr.f32.gmra.mxu0 %v4037
      %v4039 = vpop.f32.mrf.mxu0
      %v4040 = vadd.f32 %v3713, %v4039
      %v4041 = vpop.f32.mrf.mxu0
      %4042 = vmatprep.mubr.f32.mxu0 0.0
      %v4043 = vand.u32 %v3271, 4294901760
      %4044 = vmatmul.mubr.f32.gmra.mxu0 %v4043
      %v4045 = vpop.f32.mrf.mxu0
      %v4046 = vadd.f32 %v3723, %v4045
      %v4047 = vpop.f32.mrf.mxu0
      %4048 = vmatprep.mubr.f32.mxu0 0.0
      %v4049 = vand.u32 %v3274, 4294901760
      %4050 = vmatmul.mubr.f32.gmra.mxu0 %v4049
      %v4051 = vpop.f32.mrf.mxu0
      %v4052 = vadd.f32 %v3733, %v4051
      %v4053 = vpop.f32.mrf.mxu0
      %4054 = vmatprep.mubr.f32.mxu0 0.0
      %v4055 = vand.u32 %v3277, 4294901760
      %4056 = vmatmul.mubr.f32.gmra.mxu0 %v4055
      %v4057 = vpop.f32.mrf.mxu0
      %v4058 = vadd.f32 %v3743, %v4057
      %v4059 = vpop.f32.mrf.mxu0
      %4060 = vdwg.mxu0
      %4061 = vmatprep.subr.mxu0 0.0
      %4062 = vmatpush1.msra.mxu0 0.0
      %4063 = vmatprep.subr.mxu0 0.0
      %4064 = vmatpush1.msra.mxu0 0.0
      %4065 = vmatprep.subr.mxu0 0.0
      %4066 = vmatpush1.msra.mxu0 0.0
      %4067 = vmatprep.subr.mxu0 0.0
      %4068 = vmatpush1.msra.mxu0 0.0
      %4069 = vmatprep.subr.mxu0 0.0
      %4070 = vmatpush1.msra.mxu0 0.0
      %4071 = vmatprep.subr.mxu0 0.0
      %4072 = vmatpush1.msra.mxu0 0.0
      %4073 = vmatprep.subr.mxu0 0.0
      %4074 = vmatpush1.msra.mxu0 0.0
      %4075 = vmatprep.subr.mxu0 0.0
      %4076 = vmatpush1.msra.mxu0 0.0
      %4077 = vmatprep.subr.mxu0 0.0
      %4078 = vmatpush1.msra.mxu0 0.0
      %4079 = vmatprep.subr.mxu0 0.0
      %4080 = vmatpush1.msra.mxu0 0.0
      %4081 = vmatprep.subr.mxu0 0.0
      %4082 = vmatpush1.msra.mxu0 0.0
      %4083 = vmatprep.subr.mxu0 0.0
      %4084 = vmatpush1.msra.mxu0 0.0
      %4085 = vmatprep.subr.mxu0 0.0
      %4086 = vmatpush1.msra.mxu0 0.0
      %4087 = vmatprep.subr.mxu0 0.0
      %4088 = vmatpush1.msra.mxu0 0.0
      %4089 = vmatprep.subr.mxu0 0.0
      %v4090 = vand.u32 %v237, 4294901760
      %v4091 = vsub.f32 %v237, %v4090
      %4092 = vmatpush1.msra.mxu0 %v4091
      %4093 = vmatprep.subr.mxu0 0.0
      %v4094 = vand.u32 %v236, 4294901760
      %v4095 = vsub.f32 %v236, %v4094
      %4096 = vmatpush1.msra.mxu0 %v4095
      %4097 = vmatprep.subr.mxu0 0.0
      %4098 = vmatpush2.msra.mxu0 0.0
      %4099 = vmatprep.subr.mxu0 0.0
      %4100 = vmatpush2.msra.mxu0 0.0
      %4101 = vmatprep.subr.mxu0 0.0
      %4102 = vmatpush2.msra.mxu0 0.0
      %4103 = vmatprep.subr.mxu0 0.0
      %4104 = vmatpush2.msra.mxu0 0.0
      %4105 = vmatprep.subr.mxu0 0.0
      %4106 = vmatpush2.msra.mxu0 0.0
      %4107 = vmatprep.subr.mxu0 0.0
      %4108 = vmatpush2.msra.mxu0 0.0
      %4109 = vmatprep.subr.mxu0 0.0
      %4110 = vmatpush2.msra.mxu0 0.0
      %4111 = vmatprep.subr.mxu0 0.0
      %4112 = vmatpush2.msra.mxu0 0.0
      %4113 = vmatprep.subr.mxu0 0.0
      %4114 = vmatpush2.msra.mxu0 0.0
      %4115 = vmatprep.subr.mxu0 0.0
      %4116 = vmatpush2.msra.mxu0 0.0
      %4117 = vmatprep.subr.mxu0 0.0
      %4118 = vmatpush2.msra.mxu0 0.0
      %4119 = vmatprep.subr.mxu0 0.0
      %4120 = vmatpush2.msra.mxu0 0.0
      %4121 = vmatprep.subr.mxu0 0.0
      %4122 = vmatpush2.msra.mxu0 0.0
      %4123 = vmatprep.subr.mxu0 0.0
      %4124 = vmatpush2.msra.mxu0 0.0
      %4125 = vmatprep.subr.mxu0 0.0
      %4126 = vmatpush2.msra.mxu0 0.0
      %4127 = vmatprep.subr.mxu0 0.0
      %4128 = vmatpush2.msra.mxu0 0.0
      %4129 = vmatprep.mubr.f32.mxu0 0.0
      %v4130 = vand.u32 %v3160, 4294901760
      %v4131 = vsub.f32 %v3160, %v4130
      %4132 = vmatmul.mubr.f32.gmra.mxu0 %v4131
      %v4133 = vpop.f32.mrf.mxu0
      %v4134 = vadd.f32 %v3824, %v4133
      %v4135 = vpop.f32.mrf.mxu0
      %4136 = vmatprep.mubr.f32.mxu0 0.0
      %v4137 = vand.u32 %v3163, 4294901760
      %v4138 = vsub.f32 %v3163, %v4137
      %4139 = vmatmul.mubr.f32.gmra.mxu0 %v4138
      %v4140 = vpop.f32.mrf.mxu0
      %v4141 = vadd.f32 %v3830, %v4140
      %v4142 = vpop.f32.mrf.mxu0
      %4143 = vmatprep.mubr.f32.mxu0 0.0
      %v4144 = vand.u32 %v3166, 4294901760
      %v4145 = vsub.f32 %v3166, %v4144
      %4146 = vmatmul.mubr.f32.gmra.mxu0 %v4145
      %v4147 = vpop.f32.mrf.mxu0
      %v4148 = vadd.f32 %v3836, %v4147
      %v4149 = vpop.f32.mrf.mxu0
      %4150 = vmatprep.mubr.f32.mxu0 0.0
      %v4151 = vand.u32 %v3169, 4294901760
      %v4152 = vsub.f32 %v3169, %v4151
      %4153 = vmatmul.mubr.f32.gmra.mxu0 %v4152
      %v4154 = vpop.f32.mrf.mxu0
      %v4155 = vadd.f32 %v3842, %v4154
      %v4156 = vpop.f32.mrf.mxu0
      %4157 = vmatprep.mubr.f32.mxu0 0.0
      %v4158 = vand.u32 %v3172, 4294901760
      %v4159 = vsub.f32 %v3172, %v4158
      %4160 = vmatmul.mubr.f32.gmra.mxu0 %v4159
      %v4161 = vpop.f32.mrf.mxu0
      %v4162 = vadd.f32 %v3848, %v4161
      %v4163 = vpop.f32.mrf.mxu0
      %4164 = vmatprep.mubr.f32.mxu0 0.0
      %v4165 = vand.u32 %v3175, 4294901760
      %v4166 = vsub.f32 %v3175, %v4165
      %4167 = vmatmul.mubr.f32.gmra.mxu0 %v4166
      %v4168 = vpop.f32.mrf.mxu0
      %v4169 = vadd.f32 %v3854, %v4168
      %v4170 = vpop.f32.mrf.mxu0
      %4171 = vmatprep.mubr.f32.mxu0 0.0
      %v4172 = vand.u32 %v3178, 4294901760
      %v4173 = vsub.f32 %v3178, %v4172
      %4174 = vmatmul.mubr.f32.gmra.mxu0 %v4173
      %v4175 = vpop.f32.mrf.mxu0
      %v4176 = vadd.f32 %v3860, %v4175
      %v4177 = vpop.f32.mrf.mxu0
      %4178 = vmatprep.mubr.f32.mxu0 0.0
      %v4179 = vand.u32 %v3181, 4294901760
      %v4180 = vsub.f32 %v3181, %v4179
      %4181 = vmatmul.mubr.f32.gmra.mxu0 %v4180
      %v4182 = vpop.f32.mrf.mxu0
      %v4183 = vadd.f32 %v3866, %v4182
      %v4184 = vpop.f32.mrf.mxu0
      %4185 = vmatprep.mubr.f32.mxu0 0.0
      %v4186 = vand.u32 %v3184, 4294901760
      %v4187 = vsub.f32 %v3184, %v4186
      %4188 = vmatmul.mubr.f32.gmra.mxu0 %v4187
      %v4189 = vpop.f32.mrf.mxu0
      %v4190 = vadd.f32 %v3872, %v4189
      %v4191 = vpop.f32.mrf.mxu0
      %4192 = vmatprep.mubr.f32.mxu0 0.0
      %v4193 = vand.u32 %v3187, 4294901760
      %v4194 = vsub.f32 %v3187, %v4193
      %4195 = vmatmul.mubr.f32.gmra.mxu0 %v4194
      %v4196 = vpop.f32.mrf.mxu0
      %v4197 = vadd.f32 %v3878, %v4196
      %v4198 = vpop.f32.mrf.mxu0
      %4199 = vmatprep.mubr.f32.mxu0 0.0
      %v4200 = vand.u32 %v3190, 4294901760
      %v4201 = vsub.f32 %v3190, %v4200
      %4202 = vmatmul.mubr.f32.gmra.mxu0 %v4201
      %v4203 = vpop.f32.mrf.mxu0
      %v4204 = vadd.f32 %v3884, %v4203
      %v4205 = vpop.f32.mrf.mxu0
      %4206 = vmatprep.mubr.f32.mxu0 0.0
      %v4207 = vand.u32 %v3193, 4294901760
      %v4208 = vsub.f32 %v3193, %v4207
      %4209 = vmatmul.mubr.f32.gmra.mxu0 %v4208
      %v4210 = vpop.f32.mrf.mxu0
      %v4211 = vadd.f32 %v3890, %v4210
      %v4212 = vpop.f32.mrf.mxu0
      %4213 = vmatprep.mubr.f32.mxu0 0.0
      %v4214 = vand.u32 %v3196, 4294901760
      %v4215 = vsub.f32 %v3196, %v4214
      %4216 = vmatmul.mubr.f32.gmra.mxu0 %v4215
      %v4217 = vpop.f32.mrf.mxu0
      %v4218 = vadd.f32 %v3896, %v4217
      %v4219 = vpop.f32.mrf.mxu0
      %4220 = vmatprep.mubr.f32.mxu0 0.0
      %v4221 = vand.u32 %v3199, 4294901760
      %v4222 = vsub.f32 %v3199, %v4221
      %4223 = vmatmul.mubr.f32.gmra.mxu0 %v4222
      %v4224 = vpop.f32.mrf.mxu0
      %v4225 = vadd.f32 %v3902, %v4224
      %v4226 = vpop.f32.mrf.mxu0
      %4227 = vmatprep.mubr.f32.mxu0 0.0
      %v4228 = vand.u32 %v3202, 4294901760
      %v4229 = vsub.f32 %v3202, %v4228
      %4230 = vmatmul.mubr.f32.gmra.mxu0 %v4229
      %v4231 = vpop.f32.mrf.mxu0
      %v4232 = vadd.f32 %v3908, %v4231
      %v4233 = vpop.f32.mrf.mxu0
      %4234 = vmatprep.mubr.f32.mxu0 0.0
      %v4235 = vand.u32 %v3205, 4294901760
      %v4236 = vsub.f32 %v3205, %v4235
      %4237 = vmatmul.mubr.f32.gmra.mxu0 %v4236
      %v4238 = vpop.f32.mrf.mxu0
      %v4239 = vadd.f32 %v3914, %v4238
      %v4240 = vpop.f32.mrf.mxu0
      %4241 = vmatprep.mubr.f32.mxu0 0.0
      %v4242 = vand.u32 %v3208, 4294901760
      %v4243 = vsub.f32 %v3208, %v4242
      %4244 = vmatmul.mubr.f32.gmra.mxu0 %v4243
      %v4245 = vpop.f32.mrf.mxu0
      %v4246 = vadd.f32 %v3920, %v4245
      %v4247 = vpop.f32.mrf.mxu0
      %4248 = vmatprep.mubr.f32.mxu0 0.0
      %v4249 = vand.u32 %v3211, 4294901760
      %v4250 = vsub.f32 %v3211, %v4249
      %4251 = vmatmul.mubr.f32.gmra.mxu0 %v4250
      %v4252 = vpop.f32.mrf.mxu0
      %v4253 = vadd.f32 %v3926, %v4252
      %v4254 = vpop.f32.mrf.mxu0
      %4255 = vmatprep.mubr.f32.mxu0 0.0
      %v4256 = vand.u32 %v3214, 4294901760
      %v4257 = vsub.f32 %v3214, %v4256
      %4258 = vmatmul.mubr.f32.gmra.mxu0 %v4257
      %v4259 = vpop.f32.mrf.mxu0
      %v4260 = vadd.f32 %v3932, %v4259
      %v4261 = vpop.f32.mrf.mxu0
      %4262 = vmatprep.mubr.f32.mxu0 0.0
      %v4263 = vand.u32 %v3217, 4294901760
      %v4264 = vsub.f32 %v3217, %v4263
      %4265 = vmatmul.mubr.f32.gmra.mxu0 %v4264
      %v4266 = vpop.f32.mrf.mxu0
      %v4267 = vadd.f32 %v3938, %v4266
      %v4268 = vpop.f32.mrf.mxu0
      %4269 = vmatprep.mubr.f32.mxu0 0.0
      %v4270 = vand.u32 %v3220, 4294901760
      %v4271 = vsub.f32 %v3220, %v4270
      %4272 = vmatmul.mubr.f32.gmra.mxu0 %v4271
      %v4273 = vpop.f32.mrf.mxu0
      %v4274 = vadd.f32 %v3944, %v4273
      %v4275 = vpop.f32.mrf.mxu0
      %4276 = vmatprep.mubr.f32.mxu0 0.0
      %v4277 = vand.u32 %v3223, 4294901760
      %v4278 = vsub.f32 %v3223, %v4277
      %4279 = vmatmul.mubr.f32.gmra.mxu0 %v4278
      %v4280 = vpop.f32.mrf.mxu0
      %v4281 = vadd.f32 %v3950, %v4280
      %v4282 = vpop.f32.mrf.mxu0
      %4283 = vmatprep.mubr.f32.mxu0 0.0
      %v4284 = vand.u32 %v3226, 4294901760
      %v4285 = vsub.f32 %v3226, %v4284
      %4286 = vmatmul.mubr.f32.gmra.mxu0 %v4285
      %v4287 = vpop.f32.mrf.mxu0
      %v4288 = vadd.f32 %v3956, %v4287
      %v4289 = vpop.f32.mrf.mxu0
      %4290 = vmatprep.mubr.f32.mxu0 0.0
      %v4291 = vand.u32 %v3229, 4294901760
      %v4292 = vsub.f32 %v3229, %v4291
      %4293 = vmatmul.mubr.f32.gmra.mxu0 %v4292
      %v4294 = vpop.f32.mrf.mxu0
      %v4295 = vadd.f32 %v3962, %v4294
      %v4296 = vpop.f32.mrf.mxu0
      %4297 = vmatprep.mubr.f32.mxu0 0.0
      %v4298 = vand.u32 %v3232, 4294901760
      %v4299 = vsub.f32 %v3232, %v4298
      %4300 = vmatmul.mubr.f32.gmra.mxu0 %v4299
      %v4301 = vpop.f32.mrf.mxu0
      %v4302 = vadd.f32 %v3968, %v4301
      %v4303 = vpop.f32.mrf.mxu0
      %4304 = vmatprep.mubr.f32.mxu0 0.0
      %v4305 = vand.u32 %v3235, 4294901760
      %v4306 = vsub.f32 %v3235, %v4305
      %4307 = vmatmul.mubr.f32.gmra.mxu0 %v4306
      %v4308 = vpop.f32.mrf.mxu0
      %v4309 = vadd.f32 %v3974, %v4308
      %v4310 = vpop.f32.mrf.mxu0
      %4311 = vmatprep.mubr.f32.mxu0 0.0
      %v4312 = vand.u32 %v3238, 4294901760
      %v4313 = vsub.f32 %v3238, %v4312
      %4314 = vmatmul.mubr.f32.gmra.mxu0 %v4313
      %v4315 = vpop.f32.mrf.mxu0
      %v4316 = vadd.f32 %v3980, %v4315
      %v4317 = vpop.f32.mrf.mxu0
      %4318 = vmatprep.mubr.f32.mxu0 0.0
      %v4319 = vand.u32 %v3241, 4294901760
      %v4320 = vsub.f32 %v3241, %v4319
      %4321 = vmatmul.mubr.f32.gmra.mxu0 %v4320
      %v4322 = vpop.f32.mrf.mxu0
      %v4323 = vadd.f32 %v3986, %v4322
      %v4324 = vpop.f32.mrf.mxu0
      %4325 = vmatprep.mubr.f32.mxu0 0.0
      %v4326 = vand.u32 %v3244, 4294901760
      %v4327 = vsub.f32 %v3244, %v4326
      %4328 = vmatmul.mubr.f32.gmra.mxu0 %v4327
      %v4329 = vpop.f32.mrf.mxu0
      %v4330 = vadd.f32 %v3992, %v4329
      %v4331 = vpop.f32.mrf.mxu0
      %4332 = vmatprep.mubr.f32.mxu0 0.0
      %v4333 = vand.u32 %v3247, 4294901760
      %v4334 = vsub.f32 %v3247, %v4333
      %4335 = vmatmul.mubr.f32.gmra.mxu0 %v4334
      %v4336 = vpop.f32.mrf.mxu0
      %v4337 = vadd.f32 %v3998, %v4336
      %v4338 = vpop.f32.mrf.mxu0
      %4339 = vmatprep.mubr.f32.mxu0 0.0
      %v4340 = vand.u32 %v3250, 4294901760
      %v4341 = vsub.f32 %v3250, %v4340
      %4342 = vmatmul.mubr.f32.gmra.mxu0 %v4341
      %v4343 = vpop.f32.mrf.mxu0
      %v4344 = vadd.f32 %v4004, %v4343
      %v4345 = vpop.f32.mrf.mxu0
      %4346 = vmatprep.mubr.f32.mxu0 0.0
      %v4347 = vand.u32 %v3253, 4294901760
      %v4348 = vsub.f32 %v3253, %v4347
      %4349 = vmatmul.mubr.f32.gmra.mxu0 %v4348
      %v4350 = vpop.f32.mrf.mxu0
      %v4351 = vadd.f32 %v4010, %v4350
      %v4352 = vpop.f32.mrf.mxu0
      %4353 = vmatprep.mubr.f32.mxu0 0.0
      %v4354 = vand.u32 %v3256, 4294901760
      %v4355 = vsub.f32 %v3256, %v4354
      %4356 = vmatmul.mubr.f32.gmra.mxu0 %v4355
      %v4357 = vpop.f32.mrf.mxu0
      %v4358 = vadd.f32 %v4016, %v4357
      %v4359 = vpop.f32.mrf.mxu0
      %4360 = vmatprep.mubr.f32.mxu0 0.0
      %v4361 = vand.u32 %v3259, 4294901760
      %v4362 = vsub.f32 %v3259, %v4361
      %4363 = vmatmul.mubr.f32.gmra.mxu0 %v4362
      %v4364 = vpop.f32.mrf.mxu0
      %v4365 = vadd.f32 %v4022, %v4364
      %v4366 = vpop.f32.mrf.mxu0
      %4367 = vmatprep.mubr.f32.mxu0 0.0
      %v4368 = vand.u32 %v3262, 4294901760
      %v4369 = vsub.f32 %v3262, %v4368
      %4370 = vmatmul.mubr.f32.gmra.mxu0 %v4369
      %v4371 = vpop.f32.mrf.mxu0
      %v4372 = vadd.f32 %v4028, %v4371
      %v4373 = vpop.f32.mrf.mxu0
      %4374 = vmatprep.mubr.f32.mxu0 0.0
      %v4375 = vand.u32 %v3265, 4294901760
      %v4376 = vsub.f32 %v3265, %v4375
      %4377 = vmatmul.mubr.f32.gmra.mxu0 %v4376
      %v4378 = vpop.f32.mrf.mxu0
      %v4379 = vadd.f32 %v4034, %v4378
      %v4380 = vpop.f32.mrf.mxu0
      %4381 = vmatprep.mubr.f32.mxu0 0.0
      %v4382 = vand.u32 %v3268, 4294901760
      %v4383 = vsub.f32 %v3268, %v4382
      %4384 = vmatmul.mubr.f32.gmra.mxu0 %v4383
      %v4385 = vpop.f32.mrf.mxu0
      %v4386 = vadd.f32 %v4040, %v4385
      %v4387 = vpop.f32.mrf.mxu0
      %4388 = vmatprep.mubr.f32.mxu0 0.0
      %v4389 = vand.u32 %v3271, 4294901760
      %v4390 = vsub.f32 %v3271, %v4389
      %4391 = vmatmul.mubr.f32.gmra.mxu0 %v4390
      %v4392 = vpop.f32.mrf.mxu0
      %v4393 = vadd.f32 %v4046, %v4392
      %v4394 = vpop.f32.mrf.mxu0
      %4395 = vmatprep.mubr.f32.mxu0 0.0
      %v4396 = vand.u32 %v3274, 4294901760
      %v4397 = vsub.f32 %v3274, %v4396
      %4398 = vmatmul.mubr.f32.gmra.mxu0 %v4397
      %v4399 = vpop.f32.mrf.mxu0
      %v4400 = vadd.f32 %v4052, %v4399
      %v4401 = vpop.f32.mrf.mxu0
      %4402 = vmatprep.mubr.f32.mxu0 0.0
      %v4403 = vand.u32 %v3277, 4294901760
      %v4404 = vsub.f32 %v3277, %v4403
      %4405 = vmatmul.mubr.f32.gmra.mxu0 %v4404
      %v4406 = vpop.f32.mrf.mxu0
      %v4407 = vadd.f32 %v4058, %v4406
      %v4408 = vpop.f32.mrf.mxu0
      %4409 = vdwg.mxu0
      %4410 = vmatprep.subr.mxu0 0.0
      %4411 = vmatpush1.msra.mxu0 0.0
      %4412 = vmatprep.subr.mxu0 0.0
      %4413 = vmatpush1.msra.mxu0 0.0
      %4414 = vmatprep.subr.mxu0 0.0
      %4415 = vmatpush1.msra.mxu0 0.0
      %4416 = vmatprep.subr.mxu0 0.0
      %4417 = vmatpush1.msra.mxu0 0.0
      %4418 = vmatprep.subr.mxu0 0.0
      %4419 = vmatpush1.msra.mxu0 0.0
      %4420 = vmatprep.subr.mxu0 0.0
      %4421 = vmatpush1.msra.mxu0 0.0
      %4422 = vmatprep.subr.mxu0 0.0
      %4423 = vmatpush1.msra.mxu0 0.0
      %4424 = vmatprep.subr.mxu0 0.0
      %4425 = vmatpush1.msra.mxu0 0.0
      %4426 = vmatprep.subr.mxu0 0.0
      %4427 = vmatpush1.msra.mxu0 0.0
      %4428 = vmatprep.subr.mxu0 0.0
      %4429 = vmatpush1.msra.mxu0 0.0
      %4430 = vmatprep.subr.mxu0 0.0
      %4431 = vmatpush1.msra.mxu0 0.0
      %4432 = vmatprep.subr.mxu0 0.0
      %4433 = vmatpush1.msra.mxu0 0.0
      %4434 = vmatprep.subr.mxu0 0.0
      %4435 = vmatpush1.msra.mxu0 0.0
      %4436 = vmatprep.subr.mxu0 0.0
      %4437 = vmatpush1.msra.mxu0 0.0
      %4438 = vmatprep.subr.mxu0 0.0
      %v4439 = vand.u32 %v237, 4294901760
      %4440 = vmatpush1.msra.mxu0 %v4439
      %4441 = vmatprep.subr.mxu0 0.0
      %v4442 = vand.u32 %v236, 4294901760
      %4443 = vmatpush1.msra.mxu0 %v4442
      %4444 = vmatprep.subr.mxu0 0.0
      %4445 = vmatpush2.msra.mxu0 0.0
      %4446 = vmatprep.subr.mxu0 0.0
      %4447 = vmatpush2.msra.mxu0 0.0
      %4448 = vmatprep.subr.mxu0 0.0
      %4449 = vmatpush2.msra.mxu0 0.0
      %4450 = vmatprep.subr.mxu0 0.0
      %4451 = vmatpush2.msra.mxu0 0.0
      %4452 = vmatprep.subr.mxu0 0.0
      %4453 = vmatpush2.msra.mxu0 0.0
      %4454 = vmatprep.subr.mxu0 0.0
      %4455 = vmatpush2.msra.mxu0 0.0
      %4456 = vmatprep.subr.mxu0 0.0
      %4457 = vmatpush2.msra.mxu0 0.0
      %4458 = vmatprep.subr.mxu0 0.0
      %4459 = vmatpush2.msra.mxu0 0.0
      %4460 = vmatprep.subr.mxu0 0.0
      %4461 = vmatpush2.msra.mxu0 0.0
      %4462 = vmatprep.subr.mxu0 0.0
      %4463 = vmatpush2.msra.mxu0 0.0
      %4464 = vmatprep.subr.mxu0 0.0
      %4465 = vmatpush2.msra.mxu0 0.0
      %4466 = vmatprep.subr.mxu0 0.0
      %4467 = vmatpush2.msra.mxu0 0.0
      %4468 = vmatprep.subr.mxu0 0.0
      %4469 = vmatpush2.msra.mxu0 0.0
      %4470 = vmatprep.subr.mxu0 0.0
      %4471 = vmatpush2.msra.mxu0 0.0
      %4472 = vmatprep.subr.mxu0 0.0
      %4473 = vmatpush2.msra.mxu0 0.0
      %4474 = vmatprep.subr.mxu0 0.0
      %4475 = vmatpush2.msra.mxu0 0.0
      %4476 = vmatprep.mubr.f32.mxu0 0.0
      %v4477 = vand.u32 %v3160, 4294901760
      %v4478 = vsub.f32 %v3160, %v4477
      %v4479 = vand.u32 %v4478, 4294901760
      %4480 = vmatmul.mubr.f32.gmra.mxu0 %v4479
      %v4481 = vpop.f32.mrf.mxu0
      %v4482 = vadd.f32 %v4134, %v4481
      %v4483 = vpop.f32.mrf.mxu0
      %4484 = vmatprep.mubr.f32.mxu0 0.0
      %v4485 = vand.u32 %v3163, 4294901760
      %v4486 = vsub.f32 %v3163, %v4485
      %v4487 = vand.u32 %v4486, 4294901760
      %4488 = vmatmul.mubr.f32.gmra.mxu0 %v4487
      %v4489 = vpop.f32.mrf.mxu0
      %v4490 = vadd.f32 %v4141, %v4489
      %v4491 = vpop.f32.mrf.mxu0
      %4492 = vmatprep.mubr.f32.mxu0 0.0
      %v4493 = vand.u32 %v3166, 4294901760
      %v4494 = vsub.f32 %v3166, %v4493
      %v4495 = vand.u32 %v4494, 4294901760
      %4496 = vmatmul.mubr.f32.gmra.mxu0 %v4495
      %v4497 = vpop.f32.mrf.mxu0
      %v4498 = vadd.f32 %v4148, %v4497
      %v4499 = vpop.f32.mrf.mxu0
      %4500 = vmatprep.mubr.f32.mxu0 0.0
      %v4501 = vand.u32 %v3169, 4294901760
      %v4502 = vsub.f32 %v3169, %v4501
      %v4503 = vand.u32 %v4502, 4294901760
      %4504 = vmatmul.mubr.f32.gmra.mxu0 %v4503
      %v4505 = vpop.f32.mrf.mxu0
      %v4506 = vadd.f32 %v4155, %v4505
      %v4507 = vpop.f32.mrf.mxu0
      %4508 = vmatprep.mubr.f32.mxu0 0.0
      %v4509 = vand.u32 %v3172, 4294901760
      %v4510 = vsub.f32 %v3172, %v4509
      %v4511 = vand.u32 %v4510, 4294901760
      %4512 = vmatmul.mubr.f32.gmra.mxu0 %v4511
      %v4513 = vpop.f32.mrf.mxu0
      %v4514 = vadd.f32 %v4162, %v4513
      %v4515 = vpop.f32.mrf.mxu0
      %4516 = vmatprep.mubr.f32.mxu0 0.0
      %v4517 = vand.u32 %v3175, 4294901760
      %v4518 = vsub.f32 %v3175, %v4517
      %v4519 = vand.u32 %v4518, 4294901760
      %4520 = vmatmul.mubr.f32.gmra.mxu0 %v4519
      %v4521 = vpop.f32.mrf.mxu0
      %v4522 = vadd.f32 %v4169, %v4521
      %v4523 = vpop.f32.mrf.mxu0
      %4524 = vmatprep.mubr.f32.mxu0 0.0
      %v4525 = vand.u32 %v3178, 4294901760
      %v4526 = vsub.f32 %v3178, %v4525
      %v4527 = vand.u32 %v4526, 4294901760
      %4528 = vmatmul.mubr.f32.gmra.mxu0 %v4527
      %v4529 = vpop.f32.mrf.mxu0
      %v4530 = vadd.f32 %v4176, %v4529
      %v4531 = vpop.f32.mrf.mxu0
      %4532 = vmatprep.mubr.f32.mxu0 0.0
      %v4533 = vand.u32 %v3181, 4294901760
      %v4534 = vsub.f32 %v3181, %v4533
      %v4535 = vand.u32 %v4534, 4294901760
      %4536 = vmatmul.mubr.f32.gmra.mxu0 %v4535
      %v4537 = vpop.f32.mrf.mxu0
      %v4538 = vadd.f32 %v4183, %v4537
      %v4539 = vpop.f32.mrf.mxu0
      %4540 = vmatprep.mubr.f32.mxu0 0.0
      %v4541 = vand.u32 %v3184, 4294901760
      %v4542 = vsub.f32 %v3184, %v4541
      %v4543 = vand.u32 %v4542, 4294901760
      %4544 = vmatmul.mubr.f32.gmra.mxu0 %v4543
      %v4545 = vpop.f32.mrf.mxu0
      %v4546 = vadd.f32 %v4190, %v4545
      %v4547 = vpop.f32.mrf.mxu0
      %4548 = vmatprep.mubr.f32.mxu0 0.0
      %v4549 = vand.u32 %v3187, 4294901760
      %v4550 = vsub.f32 %v3187, %v4549
      %v4551 = vand.u32 %v4550, 4294901760
      %4552 = vmatmul.mubr.f32.gmra.mxu0 %v4551
      %v4553 = vpop.f32.mrf.mxu0
      %v4554 = vadd.f32 %v4197, %v4553
      %v4555 = vpop.f32.mrf.mxu0
      %4556 = vmatprep.mubr.f32.mxu0 0.0
      %v4557 = vand.u32 %v3190, 4294901760
      %v4558 = vsub.f32 %v3190, %v4557
      %v4559 = vand.u32 %v4558, 4294901760
      %4560 = vmatmul.mubr.f32.gmra.mxu0 %v4559
      %v4561 = vpop.f32.mrf.mxu0
      %v4562 = vadd.f32 %v4204, %v4561
      %v4563 = vpop.f32.mrf.mxu0
      %4564 = vmatprep.mubr.f32.mxu0 0.0
      %v4565 = vand.u32 %v3193, 4294901760
      %v4566 = vsub.f32 %v3193, %v4565
      %v4567 = vand.u32 %v4566, 4294901760
      %4568 = vmatmul.mubr.f32.gmra.mxu0 %v4567
      %v4569 = vpop.f32.mrf.mxu0
      %v4570 = vadd.f32 %v4211, %v4569
      %v4571 = vpop.f32.mrf.mxu0
      %4572 = vmatprep.mubr.f32.mxu0 0.0
      %v4573 = vand.u32 %v3196, 4294901760
      %v4574 = vsub.f32 %v3196, %v4573
      %v4575 = vand.u32 %v4574, 4294901760
      %4576 = vmatmul.mubr.f32.gmra.mxu0 %v4575
      %v4577 = vpop.f32.mrf.mxu0
      %v4578 = vadd.f32 %v4218, %v4577
      %v4579 = vpop.f32.mrf.mxu0
      %4580 = vmatprep.mubr.f32.mxu0 0.0
      %v4581 = vand.u32 %v3199, 4294901760
      %v4582 = vsub.f32 %v3199, %v4581
      %v4583 = vand.u32 %v4582, 4294901760
      %4584 = vmatmul.mubr.f32.gmra.mxu0 %v4583
      %v4585 = vpop.f32.mrf.mxu0
      %v4586 = vadd.f32 %v4225, %v4585
      %v4587 = vpop.f32.mrf.mxu0
      %4588 = vmatprep.mubr.f32.mxu0 0.0
      %v4589 = vand.u32 %v3202, 4294901760
      %v4590 = vsub.f32 %v3202, %v4589
      %v4591 = vand.u32 %v4590, 4294901760
      %4592 = vmatmul.mubr.f32.gmra.mxu0 %v4591
      %v4593 = vpop.f32.mrf.mxu0
      %v4594 = vadd.f32 %v4232, %v4593
      %v4595 = vpop.f32.mrf.mxu0
      %4596 = vmatprep.mubr.f32.mxu0 0.0
      %v4597 = vand.u32 %v3205, 4294901760
      %v4598 = vsub.f32 %v3205, %v4597
      %v4599 = vand.u32 %v4598, 4294901760
      %4600 = vmatmul.mubr.f32.gmra.mxu0 %v4599
      %v4601 = vpop.f32.mrf.mxu0
      %v4602 = vadd.f32 %v4239, %v4601
      %v4603 = vpop.f32.mrf.mxu0
      %4604 = vmatprep.mubr.f32.mxu0 0.0
      %v4605 = vand.u32 %v3208, 4294901760
      %v4606 = vsub.f32 %v3208, %v4605
      %v4607 = vand.u32 %v4606, 4294901760
      %4608 = vmatmul.mubr.f32.gmra.mxu0 %v4607
      %v4609 = vpop.f32.mrf.mxu0
      %v4610 = vadd.f32 %v4246, %v4609
      %v4611 = vpop.f32.mrf.mxu0
      %4612 = vmatprep.mubr.f32.mxu0 0.0
      %v4613 = vand.u32 %v3211, 4294901760
      %v4614 = vsub.f32 %v3211, %v4613
      %v4615 = vand.u32 %v4614, 4294901760
      %4616 = vmatmul.mubr.f32.gmra.mxu0 %v4615
      %v4617 = vpop.f32.mrf.mxu0
      %v4618 = vadd.f32 %v4253, %v4617
      %v4619 = vpop.f32.mrf.mxu0
      %4620 = vmatprep.mubr.f32.mxu0 0.0
      %v4621 = vand.u32 %v3214, 4294901760
      %v4622 = vsub.f32 %v3214, %v4621
      %v4623 = vand.u32 %v4622, 4294901760
      %4624 = vmatmul.mubr.f32.gmra.mxu0 %v4623
      %v4625 = vpop.f32.mrf.mxu0
      %v4626 = vadd.f32 %v4260, %v4625
      %v4627 = vpop.f32.mrf.mxu0
      %4628 = vmatprep.mubr.f32.mxu0 0.0
      %v4629 = vand.u32 %v3217, 4294901760
      %v4630 = vsub.f32 %v3217, %v4629
      %v4631 = vand.u32 %v4630, 4294901760
      %4632 = vmatmul.mubr.f32.gmra.mxu0 %v4631
      %v4633 = vpop.f32.mrf.mxu0
      %v4634 = vadd.f32 %v4267, %v4633
      %v4635 = vpop.f32.mrf.mxu0
      %4636 = vmatprep.mubr.f32.mxu0 0.0
      %v4637 = vand.u32 %v3220, 4294901760
      %v4638 = vsub.f32 %v3220, %v4637
      %v4639 = vand.u32 %v4638, 4294901760
      %4640 = vmatmul.mubr.f32.gmra.mxu0 %v4639
      %v4641 = vpop.f32.mrf.mxu0
      %v4642 = vadd.f32 %v4274, %v4641
      %v4643 = vpop.f32.mrf.mxu0
      %4644 = vmatprep.mubr.f32.mxu0 0.0
      %v4645 = vand.u32 %v3223, 4294901760
      %v4646 = vsub.f32 %v3223, %v4645
      %v4647 = vand.u32 %v4646, 4294901760
      %4648 = vmatmul.mubr.f32.gmra.mxu0 %v4647
      %v4649 = vpop.f32.mrf.mxu0
      %v4650 = vadd.f32 %v4281, %v4649
      %v4651 = vpop.f32.mrf.mxu0
      %4652 = vmatprep.mubr.f32.mxu0 0.0
      %v4653 = vand.u32 %v3226, 4294901760
      %v4654 = vsub.f32 %v3226, %v4653
      %v4655 = vand.u32 %v4654, 4294901760
      %4656 = vmatmul.mubr.f32.gmra.mxu0 %v4655
      %v4657 = vpop.f32.mrf.mxu0
      %v4658 = vadd.f32 %v4288, %v4657
      %v4659 = vpop.f32.mrf.mxu0
      %4660 = vmatprep.mubr.f32.mxu0 0.0
      %v4661 = vand.u32 %v3229, 4294901760
      %v4662 = vsub.f32 %v3229, %v4661
      %v4663 = vand.u32 %v4662, 4294901760
      %4664 = vmatmul.mubr.f32.gmra.mxu0 %v4663
      %v4665 = vpop.f32.mrf.mxu0
      %v4666 = vadd.f32 %v4295, %v4665
      %v4667 = vpop.f32.mrf.mxu0
      %4668 = vmatprep.mubr.f32.mxu0 0.0
      %v4669 = vand.u32 %v3232, 4294901760
      %v4670 = vsub.f32 %v3232, %v4669
      %v4671 = vand.u32 %v4670, 4294901760
      %4672 = vmatmul.mubr.f32.gmra.mxu0 %v4671
      %v4673 = vpop.f32.mrf.mxu0
      %v4674 = vadd.f32 %v4302, %v4673
      %v4675 = vpop.f32.mrf.mxu0
      %4676 = vmatprep.mubr.f32.mxu0 0.0
      %v4677 = vand.u32 %v3235, 4294901760
      %v4678 = vsub.f32 %v3235, %v4677
      %v4679 = vand.u32 %v4678, 4294901760
      %4680 = vmatmul.mubr.f32.gmra.mxu0 %v4679
      %v4681 = vpop.f32.mrf.mxu0
      %v4682 = vadd.f32 %v4309, %v4681
      %v4683 = vpop.f32.mrf.mxu0
      %4684 = vmatprep.mubr.f32.mxu0 0.0
      %v4685 = vand.u32 %v3238, 4294901760
      %v4686 = vsub.f32 %v3238, %v4685
      %v4687 = vand.u32 %v4686, 4294901760
      %4688 = vmatmul.mubr.f32.gmra.mxu0 %v4687
      %v4689 = vpop.f32.mrf.mxu0
      %v4690 = vadd.f32 %v4316, %v4689
      %v4691 = vpop.f32.mrf.mxu0
      %4692 = vmatprep.mubr.f32.mxu0 0.0
      %v4693 = vand.u32 %v3241, 4294901760
      %v4694 = vsub.f32 %v3241, %v4693
      %v4695 = vand.u32 %v4694, 4294901760
      %4696 = vmatmul.mubr.f32.gmra.mxu0 %v4695
      %v4697 = vpop.f32.mrf.mxu0
      %v4698 = vadd.f32 %v4323, %v4697
      %v4699 = vpop.f32.mrf.mxu0
      %4700 = vmatprep.mubr.f32.mxu0 0.0
      %v4701 = vand.u32 %v3244, 4294901760
      %v4702 = vsub.f32 %v3244, %v4701
      %v4703 = vand.u32 %v4702, 4294901760
      %4704 = vmatmul.mubr.f32.gmra.mxu0 %v4703
      %v4705 = vpop.f32.mrf.mxu0
      %v4706 = vadd.f32 %v4330, %v4705
      %v4707 = vpop.f32.mrf.mxu0
      %4708 = vmatprep.mubr.f32.mxu0 0.0
      %v4709 = vand.u32 %v3247, 4294901760
      %v4710 = vsub.f32 %v3247, %v4709
      %v4711 = vand.u32 %v4710, 4294901760
      %4712 = vmatmul.mubr.f32.gmra.mxu0 %v4711
      %v4713 = vpop.f32.mrf.mxu0
      %v4714 = vadd.f32 %v4337, %v4713
      %v4715 = vpop.f32.mrf.mxu0
      %4716 = vmatprep.mubr.f32.mxu0 0.0
      %v4717 = vand.u32 %v3250, 4294901760
      %v4718 = vsub.f32 %v3250, %v4717
      %v4719 = vand.u32 %v4718, 4294901760
      %4720 = vmatmul.mubr.f32.gmra.mxu0 %v4719
      %v4721 = vpop.f32.mrf.mxu0
      %v4722 = vadd.f32 %v4344, %v4721
      %v4723 = vpop.f32.mrf.mxu0
      %4724 = vmatprep.mubr.f32.mxu0 0.0
      %v4725 = vand.u32 %v3253, 4294901760
      %v4726 = vsub.f32 %v3253, %v4725
      %v4727 = vand.u32 %v4726, 4294901760
      %4728 = vmatmul.mubr.f32.gmra.mxu0 %v4727
      %v4729 = vpop.f32.mrf.mxu0
      %v4730 = vadd.f32 %v4351, %v4729
      %v4731 = vpop.f32.mrf.mxu0
      %4732 = vmatprep.mubr.f32.mxu0 0.0
      %v4733 = vand.u32 %v3256, 4294901760
      %v4734 = vsub.f32 %v3256, %v4733
      %v4735 = vand.u32 %v4734, 4294901760
      %4736 = vmatmul.mubr.f32.gmra.mxu0 %v4735
      %v4737 = vpop.f32.mrf.mxu0
      %v4738 = vadd.f32 %v4358, %v4737
      %v4739 = vpop.f32.mrf.mxu0
      %4740 = vmatprep.mubr.f32.mxu0 0.0
      %v4741 = vand.u32 %v3259, 4294901760
      %v4742 = vsub.f32 %v3259, %v4741
      %v4743 = vand.u32 %v4742, 4294901760
      %4744 = vmatmul.mubr.f32.gmra.mxu0 %v4743
      %v4745 = vpop.f32.mrf.mxu0
      %v4746 = vadd.f32 %v4365, %v4745
      %v4747 = vpop.f32.mrf.mxu0
      %4748 = vmatprep.mubr.f32.mxu0 0.0
      %v4749 = vand.u32 %v3262, 4294901760
      %v4750 = vsub.f32 %v3262, %v4749
      %v4751 = vand.u32 %v4750, 4294901760
      %4752 = vmatmul.mubr.f32.gmra.mxu0 %v4751
      %v4753 = vpop.f32.mrf.mxu0
      %v4754 = vadd.f32 %v4372, %v4753
      %v4755 = vpop.f32.mrf.mxu0
      %4756 = vmatprep.mubr.f32.mxu0 0.0
      %v4757 = vand.u32 %v3265, 4294901760
      %v4758 = vsub.f32 %v3265, %v4757
      %v4759 = vand.u32 %v4758, 4294901760
      %4760 = vmatmul.mubr.f32.gmra.mxu0 %v4759
      %v4761 = vpop.f32.mrf.mxu0
      %v4762 = vadd.f32 %v4379, %v4761
      %v4763 = vpop.f32.mrf.mxu0
      %4764 = vmatprep.mubr.f32.mxu0 0.0
      %v4765 = vand.u32 %v3268, 4294901760
      %v4766 = vsub.f32 %v3268, %v4765
      %v4767 = vand.u32 %v4766, 4294901760
      %4768 = vmatmul.mubr.f32.gmra.mxu0 %v4767
      %v4769 = vpop.f32.mrf.mxu0
      %v4770 = vadd.f32 %v4386, %v4769
      %v4771 = vpop.f32.mrf.mxu0
      %4772 = vmatprep.mubr.f32.mxu0 0.0
      %v4773 = vand.u32 %v3271, 4294901760
      %v4774 = vsub.f32 %v3271, %v4773
      %v4775 = vand.u32 %v4774, 4294901760
      %4776 = vmatmul.mubr.f32.gmra.mxu0 %v4775
      %v4777 = vpop.f32.mrf.mxu0
      %v4778 = vadd.f32 %v4393, %v4777
      %v4779 = vpop.f32.mrf.mxu0
      %4780 = vmatprep.mubr.f32.mxu0 0.0
      %v4781 = vand.u32 %v3274, 4294901760
      %v4782 = vsub.f32 %v3274, %v4781
      %v4783 = vand.u32 %v4782, 4294901760
      %4784 = vmatmul.mubr.f32.gmra.mxu0 %v4783
      %v4785 = vpop.f32.mrf.mxu0
      %v4786 = vadd.f32 %v4400, %v4785
      %v4787 = vpop.f32.mrf.mxu0
      %4788 = vmatprep.mubr.f32.mxu0 0.0
      %v4789 = vand.u32 %v3277, 4294901760
      %v4790 = vsub.f32 %v3277, %v4789
      %v4791 = vand.u32 %v4790, 4294901760
      %4792 = vmatmul.mubr.f32.gmra.mxu0 %v4791
      %v4793 = vpop.f32.mrf.mxu0
      %v4794 = vadd.f32 %v4407, %v4793
      %v4795 = vpop.f32.mrf.mxu0
      %4796 = vdwg.mxu0
      %4797 = vmatprep.subr.mxu0 0.0
      %4798 = vmatpush1.msra.mxu0 0.0
      %4799 = vmatprep.subr.mxu0 0.0
      %4800 = vmatpush1.msra.mxu0 0.0
      %4801 = vmatprep.subr.mxu0 0.0
      %4802 = vmatpush1.msra.mxu0 0.0
      %4803 = vmatprep.subr.mxu0 0.0
      %4804 = vmatpush1.msra.mxu0 0.0
      %4805 = vmatprep.subr.mxu0 0.0
      %4806 = vmatpush1.msra.mxu0 0.0
      %4807 = vmatprep.subr.mxu0 0.0
      %4808 = vmatpush1.msra.mxu0 0.0
      %4809 = vmatprep.subr.mxu0 0.0
      %4810 = vmatpush1.msra.mxu0 0.0
      %4811 = vmatprep.subr.mxu0 0.0
      %4812 = vmatpush1.msra.mxu0 0.0
      %4813 = vmatprep.subr.mxu0 0.0
      %4814 = vmatpush1.msra.mxu0 0.0
      %4815 = vmatprep.subr.mxu0 0.0
      %4816 = vmatpush1.msra.mxu0 0.0
      %4817 = vmatprep.subr.mxu0 0.0
      %4818 = vmatpush1.msra.mxu0 0.0
      %4819 = vmatprep.subr.mxu0 0.0
      %4820 = vmatpush1.msra.mxu0 0.0
      %4821 = vmatprep.subr.mxu0 0.0
      %4822 = vmatpush1.msra.mxu0 0.0
      %4823 = vmatprep.subr.mxu0 0.0
      %4824 = vmatpush1.msra.mxu0 0.0
      %4825 = vmatprep.subr.mxu0 0.0
      %v4826 = vand.u32 %v237, 4294901760
      %v4827 = vsub.f32 %v237, %v4826
      %v4828 = vand.u32 %v4827, 4294901760
      %4829 = vmatpush1.msra.mxu0 %v4828
      %4830 = vmatprep.subr.mxu0 0.0
      %v4831 = vand.u32 %v236, 4294901760
      %v4832 = vsub.f32 %v236, %v4831
      %v4833 = vand.u32 %v4832, 4294901760
      %4834 = vmatpush1.msra.mxu0 %v4833
      %4835 = vmatprep.subr.mxu0 0.0
      %4836 = vmatpush2.msra.mxu0 0.0
      %4837 = vmatprep.subr.mxu0 0.0
      %4838 = vmatpush2.msra.mxu0 0.0
      %4839 = vmatprep.subr.mxu0 0.0
      %4840 = vmatpush2.msra.mxu0 0.0
      %4841 = vmatprep.subr.mxu0 0.0
      %4842 = vmatpush2.msra.mxu0 0.0
      %4843 = vmatprep.subr.mxu0 0.0
      %4844 = vmatpush2.msra.mxu0 0.0
      %4845 = vmatprep.subr.mxu0 0.0
      %4846 = vmatpush2.msra.mxu0 0.0
      %4847 = vmatprep.subr.mxu0 0.0
      %4848 = vmatpush2.msra.mxu0 0.0
      %4849 = vmatprep.subr.mxu0 0.0
      %4850 = vmatpush2.msra.mxu0 0.0
      %4851 = vmatprep.subr.mxu0 0.0
      %4852 = vmatpush2.msra.mxu0 0.0
      %4853 = vmatprep.subr.mxu0 0.0
      %4854 = vmatpush2.msra.mxu0 0.0
      %4855 = vmatprep.subr.mxu0 0.0
      %4856 = vmatpush2.msra.mxu0 0.0
      %4857 = vmatprep.subr.mxu0 0.0
      %4858 = vmatpush2.msra.mxu0 0.0
      %4859 = vmatprep.subr.mxu0 0.0
      %4860 = vmatpush2.msra.mxu0 0.0
      %4861 = vmatprep.subr.mxu0 0.0
      %4862 = vmatpush2.msra.mxu0 0.0
      %4863 = vmatprep.subr.mxu0 0.0
      %4864 = vmatpush2.msra.mxu0 0.0
      %4865 = vmatprep.subr.mxu0 0.0
      %4866 = vmatpush2.msra.mxu0 0.0
      %4867 = vmatprep.mubr.f32.mxu0 0.0
      %v4868 = vand.u32 %v3160, 4294901760
      %4869 = vmatmul.mubr.f32.gmra.mxu0 %v4868
      %v4870 = vpop.f32.mrf.mxu0
      %v4871 = vadd.f32 %v4482, %v4870
      %v4872 = vpop.f32.mrf.mxu0
      %4873 = vmatprep.mubr.f32.mxu0 0.0
      %v4874 = vand.u32 %v3163, 4294901760
      %4875 = vmatmul.mubr.f32.gmra.mxu0 %v4874
      %v4876 = vpop.f32.mrf.mxu0
      %v4877 = vadd.f32 %v4490, %v4876
      %v4878 = vpop.f32.mrf.mxu0
      %4879 = vmatprep.mubr.f32.mxu0 0.0
      %v4880 = vand.u32 %v3166, 4294901760
      %4881 = vmatmul.mubr.f32.gmra.mxu0 %v4880
      %v4882 = vpop.f32.mrf.mxu0
      %v4883 = vadd.f32 %v4498, %v4882
      %v4884 = vpop.f32.mrf.mxu0
      %4885 = vmatprep.mubr.f32.mxu0 0.0
      %v4886 = vand.u32 %v3169, 4294901760
      %4887 = vmatmul.mubr.f32.gmra.mxu0 %v4886
      %v4888 = vpop.f32.mrf.mxu0
      %v4889 = vadd.f32 %v4506, %v4888
      %v4890 = vpop.f32.mrf.mxu0
      %4891 = vmatprep.mubr.f32.mxu0 0.0
      %v4892 = vand.u32 %v3172, 4294901760
      %4893 = vmatmul.mubr.f32.gmra.mxu0 %v4892
      %v4894 = vpop.f32.mrf.mxu0
      %v4895 = vadd.f32 %v4514, %v4894
      %v4896 = vpop.f32.mrf.mxu0
      %4897 = vmatprep.mubr.f32.mxu0 0.0
      %v4898 = vand.u32 %v3175, 4294901760
      %4899 = vmatmul.mubr.f32.gmra.mxu0 %v4898
      %v4900 = vpop.f32.mrf.mxu0
      %v4901 = vadd.f32 %v4522, %v4900
      %v4902 = vpop.f32.mrf.mxu0
      %4903 = vmatprep.mubr.f32.mxu0 0.0
      %v4904 = vand.u32 %v3178, 4294901760
      %4905 = vmatmul.mubr.f32.gmra.mxu0 %v4904
      %v4906 = vpop.f32.mrf.mxu0
      %v4907 = vadd.f32 %v4530, %v4906
      %v4908 = vpop.f32.mrf.mxu0
      %4909 = vmatprep.mubr.f32.mxu0 0.0
      %v4910 = vand.u32 %v3181, 4294901760
      %4911 = vmatmul.mubr.f32.gmra.mxu0 %v4910
      %v4912 = vpop.f32.mrf.mxu0
      %v4913 = vadd.f32 %v4538, %v4912
      %v4914 = vpop.f32.mrf.mxu0
      %4915 = vmatprep.mubr.f32.mxu0 0.0
      %v4916 = vand.u32 %v3184, 4294901760
      %4917 = vmatmul.mubr.f32.gmra.mxu0 %v4916
      %v4918 = vpop.f32.mrf.mxu0
      %v4919 = vadd.f32 %v4546, %v4918
      %v4920 = vpop.f32.mrf.mxu0
      %4921 = vmatprep.mubr.f32.mxu0 0.0
      %v4922 = vand.u32 %v3187, 4294901760
      %4923 = vmatmul.mubr.f32.gmra.mxu0 %v4922
      %v4924 = vpop.f32.mrf.mxu0
      %v4925 = vadd.f32 %v4554, %v4924
      %v4926 = vpop.f32.mrf.mxu0
      %4927 = vmatprep.mubr.f32.mxu0 0.0
      %v4928 = vand.u32 %v3190, 4294901760
      %4929 = vmatmul.mubr.f32.gmra.mxu0 %v4928
      %v4930 = vpop.f32.mrf.mxu0
      %v4931 = vadd.f32 %v4562, %v4930
      %v4932 = vpop.f32.mrf.mxu0
      %4933 = vmatprep.mubr.f32.mxu0 0.0
      %v4934 = vand.u32 %v3193, 4294901760
      %4935 = vmatmul.mubr.f32.gmra.mxu0 %v4934
      %v4936 = vpop.f32.mrf.mxu0
      %v4937 = vadd.f32 %v4570, %v4936
      %v4938 = vpop.f32.mrf.mxu0
      %4939 = vmatprep.mubr.f32.mxu0 0.0
      %v4940 = vand.u32 %v3196, 4294901760
      %4941 = vmatmul.mubr.f32.gmra.mxu0 %v4940
      %v4942 = vpop.f32.mrf.mxu0
      %v4943 = vadd.f32 %v4578, %v4942
      %v4944 = vpop.f32.mrf.mxu0
      %4945 = vmatprep.mubr.f32.mxu0 0.0
      %v4946 = vand.u32 %v3199, 4294901760
      %4947 = vmatmul.mubr.f32.gmra.mxu0 %v4946
      %v4948 = vpop.f32.mrf.mxu0
      %v4949 = vadd.f32 %v4586, %v4948
      %v4950 = vpop.f32.mrf.mxu0
      %4951 = vmatprep.mubr.f32.mxu0 0.0
      %v4952 = vand.u32 %v3202, 4294901760
      %4953 = vmatmul.mubr.f32.gmra.mxu0 %v4952
      %v4954 = vpop.f32.mrf.mxu0
      %v4955 = vadd.f32 %v4594, %v4954
      %v4956 = vpop.f32.mrf.mxu0
      %4957 = vmatprep.mubr.f32.mxu0 0.0
      %v4958 = vand.u32 %v3205, 4294901760
      %4959 = vmatmul.mubr.f32.gmra.mxu0 %v4958
      %v4960 = vpop.f32.mrf.mxu0
      %v4961 = vadd.f32 %v4602, %v4960
      %v4962 = vpop.f32.mrf.mxu0
      %4963 = vmatprep.mubr.f32.mxu0 0.0
      %v4964 = vand.u32 %v3208, 4294901760
      %4965 = vmatmul.mubr.f32.gmra.mxu0 %v4964
      %v4966 = vpop.f32.mrf.mxu0
      %v4967 = vadd.f32 %v4610, %v4966
      %v4968 = vpop.f32.mrf.mxu0
      %4969 = vmatprep.mubr.f32.mxu0 0.0
      %v4970 = vand.u32 %v3211, 4294901760
      %4971 = vmatmul.mubr.f32.gmra.mxu0 %v4970
      %v4972 = vpop.f32.mrf.mxu0
      %v4973 = vadd.f32 %v4618, %v4972
      %v4974 = vpop.f32.mrf.mxu0
      %4975 = vmatprep.mubr.f32.mxu0 0.0
      %v4976 = vand.u32 %v3214, 4294901760
      %4977 = vmatmul.mubr.f32.gmra.mxu0 %v4976
      %v4978 = vpop.f32.mrf.mxu0
      %v4979 = vadd.f32 %v4626, %v4978
      %v4980 = vpop.f32.mrf.mxu0
      %4981 = vmatprep.mubr.f32.mxu0 0.0
      %v4982 = vand.u32 %v3217, 4294901760
      %4983 = vmatmul.mubr.f32.gmra.mxu0 %v4982
      %v4984 = vpop.f32.mrf.mxu0
      %v4985 = vadd.f32 %v4634, %v4984
      %v4986 = vpop.f32.mrf.mxu0
      %4987 = vmatprep.mubr.f32.mxu0 0.0
      %v4988 = vand.u32 %v3220, 4294901760
      %4989 = vmatmul.mubr.f32.gmra.mxu0 %v4988
      %v4990 = vpop.f32.mrf.mxu0
      %v4991 = vadd.f32 %v4642, %v4990
      %v4992 = vpop.f32.mrf.mxu0
      %4993 = vmatprep.mubr.f32.mxu0 0.0
      %v4994 = vand.u32 %v3223, 4294901760
      %4995 = vmatmul.mubr.f32.gmra.mxu0 %v4994
      %v4996 = vpop.f32.mrf.mxu0
      %v4997 = vadd.f32 %v4650, %v4996
      %v4998 = vpop.f32.mrf.mxu0
      %4999 = vmatprep.mubr.f32.mxu0 0.0
      %v5000 = vand.u32 %v3226, 4294901760
      %5001 = vmatmul.mubr.f32.gmra.mxu0 %v5000
      %v5002 = vpop.f32.mrf.mxu0
      %v5003 = vadd.f32 %v4658, %v5002
      %v5004 = vpop.f32.mrf.mxu0
      %5005 = vmatprep.mubr.f32.mxu0 0.0
      %v5006 = vand.u32 %v3229, 4294901760
      %5007 = vmatmul.mubr.f32.gmra.mxu0 %v5006
      %v5008 = vpop.f32.mrf.mxu0
      %v5009 = vadd.f32 %v4666, %v5008
      %v5010 = vpop.f32.mrf.mxu0
      %5011 = vmatprep.mubr.f32.mxu0 0.0
      %v5012 = vand.u32 %v3232, 4294901760
      %5013 = vmatmul.mubr.f32.gmra.mxu0 %v5012
      %v5014 = vpop.f32.mrf.mxu0
      %v5015 = vadd.f32 %v4674, %v5014
      %v5016 = vpop.f32.mrf.mxu0
      %5017 = vmatprep.mubr.f32.mxu0 0.0
      %v5018 = vand.u32 %v3235, 4294901760
      %5019 = vmatmul.mubr.f32.gmra.mxu0 %v5018
      %v5020 = vpop.f32.mrf.mxu0
      %v5021 = vadd.f32 %v4682, %v5020
      %v5022 = vpop.f32.mrf.mxu0
      %5023 = vmatprep.mubr.f32.mxu0 0.0
      %v5024 = vand.u32 %v3238, 4294901760
      %5025 = vmatmul.mubr.f32.gmra.mxu0 %v5024
      %v5026 = vpop.f32.mrf.mxu0
      %v5027 = vadd.f32 %v4690, %v5026
      %v5028 = vpop.f32.mrf.mxu0
      %5029 = vmatprep.mubr.f32.mxu0 0.0
      %v5030 = vand.u32 %v3241, 4294901760
      %5031 = vmatmul.mubr.f32.gmra.mxu0 %v5030
      %v5032 = vpop.f32.mrf.mxu0
      %v5033 = vadd.f32 %v4698, %v5032
      %v5034 = vpop.f32.mrf.mxu0
      %5035 = vmatprep.mubr.f32.mxu0 0.0
      %v5036 = vand.u32 %v3244, 4294901760
      %5037 = vmatmul.mubr.f32.gmra.mxu0 %v5036
      %v5038 = vpop.f32.mrf.mxu0
      %v5039 = vadd.f32 %v4706, %v5038
      %v5040 = vpop.f32.mrf.mxu0
      %5041 = vmatprep.mubr.f32.mxu0 0.0
      %v5042 = vand.u32 %v3247, 4294901760
      %5043 = vmatmul.mubr.f32.gmra.mxu0 %v5042
      %v5044 = vpop.f32.mrf.mxu0
      %v5045 = vadd.f32 %v4714, %v5044
      %v5046 = vpop.f32.mrf.mxu0
      %5047 = vmatprep.mubr.f32.mxu0 0.0
      %v5048 = vand.u32 %v3250, 4294901760
      %5049 = vmatmul.mubr.f32.gmra.mxu0 %v5048
      %v5050 = vpop.f32.mrf.mxu0
      %v5051 = vadd.f32 %v4722, %v5050
      %v5052 = vpop.f32.mrf.mxu0
      %5053 = vmatprep.mubr.f32.mxu0 0.0
      %v5054 = vand.u32 %v3253, 4294901760
      %5055 = vmatmul.mubr.f32.gmra.mxu0 %v5054
      %v5056 = vpop.f32.mrf.mxu0
      %v5057 = vadd.f32 %v4730, %v5056
      %v5058 = vpop.f32.mrf.mxu0
      %5059 = vmatprep.mubr.f32.mxu0 0.0
      %v5060 = vand.u32 %v3256, 4294901760
      %5061 = vmatmul.mubr.f32.gmra.mxu0 %v5060
      %v5062 = vpop.f32.mrf.mxu0
      %v5063 = vadd.f32 %v4738, %v5062
      %v5064 = vpop.f32.mrf.mxu0
      %5065 = vmatprep.mubr.f32.mxu0 0.0
      %v5066 = vand.u32 %v3259, 4294901760
      %5067 = vmatmul.mubr.f32.gmra.mxu0 %v5066
      %v5068 = vpop.f32.mrf.mxu0
      %v5069 = vadd.f32 %v4746, %v5068
      %v5070 = vpop.f32.mrf.mxu0
      %5071 = vmatprep.mubr.f32.mxu0 0.0
      %v5072 = vand.u32 %v3262, 4294901760
      %5073 = vmatmul.mubr.f32.gmra.mxu0 %v5072
      %v5074 = vpop.f32.mrf.mxu0
      %v5075 = vadd.f32 %v4754, %v5074
      %v5076 = vpop.f32.mrf.mxu0
      %5077 = vmatprep.mubr.f32.mxu0 0.0
      %v5078 = vand.u32 %v3265, 4294901760
      %5079 = vmatmul.mubr.f32.gmra.mxu0 %v5078
      %v5080 = vpop.f32.mrf.mxu0
      %v5081 = vadd.f32 %v4762, %v5080
      %v5082 = vpop.f32.mrf.mxu0
      %5083 = vmatprep.mubr.f32.mxu0 0.0
      %v5084 = vand.u32 %v3268, 4294901760
      %5085 = vmatmul.mubr.f32.gmra.mxu0 %v5084
      %v5086 = vpop.f32.mrf.mxu0
      %v5087 = vadd.f32 %v4770, %v5086
      %v5088 = vpop.f32.mrf.mxu0
      %5089 = vmatprep.mubr.f32.mxu0 0.0
      %v5090 = vand.u32 %v3271, 4294901760
      %5091 = vmatmul.mubr.f32.gmra.mxu0 %v5090
      %v5092 = vpop.f32.mrf.mxu0
      %v5093 = vadd.f32 %v4778, %v5092
      %v5094 = vpop.f32.mrf.mxu0
      %5095 = vmatprep.mubr.f32.mxu0 0.0
      %v5096 = vand.u32 %v3274, 4294901760
      %5097 = vmatmul.mubr.f32.gmra.mxu0 %v5096
      %v5098 = vpop.f32.mrf.mxu0
      %v5099 = vadd.f32 %v4786, %v5098
      %v5100 = vpop.f32.mrf.mxu0
      %5101 = vmatprep.mubr.f32.mxu0 0.0
      %v5102 = vand.u32 %v3277, 4294901760
      %5103 = vmatmul.mubr.f32.gmra.mxu0 %v5102
      %v5104 = vpop.f32.mrf.mxu0
      %v5105 = vadd.f32 %v4794, %v5104
      %v5106 = vpop.f32.mrf.mxu0
      %5107 = vdwg.mxu0
      %5108 = vmatprep.subr.mxu0 0.0
      %5109 = vmatpush1.msra.mxu0 0.0
      %5110 = vmatprep.subr.mxu0 0.0
      %5111 = vmatpush1.msra.mxu0 0.0
      %5112 = vmatprep.subr.mxu0 0.0
      %5113 = vmatpush1.msra.mxu0 0.0
      %5114 = vmatprep.subr.mxu0 0.0
      %5115 = vmatpush1.msra.mxu0 0.0
      %5116 = vmatprep.subr.mxu0 0.0
      %5117 = vmatpush1.msra.mxu0 0.0
      %5118 = vmatprep.subr.mxu0 0.0
      %5119 = vmatpush1.msra.mxu0 0.0
      %5120 = vmatprep.subr.mxu0 0.0
      %5121 = vmatpush1.msra.mxu0 0.0
      %5122 = vmatprep.subr.mxu0 0.0
      %5123 = vmatpush1.msra.mxu0 0.0
      %5124 = vmatprep.subr.mxu0 0.0
      %5125 = vmatpush1.msra.mxu0 0.0
      %5126 = vmatprep.subr.mxu0 0.0
      %5127 = vmatpush1.msra.mxu0 0.0
      %5128 = vmatprep.subr.mxu0 0.0
      %5129 = vmatpush1.msra.mxu0 0.0
      %5130 = vmatprep.subr.mxu0 0.0
      %5131 = vmatpush1.msra.mxu0 0.0
      %5132 = vmatprep.subr.mxu0 0.0
      %5133 = vmatpush1.msra.mxu0 0.0
      %5134 = vmatprep.subr.mxu0 0.0
      %5135 = vmatpush1.msra.mxu0 0.0
      %5136 = vmatprep.subr.mxu0 0.0
      %v5137 = vand.u32 %v237, 4294901760
      %5138 = vmatpush1.msra.mxu0 %v5137
      %5139 = vmatprep.subr.mxu0 0.0
      %v5140 = vand.u32 %v236, 4294901760
      %5141 = vmatpush1.msra.mxu0 %v5140
      %5142 = vmatprep.subr.mxu0 0.0
      %5143 = vmatpush2.msra.mxu0 0.0
      %5144 = vmatprep.subr.mxu0 0.0
      %5145 = vmatpush2.msra.mxu0 0.0
      %5146 = vmatprep.subr.mxu0 0.0
      %5147 = vmatpush2.msra.mxu0 0.0
      %5148 = vmatprep.subr.mxu0 0.0
      %5149 = vmatpush2.msra.mxu0 0.0
      %5150 = vmatprep.subr.mxu0 0.0
      %5151 = vmatpush2.msra.mxu0 0.0
      %5152 = vmatprep.subr.mxu0 0.0
      %5153 = vmatpush2.msra.mxu0 0.0
      %5154 = vmatprep.subr.mxu0 0.0
      %5155 = vmatpush2.msra.mxu0 0.0
      %5156 = vmatprep.subr.mxu0 0.0
      %5157 = vmatpush2.msra.mxu0 0.0
      %5158 = vmatprep.subr.mxu0 0.0
      %5159 = vmatpush2.msra.mxu0 0.0
      %5160 = vmatprep.subr.mxu0 0.0
      %5161 = vmatpush2.msra.mxu0 0.0
      %5162 = vmatprep.subr.mxu0 0.0
      %5163 = vmatpush2.msra.mxu0 0.0
      %5164 = vmatprep.subr.mxu0 0.0
      %5165 = vmatpush2.msra.mxu0 0.0
      %5166 = vmatprep.subr.mxu0 0.0
      %5167 = vmatpush2.msra.mxu0 0.0
      %5168 = vmatprep.subr.mxu0 0.0
      %5169 = vmatpush2.msra.mxu0 0.0
      %5170 = vmatprep.subr.mxu0 0.0
      %5171 = vmatpush2.msra.mxu0 0.0
      %5172 = vmatprep.subr.mxu0 0.0
      %5173 = vmatpush2.msra.mxu0 0.0
      %5174 = vmatprep.mubr.f32.mxu0 0.0
      %v5175 = vand.u32 %v3160, 4294901760
      %5176 = vmatmul.mubr.f32.gmra.mxu0 %v5175
      %v5177 = vpop.f32.mrf.mxu0
      %v5178 = vadd.f32 %v4871, %v5177
      %v5179 = vpop.f32.mrf.mxu0
      %5180 = vmatprep.mubr.f32.mxu0 0.0
      %v5181 = vand.u32 %v3163, 4294901760
      %5182 = vmatmul.mubr.f32.gmra.mxu0 %v5181
      %v5183 = vpop.f32.mrf.mxu0
      %v5184 = vadd.f32 %v4877, %v5183
      %v5185 = vpop.f32.mrf.mxu0
      %5186 = vmatprep.mubr.f32.mxu0 0.0
      %v5187 = vand.u32 %v3166, 4294901760
      %5188 = vmatmul.mubr.f32.gmra.mxu0 %v5187
      %v5189 = vpop.f32.mrf.mxu0
      %v5190 = vadd.f32 %v4883, %v5189
      %v5191 = vpop.f32.mrf.mxu0
      %5192 = vmatprep.mubr.f32.mxu0 0.0
      %v5193 = vand.u32 %v3169, 4294901760
      %5194 = vmatmul.mubr.f32.gmra.mxu0 %v5193
      %v5195 = vpop.f32.mrf.mxu0
      %v5196 = vadd.f32 %v4889, %v5195
      %v5197 = vpop.f32.mrf.mxu0
      %5198 = vmatprep.mubr.f32.mxu0 0.0
      %v5199 = vand.u32 %v3172, 4294901760
      %5200 = vmatmul.mubr.f32.gmra.mxu0 %v5199
      %v5201 = vpop.f32.mrf.mxu0
      %v5202 = vadd.f32 %v4895, %v5201
      %v5203 = vpop.f32.mrf.mxu0
      %5204 = vmatprep.mubr.f32.mxu0 0.0
      %v5205 = vand.u32 %v3175, 4294901760
      %5206 = vmatmul.mubr.f32.gmra.mxu0 %v5205
      %v5207 = vpop.f32.mrf.mxu0
      %v5208 = vadd.f32 %v4901, %v5207
      %v5209 = vpop.f32.mrf.mxu0
      %5210 = vmatprep.mubr.f32.mxu0 0.0
      %v5211 = vand.u32 %v3178, 4294901760
      %5212 = vmatmul.mubr.f32.gmra.mxu0 %v5211
      %v5213 = vpop.f32.mrf.mxu0
      %v5214 = vadd.f32 %v4907, %v5213
      %v5215 = vpop.f32.mrf.mxu0
      %5216 = vmatprep.mubr.f32.mxu0 0.0
      %v5217 = vand.u32 %v3181, 4294901760
      %5218 = vmatmul.mubr.f32.gmra.mxu0 %v5217
      %v5219 = vpop.f32.mrf.mxu0
      %v5220 = vadd.f32 %v4913, %v5219
      %v5221 = vpop.f32.mrf.mxu0
      %5222 = vmatprep.mubr.f32.mxu0 0.0
      %v5223 = vand.u32 %v3184, 4294901760
      %5224 = vmatmul.mubr.f32.gmra.mxu0 %v5223
      %v5225 = vpop.f32.mrf.mxu0
      %v5226 = vadd.f32 %v4919, %v5225
      %v5227 = vpop.f32.mrf.mxu0
      %5228 = vmatprep.mubr.f32.mxu0 0.0
      %v5229 = vand.u32 %v3187, 4294901760
      %5230 = vmatmul.mubr.f32.gmra.mxu0 %v5229
      %v5231 = vpop.f32.mrf.mxu0
      %v5232 = vadd.f32 %v4925, %v5231
      %v5233 = vpop.f32.mrf.mxu0
      %5234 = vmatprep.mubr.f32.mxu0 0.0
      %v5235 = vand.u32 %v3190, 4294901760
      %5236 = vmatmul.mubr.f32.gmra.mxu0 %v5235
      %v5237 = vpop.f32.mrf.mxu0
      %v5238 = vadd.f32 %v4931, %v5237
      %v5239 = vpop.f32.mrf.mxu0
      %5240 = vmatprep.mubr.f32.mxu0 0.0
      %v5241 = vand.u32 %v3193, 4294901760
      %5242 = vmatmul.mubr.f32.gmra.mxu0 %v5241
      %v5243 = vpop.f32.mrf.mxu0
      %v5244 = vadd.f32 %v4937, %v5243
      %v5245 = vpop.f32.mrf.mxu0
      %5246 = vmatprep.mubr.f32.mxu0 0.0
      %v5247 = vand.u32 %v3196, 4294901760
      %5248 = vmatmul.mubr.f32.gmra.mxu0 %v5247
      %v5249 = vpop.f32.mrf.mxu0
      %v5250 = vadd.f32 %v4943, %v5249
      %v5251 = vpop.f32.mrf.mxu0
      %5252 = vmatprep.mubr.f32.mxu0 0.0
      %v5253 = vand.u32 %v3199, 4294901760
      %5254 = vmatmul.mubr.f32.gmra.mxu0 %v5253
      %v5255 = vpop.f32.mrf.mxu0
      %v5256 = vadd.f32 %v4949, %v5255
      %v5257 = vpop.f32.mrf.mxu0
      %5258 = vmatprep.mubr.f32.mxu0 0.0
      %v5259 = vand.u32 %v3202, 4294901760
      %5260 = vmatmul.mubr.f32.gmra.mxu0 %v5259
      %v5261 = vpop.f32.mrf.mxu0
      %v5262 = vadd.f32 %v4955, %v5261
      %v5263 = vpop.f32.mrf.mxu0
      %5264 = vmatprep.mubr.f32.mxu0 0.0
      %v5265 = vand.u32 %v3205, 4294901760
      %5266 = vmatmul.mubr.f32.gmra.mxu0 %v5265
      %v5267 = vpop.f32.mrf.mxu0
      %v5268 = vadd.f32 %v4961, %v5267
      %v5269 = vpop.f32.mrf.mxu0
      %5270 = vmatprep.mubr.f32.mxu0 0.0
      %v5271 = vand.u32 %v3208, 4294901760
      %5272 = vmatmul.mubr.f32.gmra.mxu0 %v5271
      %v5273 = vpop.f32.mrf.mxu0
      %v5274 = vadd.f32 %v4967, %v5273
      %v5275 = vpop.f32.mrf.mxu0
      %5276 = vmatprep.mubr.f32.mxu0 0.0
      %v5277 = vand.u32 %v3211, 4294901760
      %5278 = vmatmul.mubr.f32.gmra.mxu0 %v5277
      %v5279 = vpop.f32.mrf.mxu0
      %v5280 = vadd.f32 %v4973, %v5279
      %v5281 = vpop.f32.mrf.mxu0
      %5282 = vmatprep.mubr.f32.mxu0 0.0
      %v5283 = vand.u32 %v3214, 4294901760
      %5284 = vmatmul.mubr.f32.gmra.mxu0 %v5283
      %v5285 = vpop.f32.mrf.mxu0
      %v5286 = vadd.f32 %v4979, %v5285
      %v5287 = vpop.f32.mrf.mxu0
      %5288 = vmatprep.mubr.f32.mxu0 0.0
      %v5289 = vand.u32 %v3217, 4294901760
      %5290 = vmatmul.mubr.f32.gmra.mxu0 %v5289
      %v5291 = vpop.f32.mrf.mxu0
      %v5292 = vadd.f32 %v4985, %v5291
      %v5293 = vpop.f32.mrf.mxu0
      %5294 = vmatprep.mubr.f32.mxu0 0.0
      %v5295 = vand.u32 %v3220, 4294901760
      %5296 = vmatmul.mubr.f32.gmra.mxu0 %v5295
      %v5297 = vpop.f32.mrf.mxu0
      %v5298 = vadd.f32 %v4991, %v5297
      %v5299 = vpop.f32.mrf.mxu0
      %5300 = vmatprep.mubr.f32.mxu0 0.0
      %v5301 = vand.u32 %v3223, 4294901760
      %5302 = vmatmul.mubr.f32.gmra.mxu0 %v5301
      %v5303 = vpop.f32.mrf.mxu0
      %v5304 = vadd.f32 %v4997, %v5303
      %v5305 = vpop.f32.mrf.mxu0
      %5306 = vmatprep.mubr.f32.mxu0 0.0
      %v5307 = vand.u32 %v3226, 4294901760
      %5308 = vmatmul.mubr.f32.gmra.mxu0 %v5307
      %v5309 = vpop.f32.mrf.mxu0
      %v5310 = vadd.f32 %v5003, %v5309
      %v5311 = vpop.f32.mrf.mxu0
      %5312 = vmatprep.mubr.f32.mxu0 0.0
      %v5313 = vand.u32 %v3229, 4294901760
      %5314 = vmatmul.mubr.f32.gmra.mxu0 %v5313
      %v5315 = vpop.f32.mrf.mxu0
      %v5316 = vadd.f32 %v5009, %v5315
      %v5317 = vpop.f32.mrf.mxu0
      %5318 = vmatprep.mubr.f32.mxu0 0.0
      %v5319 = vand.u32 %v3232, 4294901760
      %5320 = vmatmul.mubr.f32.gmra.mxu0 %v5319
      %v5321 = vpop.f32.mrf.mxu0
      %v5322 = vadd.f32 %v5015, %v5321
      %v5323 = vpop.f32.mrf.mxu0
      %5324 = vmatprep.mubr.f32.mxu0 0.0
      %v5325 = vand.u32 %v3235, 4294901760
      %5326 = vmatmul.mubr.f32.gmra.mxu0 %v5325
      %v5327 = vpop.f32.mrf.mxu0
      %v5328 = vadd.f32 %v5021, %v5327
      %v5329 = vpop.f32.mrf.mxu0
      %5330 = vmatprep.mubr.f32.mxu0 0.0
      %v5331 = vand.u32 %v3238, 4294901760
      %5332 = vmatmul.mubr.f32.gmra.mxu0 %v5331
      %v5333 = vpop.f32.mrf.mxu0
      %v5334 = vadd.f32 %v5027, %v5333
      %v5335 = vpop.f32.mrf.mxu0
      %5336 = vmatprep.mubr.f32.mxu0 0.0
      %v5337 = vand.u32 %v3241, 4294901760
      %5338 = vmatmul.mubr.f32.gmra.mxu0 %v5337
      %v5339 = vpop.f32.mrf.mxu0
      %v5340 = vadd.f32 %v5033, %v5339
      %v5341 = vpop.f32.mrf.mxu0
      %5342 = vmatprep.mubr.f32.mxu0 0.0
      %v5343 = vand.u32 %v3244, 4294901760
      %5344 = vmatmul.mubr.f32.gmra.mxu0 %v5343
      %v5345 = vpop.f32.mrf.mxu0
      %v5346 = vadd.f32 %v5039, %v5345
      %v5347 = vpop.f32.mrf.mxu0
      %5348 = vmatprep.mubr.f32.mxu0 0.0
      %v5349 = vand.u32 %v3247, 4294901760
      %5350 = vmatmul.mubr.f32.gmra.mxu0 %v5349
      %v5351 = vpop.f32.mrf.mxu0
      %v5352 = vadd.f32 %v5045, %v5351
      %v5353 = vpop.f32.mrf.mxu0
      %5354 = vmatprep.mubr.f32.mxu0 0.0
      %v5355 = vand.u32 %v3250, 4294901760
      %5356 = vmatmul.mubr.f32.gmra.mxu0 %v5355
      %v5357 = vpop.f32.mrf.mxu0
      %v5358 = vadd.f32 %v5051, %v5357
      %v5359 = vpop.f32.mrf.mxu0
      %5360 = vmatprep.mubr.f32.mxu0 0.0
      %v5361 = vand.u32 %v3253, 4294901760
      %5362 = vmatmul.mubr.f32.gmra.mxu0 %v5361
      %v5363 = vpop.f32.mrf.mxu0
      %v5364 = vadd.f32 %v5057, %v5363
      %v5365 = vpop.f32.mrf.mxu0
      %5366 = vmatprep.mubr.f32.mxu0 0.0
      %v5367 = vand.u32 %v3256, 4294901760
      %5368 = vmatmul.mubr.f32.gmra.mxu0 %v5367
      %v5369 = vpop.f32.mrf.mxu0
      %v5370 = vadd.f32 %v5063, %v5369
      %v5371 = vpop.f32.mrf.mxu0
      %5372 = vmatprep.mubr.f32.mxu0 0.0
      %v5373 = vand.u32 %v3259, 4294901760
      %5374 = vmatmul.mubr.f32.gmra.mxu0 %v5373
      %v5375 = vpop.f32.mrf.mxu0
      %v5376 = vadd.f32 %v5069, %v5375
      %v5377 = vpop.f32.mrf.mxu0
      %5378 = vmatprep.mubr.f32.mxu0 0.0
      %v5379 = vand.u32 %v3262, 4294901760
      %5380 = vmatmul.mubr.f32.gmra.mxu0 %v5379
      %v5381 = vpop.f32.mrf.mxu0
      %v5382 = vadd.f32 %v5075, %v5381
      %v5383 = vpop.f32.mrf.mxu0
      %5384 = vmatprep.mubr.f32.mxu0 0.0
      %v5385 = vand.u32 %v3265, 4294901760
      %5386 = vmatmul.mubr.f32.gmra.mxu0 %v5385
      %v5387 = vpop.f32.mrf.mxu0
      %v5388 = vadd.f32 %v5081, %v5387
      %v5389 = vpop.f32.mrf.mxu0
      %5390 = vmatprep.mubr.f32.mxu0 0.0
      %v5391 = vand.u32 %v3268, 4294901760
      %5392 = vmatmul.mubr.f32.gmra.mxu0 %v5391
      %v5393 = vpop.f32.mrf.mxu0
      %v5394 = vadd.f32 %v5087, %v5393
      %v5395 = vpop.f32.mrf.mxu0
      %5396 = vmatprep.mubr.f32.mxu0 0.0
      %v5397 = vand.u32 %v3271, 4294901760
      %5398 = vmatmul.mubr.f32.gmra.mxu0 %v5397
      %v5399 = vpop.f32.mrf.mxu0
      %v5400 = vadd.f32 %v5093, %v5399
      %v5401 = vpop.f32.mrf.mxu0
      %5402 = vmatprep.mubr.f32.mxu0 0.0
      %v5403 = vand.u32 %v3274, 4294901760
      %5404 = vmatmul.mubr.f32.gmra.mxu0 %v5403
      %v5405 = vpop.f32.mrf.mxu0
      %v5406 = vadd.f32 %v5099, %v5405
      %v5407 = vpop.f32.mrf.mxu0
      %5408 = vmatprep.mubr.f32.mxu0 0.0
      %v5409 = vand.u32 %v3277, 4294901760
      %5410 = vmatmul.mubr.f32.gmra.mxu0 %v5409
      %v5411 = vpop.f32.mrf.mxu0
      %v5412 = vadd.f32 %v5105, %v5411
      %v5413 = vpop.f32.mrf.mxu0
      %5414 = vdwg.mxu0
      %v5415 = vmul.f32 %v5178, %v5178
      %v5416 = vmul.f32 %v5184, %v5184
      %v5417 = vmul.f32 %v5190, %v5190
      %v5418 = vmul.f32 %v5196, %v5196
      %v5419 = vmul.f32 %v5202, %v5202
      %v5420 = vmul.f32 %v5208, %v5208
      %v5421 = vmul.f32 %v5214, %v5214
      %v5422 = vmul.f32 %v5220, %v5220
      %v5423 = vmul.f32 %v5226, %v5226
      %v5424 = vmul.f32 %v5232, %v5232
      %v5425 = vmul.f32 %v5238, %v5238
      %v5426 = vmul.f32 %v5244, %v5244
      %v5427 = vmul.f32 %v5250, %v5250
      %v5428 = vmul.f32 %v5256, %v5256
      %v5429 = vmul.f32 %v5262, %v5262
      %v5430 = vmul.f32 %v5268, %v5268
      %v5431 = vmul.f32 %v5178, %v5226
      %v5432 = vmul.f32 %v5184, %v5232
      %v5433 = vmul.f32 %v5190, %v5238
      %v5434 = vmul.f32 %v5196, %v5244
      %v5435 = vmul.f32 %v5202, %v5250
      %v5436 = vmul.f32 %v5208, %v5256
      %v5437 = vmul.f32 %v5214, %v5262
      %v5438 = vmul.f32 %v5220, %v5268
      %v5439 = vsub.f32 %v5274, %v5415
      %v5440 = vsub.f32 %v5280, %v5416
      %v5441 = vsub.f32 %v5286, %v5417
      %v5442 = vsub.f32 %v5292, %v5418
      %v5443 = vsub.f32 %v5298, %v5419
      %v5444 = vsub.f32 %v5304, %v5420
      %v5445 = vsub.f32 %v5310, %v5421
      %v5446 = vsub.f32 %v5316, %v5422
      %v5447 = vsub.f32 %v5322, %v5423
      %v5448 = vsub.f32 %v5328, %v5424
      %v5449 = vsub.f32 %v5334, %v5425
      %v5450 = vsub.f32 %v5340, %v5426
      %v5451 = vsub.f32 %v5346, %v5427
      %v5452 = vsub.f32 %v5352, %v5428
      %v5453 = vsub.f32 %v5358, %v5429
      %v5454 = vsub.f32 %v5364, %v5430
      %v5455 = vsub.f32 %v5370, %v5431
      %v5456 = vsub.f32 %v5376, %v5432
      %v5457 = vsub.f32 %v5382, %v5433
      %v5458 = vsub.f32 %v5388, %v5434
      %v5459 = vsub.f32 %v5394, %v5435
      %v5460 = vsub.f32 %v5400, %v5436
      %v5461 = vsub.f32 %v5406, %v5437
      %v5462 = vsub.f32 %v5412, %v5438
      %v5463 = vmul.f32 %v5431, 2.0
      %v5464 = vmul.f32 %v5432, 2.0
      %v5465 = vmul.f32 %v5433, 2.0
      %v5466 = vmul.f32 %v5434, 2.0
      %v5467 = vmul.f32 %v5435, 2.0
      %v5468 = vmul.f32 %v5436, 2.0
      %v5469 = vmul.f32 %v5437, 2.0
      %v5470 = vmul.f32 %v5438, 2.0
      %v5471 = vadd.f32 %v5463, 0.0001
      %v5472 = vadd.f32 %v5464, 0.0001
      %v5473 = vadd.f32 %v5465, 0.0001
      %v5474 = vadd.f32 %v5466, 0.0001
      %v5475 = vadd.f32 %v5467, 0.0001
      %v5476 = vadd.f32 %v5468, 0.0001
      %v5477 = vadd.f32 %v5469, 0.0001
      %v5478 = vadd.f32 %v5470, 0.0001
      %v5479 = vmul.f32 %v5455, 2.0
      %v5480 = vmul.f32 %v5456, 2.0
      %v5481 = vmul.f32 %v5457, 2.0
      %v5482 = vmul.f32 %v5458, 2.0
      %v5483 = vmul.f32 %v5459, 2.0
      %v5484 = vmul.f32 %v5460, 2.0
      %v5485 = vmul.f32 %v5461, 2.0
      %v5486 = vmul.f32 %v5462, 2.0
      %v5487 = vadd.f32 %v5479, 0.0009
      %v5488 = vadd.f32 %v5480, 0.0009
      %v5489 = vadd.f32 %v5481, 0.0009
      %v5490 = vadd.f32 %v5482, 0.0009
      %v5491 = vadd.f32 %v5483, 0.0009
      %v5492 = vadd.f32 %v5484, 0.0009
      %v5493 = vadd.f32 %v5485, 0.0009
      %v5494 = vadd.f32 %v5486, 0.0009
      %v5495 = vmul.f32 %v5471, %v5487
      %v5496 = vmul.f32 %v5472, %v5488
      %v5497 = vmul.f32 %v5473, %v5489
      %v5498 = vmul.f32 %v5474, %v5490
      %v5499 = vmul.f32 %v5475, %v5491
      %v5500 = vmul.f32 %v5476, %v5492
      %v5501 = vmul.f32 %v5477, %v5493
      %v5502 = vmul.f32 %v5478, %v5494
      %v5503 = vadd.f32 %v5415, %v5423
      %v5504 = vadd.f32 %v5416, %v5424
      %v5505 = vadd.f32 %v5417, %v5425
      %v5506 = vadd.f32 %v5418, %v5426
      %v5507 = vadd.f32 %v5419, %v5427
      %v5508 = vadd.f32 %v5420, %v5428
      %v5509 = vadd.f32 %v5421, %v5429
      %v5510 = vadd.f32 %v5422, %v5430
      %v5511 = vadd.f32 %v5503, 0.0001
      %v5512 = vadd.f32 %v5504, 0.0001
      %v5513 = vadd.f32 %v5505, 0.0001
      %v5514 = vadd.f32 %v5506, 0.0001
      %v5515 = vadd.f32 %v5507, 0.0001
      %v5516 = vadd.f32 %v5508, 0.0001
      %v5517 = vadd.f32 %v5509, 0.0001
      %v5518 = vadd.f32 %v5510, 0.0001
      %v5519 = vadd.f32 %v5439, %v5447
      %v5520 = vadd.f32 %v5440, %v5448
      %v5521 = vadd.f32 %v5441, %v5449
      %v5522 = vadd.f32 %v5442, %v5450
      %v5523 = vadd.f32 %v5443, %v5451
      %v5524 = vadd.f32 %v5444, %v5452
      %v5525 = vadd.f32 %v5445, %v5453
      %v5526 = vadd.f32 %v5446, %v5454
      %v5527 = vadd.f32 %v5519, 0.0009
      %v5528 = vadd.f32 %v5520, 0.0009
      %v5529 = vadd.f32 %v5521, 0.0009
      %v5530 = vadd.f32 %v5522, 0.0009
      %v5531 = vadd.f32 %v5523, 0.0009
      %v5532 = vadd.f32 %v5524, 0.0009
      %v5533 = vadd.f32 %v5525, 0.0009
      %v5534 = vadd.f32 %v5526, 0.0009
      %v5535 = vmul.f32 %v5511, %v5527
      %v5536 = vmul.f32 %v5512, %v5528
      %v5537 = vmul.f32 %v5513, %v5529
      %v5538 = vmul.f32 %v5514, %v5530
      %v5539 = vmul.f32 %v5515, %v5531
      %v5540 = vmul.f32 %v5516, %v5532
      %v5541 = vmul.f32 %v5517, %v5533
      %v5542 = vmul.f32 %v5518, %v5534
      %v5543 = vrcp.pop %v5535
      %v5544 = vmul.f32 %v5495, %v5543
      %v5545 = vrcp.pop %v5536
      %v5546 = vmul.f32 %v5496, %v5545
      %v5547 = vrcp.pop %v5537
      %v5548 = vmul.f32 %v5497, %v5547
      %v5549 = vrcp.pop %v5538
      %v5550 = vmul.f32 %v5498, %v5549
      %v5551 = vrcp.pop %v5539
      %v5552 = vmul.f32 %v5499, %v5551
      %v5553 = vrcp.pop %v5540
      %v5554 = vmul.f32 %v5500, %v5553
      %v5555 = vrcp.pop %v5541
      %v5556 = vmul.f32 %v5501, %v5555
      %v5557 = vrcp.pop %v5542
      %v5558 = vmul.f32 %v5502, %v5557
      %v5559 = vsel %vm262, %v5544, 0.0
      %v5560 = vsel %vm262, %v5546, 0.0
      %v5561 = vadd.f32 %v5559, %v5560
      %v5562 = vsel %vm262, %v5548, 0.0
      %v5563 = vadd.f32 %v5561, %v5562
      %v5564 = vsel %vm262, %v5550, 0.0
      %v5565 = vadd.f32 %v5563, %v5564
      %v5566 = vsel %vm262, %v5552, 0.0
      %v5567 = vadd.f32 %v5565, %v5566
      %v5568 = vsel %vm262, %v5554, 0.0
      %v5569 = vadd.f32 %v5567, %v5568
      %v5570 = vsel %vm262, %v5556, 0.0
      %v5571 = vadd.f32 %v5569, %v5570
      %v5572 = vsel %vm262, %v5558, 0.0
      %v5573 = vadd.f32 %v5571, %v5572
      %5574 = vadd.xlane.f32.xlu0 %v5573
      %v5575 = vpop.xlane.xlu0 %5574
      %v5576 = vrot.slane %v5575, 4
      %v5577 = vadd.f32 %v5575, %v5576
      %v5578 = vrot.slane %v5577, 2
      %v5579 = vadd.f32 %v5577, %v5578
      %v5580 = vrot.slane %v5579, 1
      %v5581 = vadd.f32 %v5579, %v5580
      %s5582 = vtos %v5581
      %v5583 = vstv %s5582
      %vm5584 = vcmask 0
      %5585 = vst.msk [vmem:[%s217] sm:$0x1] %vm5584, %v5583
      %p5586 = scmp.lt.s32.totalorder %s15, 1
      %s5587 = scalar_select %p5586, %s15, 1
      %s5588 = scalar_lea.vmem %s4, %s5587
      // Predicated region
      $region37: #{tpu_custom_call.1} parent=35 // pred_check
        %p5589 = pneg %p127
      $region38: #{tpu_custom_call.1} parent=35 // pred_check_branch
        %5591 = sbr.rel (%p5589) target = $region40
      $region39: #{tpu_custom_call.1} parent=35 // pred_region
        _
      $region40: #{tpu_custom_call.1} parent=35 // pred_fallthru
        _
    $region36: #{tpu_custom_call.1} parent=5 // pred_fallthru
      _
    %p5592 = scmp.le.s32.totalorder 2, %s10
    // Predicated region
    $region41: #{tpu_custom_call.1} parent=5 // pred_check
      %p5593 = pneg %p5592
    $region42: #{tpu_custom_call.1} parent=5 // pred_check_branch
      %5595 = sbr.rel (%p5593) target = $region44
    $region43: #{tpu_custom_call.1} parent=5 // pred_region
      %s5596 = ssub.s32 %s10, 2
      // Predicated region
      $region45: #{tpu_custom_call.1} parent=43 // pred_check
        %p5597 = pneg %p133
      $region46: #{tpu_custom_call.1} parent=43 // pred_check_branch
        %5599 = sbr.rel (%p5597) target = $region48
      $region47: #{tpu_custom_call.1} parent=43 // pred_region
        %p5600 = scmp.lt.s32.totalorder %s16, 1
        %s5601 = scalar_select %p5600, %s16, 1
        %s5602 = scalar_lea.vmem %s4, %s5601
      $region48: #{tpu_custom_call.1} parent=43 // pred_fallthru
        _
    $region44: #{tpu_custom_call.1} parent=5 // pred_fallthru
      _
  $region6: #{tpu_custom_call.1} parent=0 // loop_footer
    %s14 = sadd.s32 1, %s10
  $region7: #{tpu_custom_call.1} parent=0 // loop_footer_branch
    %9 = sbr.rel target = $region3
  $region8: #{tpu_custom_call.1} parent=0 // loop_exit
    _

</llo_original>
